<compile_context>
chip_gen: v7x
topology: tpu7x:2x2x1
jax: 0.10.0
libtpu: 0.0.40
codegen_flags: <defaults>
</compile_context>

<pallas_src>
import math
import functools

import jax
import jax.numpy as jnp
from jax.experimental import pallas as pl
from jax.experimental.pallas import tpu as pltpu

D_MODEL = 128          # TransformerClassifier default
NHEAD = 4              # irrelevant for seq_len==1 output (softmax over 1 key == 1)
NUM_LAYERS = 2
DFF = 2048             # nn.TransformerEncoderLayer default dim_feedforward
INPUT_DIM = 16
NUM_CLASSES = 10
MAX_LEN = 500
EPS = 1e-5             # nn.LayerNorm default eps
OUT_PAD = 128          # lane-dense padded classifier width (sliced to NUM_CLASSES in JAX)


def _round_up(n, m):
    return (n + m - 1) // m * m


def _cdiv(a, b):
    return -(-a // b)


def _layer_norm(h, g, b):
    # E[h^2] - mu^2 form: the two cross-lane reductions are independent.
    mu = jnp.mean(h, axis=-1, keepdims=True)
    ms = jnp.mean(h * h, axis=-1, keepdims=True)
    var = jnp.maximum(ms - mu * mu, 0.0)
    return (h - mu) * jax.lax.rsqrt(var + EPS) * g + b


def transformer_kernel(x_ref, emb_w_ref, emb_b_ref,
                       w_attn_ref, w1_ref, b1_ref, w2_ref,
                       vec_ref, fc_w_ref, fc_b_ref, out_ref, *, ff_bf16):
    f32, bf16 = jnp.float32, jnp.bfloat16

    # embedding Linear + positional encoding at position 0 (folded into emb_b).
    # TODO(synk): dropout layers are eval-mode identity (no RNG applied here).
    h = jnp.dot(x_ref[...], emb_w_ref[...], preferred_element_type=f32) + emb_b_ref[...]

    for l in range(NUM_LAYERS):  # post-norm TransformerEncoderLayer, statically unrolled
        b_attn = vec_ref[l, 0:1, :]
        ln1_g, ln1_b = vec_ref[l, 1:2, :], vec_ref[l, 2:3, :]
        b2 = vec_ref[l, 3:4, :]
        ln2_g, ln2_b = vec_ref[l, 4:5, :], vec_ref[l, 5:6, :]

        # --- self-attention with seq_len == 1 (exact): attn + residual =
        #     h @ (Wv@Wo + I) + b_attn   (residual identity folded into the weight).
        h = _layer_norm(
            jnp.dot(h.astype(bf16), w_attn_ref[l], preferred_element_type=f32) + b_attn,
            ln1_g, ln1_b)

        # --- feed-forward: linear2(relu(linear1(h))) ---
        ff = jnp.dot(h.astype(bf16), w1_ref[l], preferred_element_type=f32)
        if ff_bf16:
            # packed-bf16 epilogue over the (tile_b, DFF) tensor (v6e/v7x VPU).
            ff = ff.astype(bf16) + b1_ref[l].astype(bf16)
            ff = jnp.maximum(ff, jnp.zeros_like(ff))
        else:
            # v5e: no bf16 VPU and MXU-bound anyway -> keep f32 epilogue.
            ff = jnp.maximum(ff + b1_ref[l], 0.0).astype(bf16)
        ff = jnp.dot(ff, w2_ref[l], preferred_element_type=f32) + b2
        h = _layer_norm(h + ff, ln2_g, ln2_b)

    # x.mean(dim=1) over seq_len == 1 is identity; lane-dense 128-wide head.
    out_ref[...] = jnp.dot(h.astype(bf16), fc_w_ref[...], preferred_element_type=f32) + fc_b_ref[...]


# ------------------------- device-dependent configuration -------------------------

def _device_config():
    try:
        kind = jax.devices()[0].device_kind.lower()
    except Exception:
        kind = ""
    is_v7x = "7" in kind
    is_v5 = "v5" in kind
    if is_v7x:
        # 64 MiB physical VMEM per TC: keep medium tiles, two+ grid steps for 2 TCs.
        base_tile, vmem_limit = 256, 40 * 1024 * 1024
    else:
        # v5e/v6e: 128 MiB physical VMEM, single TC -> bigger tiles amortize per-step cost.
        base_tile, vmem_limit = 512, 64 * 1024 * 1024
    ff_bf16 = not is_v5   # bf16 VPU exists on v6e/v7x; v5e stays f32 (MXU-bound)
    return dict(is_v7x=is_v7x, base_tile=base_tile, vmem_limit=vmem_limit, ff_bf16=ff_bf16)


def _choose_tiling(B, is_v7x, base_tile):
    num_tiles = _cdiv(B, base_tile)
    if is_v7x:
        if num_tiles == 1 and B > 8:
            num_tiles = 2                      # give both TensorCores a grid step
        elif num_tiles > 1 and num_tiles % 2 == 1:
            num_tiles += 1                     # even split across 2 TCs
    tile_b = _round_up(_cdiv(B, num_tiles), 8)  # <8 rows of padding waste
    b_pad = _round_up(B, tile_b)
    return tile_b, b_pad


def _const_spec(shape):
    """Constant-index, single-buffered BlockSpec: weight stays VMEM-resident, no
    useless double-buffer copy."""
    nd = len(shape)
    return pl.BlockSpec(shape, lambda i, _n=nd: (0,) * _n, pipeline_mode=pl.Buffered(1))


def transformer_classifier(x, kp):
    """x: (batch, INPUT_DIM) f32;  kp: prepared kernel params (see prepare_kernel_params)."""
    cfg = _device_config()
    B = x.shape[0]
    tile_b, b_pad = _choose_tiling(B, cfg["is_v7x"], cfg["base_tile"])
    x_pad = jnp.zeros((b_pad, INPUT_DIM), jnp.bfloat16).at[:B].set(x.astype(jnp.bfloat16))

    grid = (b_pad // tile_b,)
    kernel = functools.partial(transformer_kernel, ff_bf16=cfg["ff_bf16"])
    out = pl.pallas_call(
        kernel,
        out_shape=jax.ShapeDtypeStruct((b_pad, OUT_PAD), jnp.float32),
        grid_spec=pltpu.PrefetchScalarGridSpec(
            num_scalar_prefetch=0,
            grid=grid,
            in_specs=[
                # batch-tiled activations: auto double-buffered
                pl.BlockSpec((tile_b, INPUT_DIM), lambda i: (i, 0)),
                # weights / biases: constant index_map, single-buffered, VMEM-resident
                _const_spec((INPUT_DIM, D_MODEL)),
                _const_spec((1, D_MODEL)),
                _const_spec((NUM_LAYERS, D_MODEL, D_MODEL)),
                _const_spec((NUM_LAYERS, D_MODEL, DFF)),
                _const_spec((NUM_LAYERS, 1, DFF)),
                _const_spec((NUM_LAYERS, DFF, D_MODEL)),
                _const_spec((NUM_LAYERS, 8, D_MODEL)),
                _const_spec((D_MODEL, OUT_PAD)),
                _const_spec((1, OUT_PAD)),
            ],
            out_specs=pl.BlockSpec((tile_b, OUT_PAD), lambda i: (i, 0)),
        ),
        compiler_params=pltpu.CompilerParams(
            # v7x: shard batch tiles across both TensorCores; no-op on v5e/v6e.
            dimension_semantics=("parallel",),
            vmem_limit_bytes=cfg["vmem_limit"],
        ),
    )(x_pad, kp["emb_w"], kp["emb_b"], kp["w_attn"], kp["w1"], kp["b1"],
      kp["w2"], kp["vecs"], kp["fc_w"], kp["fc_b"])
    return out[:B, :NUM_CLASSES]


# ----------------------------- parameter handling -----------------------------

def make_positional_encoding():
    position = jnp.arange(0, MAX_LEN, dtype=jnp.float32)[:, None]
    div_term = jnp.exp(jnp.arange(0, D_MODEL, 2, dtype=jnp.float32)
                       * (-math.log(10000.0) / D_MODEL))
    pe = jnp.zeros((MAX_LEN, D_MODEL), jnp.float32)
    pe = pe.at[:, 0::2].set(jnp.sin(position * div_term))
    pe = pe.at[:, 1::2].set(jnp.cos(position * div_term))
    return pe[0:1]  # only position 0 is used (seq_len == 1)


def init_params(key):
    """Raw PyTorch-layout params: every Linear weight pre-transposed to (in, out).
    wv/bv are the V-slice of nn.MultiheadAttention's packed in_proj_{weight,bias}."""
    def linear(k, fan_in, fan_out):
        k1, k2 = jax.random.split(k)
        bound = 1.0 / math.sqrt(fan_in)
        w = jax.random.uniform(k1, (fan_in, fan_out), jnp.float32, -bound, bound)
        b = jax.random.uniform(k2, (1, fan_out), jnp.float32, -bound, bound)
        return w, b

    keys = iter(jax.random.split(key, 2 + 4 * NUM_LAYERS))
    emb_w, emb_b = linear(next(keys), INPUT_DIM, D_MODEL)
    fc_w, fc_b = linear(next(keys), D_MODEL, NUM_CLASSES)

    wv, bv, wo, bo = [], [], [], []
    w1, b1, w2, b2 = [], [], [], []
    ln1_g, ln1_b, ln2_g, ln2_b = [], [], [], []
    for _ in range(NUM_LAYERS):
        w, b = linear(next(keys), D_MODEL, D_MODEL); wv.append(w); bv.append(b)
        w, b = linear(next(keys), D_MODEL, D_MODEL); wo.append(w); bo.append(b)
        w, b = linear(next(keys), D_MODEL, DFF);     w1.append(w); b1.append(b)
        w, b = linear(next(keys), DFF, D_MODEL);     w2.append(w); b2.append(b)
        ln1_g.append(jnp.ones((1, D_MODEL), jnp.float32))
        ln1_b.append(jnp.zeros((1, D_MODEL), jnp.float32))
        ln2_g.append(jnp.ones((1, D_MODEL), jnp.float32))
        ln2_b.append(jnp.zeros((1, D_MODEL), jnp.float32))

    stack = lambda xs: jnp.stack(xs, axis=0)
    return dict(
        pe=make_positional_encoding(),
        emb_w=emb_w, emb_b=emb_b, fc_w=fc_w, fc_b=fc_b,
        wv=stack(wv), bv=stack(bv), wo=stack(wo), bo=stack(bo),
        w1=stack(w1), b1=stack(b1), w2=stack(w2), b2=stack(b2),
        ln1_g=stack(ln1_g), ln1_b=stack(ln1_b),
        ln2_g=stack(ln2_g), ln2_b=stack(ln2_b),
    )


def prepare_kernel_params(p):
    """Wrapper-side algebra + layout prep (exact except the bf16 weight cast)."""
    bf16 = jnp.bfloat16
    # fold PE(position 0) into the embedding bias
    emb_b_eff = p["emb_b"] + p["pe"]
    # fuse V-projection and out-projection (exact for seq_len == 1), and fold in
    # the attention residual: h + out_proj(V_proj(h)) == h @ (Wv@Wo + I) + b_attn.
    eye = jnp.eye(D_MODEL, dtype=jnp.float32)[None]
    w_attn = jnp.einsum("lij,ljk->lik", p["wv"], p["wo"]) + eye
    b_attn = jnp.einsum("lij,ljk->lik", p["bv"], p["wo"]) + p["bo"]
    # pack all (1, D_MODEL) per-layer vectors into one aligned (L, 8, 128) slab
    vecs = jnp.concatenate(
        [b_attn, p["ln1_g"], p["ln1_b"], p["b2"], p["ln2_g"], p["ln2_b"]], axis=1)
    vecs = jnp.pad(vecs, ((0, 0), (0, 8 - vecs.shape[1]), (0, 0)))
    # lane-dense classifier head (padded to 128 columns)
    fc_w = jnp.zeros((D_MODEL, OUT_PAD), jnp.float32).at[:, :NUM_CLASSES].set(p["fc_w"])
    fc_b = jnp.zeros((1, OUT_PAD), jnp.float32).at[:, :NUM_CLASSES].set(p["fc_b"])
    return dict(
        emb_w=p["emb_w"].astype(bf16), emb_b=emb_b_eff,
        w_attn=w_attn.astype(bf16),
        w1=p["w1"].astype(bf16), b1=p["b1"],
        w2=p["w2"].astype(bf16),
        vecs=vecs,
        fc_w=fc_w.astype(bf16), fc_b=fc_b,
    )


def reference_forward(x, kp, *, ff_bf16):
    """Pure-JAX reference with the same prepared (bf16) params and identical math."""
    f32, bf16 = jnp.float32, jnp.bfloat16
    dot = functools.partial(jnp.dot, preferred_element_type=f32)
    h = dot(x.astype(bf16), kp["emb_w"]) + kp["emb_b"]
    for l in range(NUM_LAYERS):
        b_attn = kp["vecs"][l, 0:1]
        ln1_g, ln1_b = kp["vecs"][l, 1:2], kp["vecs"][l, 2:3]
        b2 = kp["vecs"][l, 3:4]
        ln2_g, ln2_b = kp["vecs"][l, 4:5], kp["vecs"][l, 5:6]
        h = _layer_norm(dot(h.astype(bf16), kp["w_attn"][l]) + b_attn, ln1_g, ln1_b)
        ff = dot(h.astype(bf16), kp["w1"][l])
        if ff_bf16:
            ff = jnp.maximum(ff.astype(bf16) + kp["b1"][l].astype(bf16),
                             jnp.zeros_like(ff, dtype=bf16))
        else:
            ff = jnp.maximum(ff + kp["b1"][l], 0.0).astype(bf16)
        ff = dot(ff, kp["w2"][l]) + b2
        h = _layer_norm(h + ff, ln2_g, ln2_b)
    return (dot(h.astype(bf16), kp["fc_w"]) + kp["fc_b"])[:, :NUM_CLASSES]


if __name__ == "__main__":
    key = jax.random.PRNGKey(0)
    k_params, k_x, k_x2 = jax.random.split(key, 3)
    raw = init_params(k_params)
    kp = prepare_kernel_params(raw)
    cfg = _device_config()

    # small example consistent with the module: (batch=2, input_dim=16)
    x = jax.random.normal(k_x, (2, INPUT_DIM), jnp.float32)
    out = jax.block_until_ready(transformer_classifier(x, kp))
    ref = reference_forward(x, kp, ff_bf16=cfg["ff_bf16"])
    assert out.shape == (2, NUM_CLASSES)
    assert jnp.allclose(out, ref, rtol=1e-2, atol=1e-2), "mismatch vs JAX reference"

    # exercise the adaptive multi-tile / padded-batch path as well
    x2 = jax.random.normal(k_x2, (24, INPUT_DIM), jnp.float32)
    out2 = jax.block_until_ready(transformer_classifier(x2, kp))
    ref2 = reference_forward(x2, kp, ff_bf16=cfg["ff_bf16"])
    assert out2.shape == (24, NUM_CLASSES)
    assert jnp.allclose(out2, ref2, rtol=1e-2, atol=1e-2), "mismatch vs JAX reference"

    print("KERNEL_OK")
</pallas_src>

<mosaic_0001>
module attributes {stable_mosaic.version = 11 : i64} {
  func.func @transformer_kernel(%arg0: i32, %arg1: memref<8x16xbf16, #tpu.memory_space<vmem>>, %arg2: memref<16x128xbf16, #tpu.memory_space<vmem>>, %arg3: memref<1x128xf32, #tpu.memory_space<vmem>>, %arg4: memref<2x128x128xbf16, #tpu.memory_space<vmem>>, %arg5: memref<2x128x2048xbf16, #tpu.memory_space<vmem>>, %arg6: memref<2x1x2048xf32, #tpu.memory_space<vmem>>, %arg7: memref<2x2048x128xbf16, #tpu.memory_space<vmem>>, %arg8: memref<2x8x128xf32, #tpu.memory_space<vmem>>, %arg9: memref<128x128xbf16, #tpu.memory_space<vmem>>, %arg10: memref<1x128xf32, #tpu.memory_space<vmem>>, %arg11: memref<8x128xf32, #tpu.memory_space<vmem>>) attributes {dimension_semantics = [#tpu.dimension_semantics<parallel>], iteration_bounds = array<i64: 1>, scalar_prefetch = 0 : i64, scratch_operands = 0 : i64, tpu.core_type = #tpu.core_type<tc>, window_params = [{transform_indices = @transform_0, window_bounds = array<i64: 8, 16>}, {pipeline_mode = #tpu.pipeline_mode<synchronous>, transform_indices = @transform_1, window_bounds = array<i64: 16, 128>}, {pipeline_mode = #tpu.pipeline_mode<synchronous>, transform_indices = @transform_2, window_bounds = array<i64: 1, 128>}, {pipeline_mode = #tpu.pipeline_mode<synchronous>, transform_indices = @transform_3, window_bounds = array<i64: 2, 128, 128>}, {pipeline_mode = #tpu.pipeline_mode<synchronous>, transform_indices = @transform_4, window_bounds = array<i64: 2, 128, 2048>}, {pipeline_mode = #tpu.pipeline_mode<synchronous>, transform_indices = @transform_5, window_bounds = array<i64: 2, 1, 2048>}, {pipeline_mode = #tpu.pipeline_mode<synchronous>, transform_indices = @transform_6, window_bounds = array<i64: 2, 2048, 128>}, {pipeline_mode = #tpu.pipeline_mode<synchronous>, transform_indices = @transform_7, window_bounds = array<i64: 2, 8, 128>}, {pipeline_mode = #tpu.pipeline_mode<synchronous>, transform_indices = @transform_8, window_bounds = array<i64: 128, 128>}, {pipeline_mode = #tpu.pipeline_mode<synchronous>, transform_indices = @transform_9, window_bounds = array<i64: 1, 128>}, {transform_indices = @transform_10, window_bounds = array<i64: 8, 128>}]} {
    %c0 = arith.constant 0 : index
    %c0_0 = arith.constant 0 : index
    %0 = vector.load %arg1[%c0, %c0_0] : memref<8x16xbf16, #tpu.memory_space<vmem>>, vector<8x16xbf16>
    %c0_1 = arith.constant 0 : index
    %c0_2 = arith.constant 0 : index
    %1 = vector.load %arg2[%c0_1, %c0_2] : memref<16x128xbf16, #tpu.memory_space<vmem>>, vector<16x128xbf16>
    %cst = arith.constant dense<0.000000e+00> : vector<8x128xf32>
    %2 = tpu.matmul %0, %1, %cst {dimension_numbers = #tpu.dot_dimension_numbers<[1], [0], [0], [1], [0, 0, 1, 1], [], []>} : vector<8x16xbf16>, vector<16x128xbf16>, vector<8x128xf32> -> vector<8x128xf32>
    %c0_3 = arith.constant 0 : index
    %c0_4 = arith.constant 0 : index
    %3 = vector.load %arg3[%c0_3, %c0_4] : memref<1x128xf32, #tpu.memory_space<vmem>>, vector<1x128xf32>
    %4 = vector.broadcast %3 : vector<1x128xf32> to vector<8x128xf32>
    %5 = arith.addf %2, %4 : vector<8x128xf32>
    %c0_5 = arith.constant 0 : index
    %c0_6 = arith.constant 0 : index
    %c0_7 = arith.constant 0 : index
    %6 = vector.load %arg8[%c0_5, %c0_6, %c0_7] : memref<2x8x128xf32, #tpu.memory_space<vmem>>, vector<1x1x128xf32>
    %7 = vector.shape_cast %6 : vector<1x1x128xf32> to vector<1x128xf32>
    %c0_8 = arith.constant 0 : index
    %c1 = arith.constant 1 : index
    %c0_9 = arith.constant 0 : index
    %8 = vector.load %arg8[%c0_8, %c1, %c0_9] : memref<2x8x128xf32, #tpu.memory_space<vmem>>, vector<1x1x128xf32>
    %9 = vector.shape_cast %8 : vector<1x1x128xf32> to vector<1x128xf32>
    %c0_10 = arith.constant 0 : index
    %c2 = arith.constant 2 : index
    %c0_11 = arith.constant 0 : index
    %10 = vector.load %arg8[%c0_10, %c2, %c0_11] : memref<2x8x128xf32, #tpu.memory_space<vmem>>, vector<1x1x128xf32>
    %11 = vector.shape_cast %10 : vector<1x1x128xf32> to vector<1x128xf32>
    %c0_12 = arith.constant 0 : index
    %c3 = arith.constant 3 : index
    %c0_13 = arith.constant 0 : index
    %12 = vector.load %arg8[%c0_12, %c3, %c0_13] : memref<2x8x128xf32, #tpu.memory_space<vmem>>, vector<1x1x128xf32>
    %13 = vector.shape_cast %12 : vector<1x1x128xf32> to vector<1x128xf32>
    %c0_14 = arith.constant 0 : index
    %c4 = arith.constant 4 : index
    %c0_15 = arith.constant 0 : index
    %14 = vector.load %arg8[%c0_14, %c4, %c0_15] : memref<2x8x128xf32, #tpu.memory_space<vmem>>, vector<1x1x128xf32>
    %15 = vector.shape_cast %14 : vector<1x1x128xf32> to vector<1x128xf32>
    %c0_16 = arith.constant 0 : index
    %c5 = arith.constant 5 : index
    %c0_17 = arith.constant 0 : index
    %16 = vector.load %arg8[%c0_16, %c5, %c0_17] : memref<2x8x128xf32, #tpu.memory_space<vmem>>, vector<1x1x128xf32>
    %17 = vector.shape_cast %16 : vector<1x1x128xf32> to vector<1x128xf32>
    %18 = arith.truncf %5 : vector<8x128xf32> to vector<8x128xbf16>
    %c0_18 = arith.constant 0 : index
    %c0_19 = arith.constant 0 : index
    %c0_20 = arith.constant 0 : index
    %19 = vector.load %arg4[%c0_18, %c0_19, %c0_20] : memref<2x128x128xbf16, #tpu.memory_space<vmem>>, vector<1x128x128xbf16>
    %20 = vector.shape_cast %19 : vector<1x128x128xbf16> to vector<128x128xbf16>
    %cst_21 = arith.constant dense<0.000000e+00> : vector<8x128xf32>
    %21 = tpu.matmul %18, %20, %cst_21 {dimension_numbers = #tpu.dot_dimension_numbers<[1], [0], [0], [1], [0, 0, 1, 1], [], []>} : vector<8x128xbf16>, vector<128x128xbf16>, vector<8x128xf32> -> vector<8x128xf32>
    %22 = vector.broadcast %7 : vector<1x128xf32> to vector<8x128xf32>
    %23 = arith.addf %21, %22 : vector<8x128xf32>
    %cst_22 = arith.constant dense<0.000000e+00> : vector<8xf32>
    %24 = vector.multi_reduction <add>, %23, %cst_22 [1] : vector<8x128xf32> to vector<8xf32>
    %25 = vector.shape_cast %24 : vector<8xf32> to vector<8x1xf32>
    %cst_23 = arith.constant 1.280000e+02 : f32
    %26 = vector.broadcast %cst_23 : f32 to vector<8x1xf32>
    %27 = arith.divf %25, %26 : vector<8x1xf32>
    %28 = arith.mulf %23, %23 : vector<8x128xf32>
    %cst_24 = arith.constant dense<0.000000e+00> : vector<8xf32>
    %29 = vector.multi_reduction <add>, %28, %cst_24 [1] : vector<8x128xf32> to vector<8xf32>
    %30 = vector.shape_cast %29 : vector<8xf32> to vector<8x1xf32>
    %cst_25 = arith.constant 1.280000e+02 : f32
    %31 = vector.broadcast %cst_25 : f32 to vector<8x1xf32>
    %32 = arith.divf %30, %31 : vector<8x1xf32>
    %33 = arith.mulf %27, %27 : vector<8x1xf32>
    %34 = arith.subf %32, %33 : vector<8x1xf32>
    %cst_26 = arith.constant 0.000000e+00 : f32
    %35 = vector.broadcast %cst_26 : f32 to vector<8x1xf32>
    %36 = arith.maximumf %34, %35 : vector<8x1xf32>
    %37 = vector.broadcast %27 : vector<8x1xf32> to vector<8x128xf32>
    %38 = arith.subf %23, %37 : vector<8x128xf32>
    %cst_27 = arith.constant 9.99999974E-6 : f32
    %39 = vector.broadcast %cst_27 : f32 to vector<8x1xf32>
    %40 = arith.addf %36, %39 : vector<8x1xf32>
    %41 = math.rsqrt %40 : vector<8x1xf32>
    %42 = vector.broadcast %41 : vector<8x1xf32> to vector<8x128xf32>
    %43 = arith.mulf %38, %42 : vector<8x128xf32>
    %44 = vector.broadcast %9 : vector<1x128xf32> to vector<8x128xf32>
    %45 = arith.mulf %43, %44 : vector<8x128xf32>
    %46 = vector.broadcast %11 : vector<1x128xf32> to vector<8x128xf32>
    %47 = arith.addf %45, %46 : vector<8x128xf32>
    %48 = arith.truncf %47 : vector<8x128xf32> to vector<8x128xbf16>
    %c0_28 = arith.constant 0 : index
    %c0_29 = arith.constant 0 : index
    %c0_30 = arith.constant 0 : index
    %49 = vector.load %arg5[%c0_28, %c0_29, %c0_30] : memref<2x128x2048xbf16, #tpu.memory_space<vmem>>, vector<1x128x2048xbf16>
    %50 = vector.shape_cast %49 : vector<1x128x2048xbf16> to vector<128x2048xbf16>
    %cst_31 = arith.constant dense<0.000000e+00> : vector<8x2048xf32>
    %51 = tpu.matmul %48, %50, %cst_31 {dimension_numbers = #tpu.dot_dimension_numbers<[1], [0], [0], [1], [0, 0, 1, 1], [], []>} : vector<8x128xbf16>, vector<128x2048xbf16>, vector<8x2048xf32> -> vector<8x2048xf32>
    %52 = arith.truncf %51 : vector<8x2048xf32> to vector<8x2048xbf16>
    %c0_32 = arith.constant 0 : index
    %c0_33 = arith.constant 0 : index
    %c0_34 = arith.constant 0 : index
    %53 = vector.load %arg6[%c0_32, %c0_33, %c0_34] : memref<2x1x2048xf32, #tpu.memory_space<vmem>>, vector<1x1x2048xf32>
    %54 = vector.shape_cast %53 : vector<1x1x2048xf32> to vector<1x2048xf32>
    %55 = arith.truncf %54 : vector<1x2048xf32> to vector<1x2048xbf16>
    %56 = vector.broadcast %55 : vector<1x2048xbf16> to vector<8x2048xbf16>
    %57 = arith.addf %52, %56 : vector<8x2048xbf16>
    %cst_35 = arith.constant 0.000000e+00 : bf16
    %58 = vector.broadcast %cst_35 : bf16 to vector<8x2048xbf16>
    %59 = arith.maximumf %57, %58 : vector<8x2048xbf16>
    %c0_36 = arith.constant 0 : index
    %c0_37 = arith.constant 0 : index
    %c0_38 = arith.constant 0 : index
    %60 = vector.load %arg7[%c0_36, %c0_37, %c0_38] : memref<2x2048x128xbf16, #tpu.memory_space<vmem>>, vector<1x2048x128xbf16>
    %61 = vector.shape_cast %60 : vector<1x2048x128xbf16> to vector<2048x128xbf16>
    %cst_39 = arith.constant dense<0.000000e+00> : vector<8x128xf32>
    %62 = tpu.matmul %59, %61, %cst_39 {dimension_numbers = #tpu.dot_dimension_numbers<[1], [0], [0], [1], [0, 0, 1, 1], [], []>} : vector<8x2048xbf16>, vector<2048x128xbf16>, vector<8x128xf32> -> vector<8x128xf32>
    %63 = vector.broadcast %13 : vector<1x128xf32> to vector<8x128xf32>
    %64 = arith.addf %62, %63 : vector<8x128xf32>
    %65 = arith.addf %47, %64 : vector<8x128xf32>
    %cst_40 = arith.constant dense<0.000000e+00> : vector<8xf32>
    %66 = vector.multi_reduction <add>, %65, %cst_40 [1] : vector<8x128xf32> to vector<8xf32>
    %67 = vector.shape_cast %66 : vector<8xf32> to vector<8x1xf32>
    %cst_41 = arith.constant 1.280000e+02 : f32
    %68 = vector.broadcast %cst_41 : f32 to vector<8x1xf32>
    %69 = arith.divf %67, %68 : vector<8x1xf32>
    %70 = arith.mulf %65, %65 : vector<8x128xf32>
    %cst_42 = arith.constant dense<0.000000e+00> : vector<8xf32>
    %71 = vector.multi_reduction <add>, %70, %cst_42 [1] : vector<8x128xf32> to vector<8xf32>
    %72 = vector.shape_cast %71 : vector<8xf32> to vector<8x1xf32>
    %cst_43 = arith.constant 1.280000e+02 : f32
    %73 = vector.broadcast %cst_43 : f32 to vector<8x1xf32>
    %74 = arith.divf %72, %73 : vector<8x1xf32>
    %75 = arith.mulf %69, %69 : vector<8x1xf32>
    %76 = arith.subf %74, %75 : vector<8x1xf32>
    %cst_44 = arith.constant 0.000000e+00 : f32
    %77 = vector.broadcast %cst_44 : f32 to vector<8x1xf32>
    %78 = arith.maximumf %76, %77 : vector<8x1xf32>
    %79 = vector.broadcast %69 : vector<8x1xf32> to vector<8x128xf32>
    %80 = arith.subf %65, %79 : vector<8x128xf32>
    %cst_45 = arith.constant 9.99999974E-6 : f32
    %81 = vector.broadcast %cst_45 : f32 to vector<8x1xf32>
    %82 = arith.addf %78, %81 : vector<8x1xf32>
    %83 = math.rsqrt %82 : vector<8x1xf32>
    %84 = vector.broadcast %83 : vector<8x1xf32> to vector<8x128xf32>
    %85 = arith.mulf %80, %84 : vector<8x128xf32>
    %86 = vector.broadcast %15 : vector<1x128xf32> to vector<8x128xf32>
    %87 = arith.mulf %85, %86 : vector<8x128xf32>
    %88 = vector.broadcast %17 : vector<1x128xf32> to vector<8x128xf32>
    %89 = arith.addf %87, %88 : vector<8x128xf32>
    %c1_46 = arith.constant 1 : index
    %c0_47 = arith.constant 0 : index
    %c0_48 = arith.constant 0 : index
    %90 = vector.load %arg8[%c1_46, %c0_47, %c0_48] : memref<2x8x128xf32, #tpu.memory_space<vmem>>, vector<1x1x128xf32>
    %91 = vector.shape_cast %90 : vector<1x1x128xf32> to vector<1x128xf32>
    %c1_49 = arith.constant 1 : index
    %c1_50 = arith.constant 1 : index
    %c0_51 = arith.constant 0 : index
    %92 = vector.load %arg8[%c1_49, %c1_50, %c0_51] : memref<2x8x128xf32, #tpu.memory_space<vmem>>, vector<1x1x128xf32>
    %93 = vector.shape_cast %92 : vector<1x1x128xf32> to vector<1x128xf32>
    %c1_52 = arith.constant 1 : index
    %c2_53 = arith.constant 2 : index
    %c0_54 = arith.constant 0 : index
    %94 = vector.load %arg8[%c1_52, %c2_53, %c0_54] : memref<2x8x128xf32, #tpu.memory_space<vmem>>, vector<1x1x128xf32>
    %95 = vector.shape_cast %94 : vector<1x1x128xf32> to vector<1x128xf32>
    %c1_55 = arith.constant 1 : index
    %c3_56 = arith.constant 3 : index
    %c0_57 = arith.constant 0 : index
    %96 = vector.load %arg8[%c1_55, %c3_56, %c0_57] : memref<2x8x128xf32, #tpu.memory_space<vmem>>, vector<1x1x128xf32>
    %97 = vector.shape_cast %96 : vector<1x1x128xf32> to vector<1x128xf32>
    %c1_58 = arith.constant 1 : index
    %c4_59 = arith.constant 4 : index
    %c0_60 = arith.constant 0 : index
    %98 = vector.load %arg8[%c1_58, %c4_59, %c0_60] : memref<2x8x128xf32, #tpu.memory_space<vmem>>, vector<1x1x128xf32>
    %99 = vector.shape_cast %98 : vector<1x1x128xf32> to vector<1x128xf32>
    %c1_61 = arith.constant 1 : index
    %c5_62 = arith.constant 5 : index
    %c0_63 = arith.constant 0 : index
    %100 = vector.load %arg8[%c1_61, %c5_62, %c0_63] : memref<2x8x128xf32, #tpu.memory_space<vmem>>, vector<1x1x128xf32>
    %101 = vector.shape_cast %100 : vector<1x1x128xf32> to vector<1x128xf32>
    %102 = arith.truncf %89 : vector<8x128xf32> to vector<8x128xbf16>
    %c1_64 = arith.constant 1 : index
    %c0_65 = arith.constant 0 : index
    %c0_66 = arith.constant 0 : index
    %103 = vector.load %arg4[%c1_64, %c0_65, %c0_66] : memref<2x128x128xbf16, #tpu.memory_space<vmem>>, vector<1x128x128xbf16>
    %104 = vector.shape_cast %103 : vector<1x128x128xbf16> to vector<128x128xbf16>
    %cst_67 = arith.constant dense<0.000000e+00> : vector<8x128xf32>
    %105 = tpu.matmul %102, %104, %cst_67 {dimension_numbers = #tpu.dot_dimension_numbers<[1], [0], [0], [1], [0, 0, 1, 1], [], []>} : vector<8x128xbf16>, vector<128x128xbf16>, vector<8x128xf32> -> vector<8x128xf32>
    %106 = vector.broadcast %91 : vector<1x128xf32> to vector<8x128xf32>
    %107 = arith.addf %105, %106 : vector<8x128xf32>
    %cst_68 = arith.constant dense<0.000000e+00> : vector<8xf32>
    %108 = vector.multi_reduction <add>, %107, %cst_68 [1] : vector<8x128xf32> to vector<8xf32>
    %109 = vector.shape_cast %108 : vector<8xf32> to vector<8x1xf32>
    %cst_69 = arith.constant 1.280000e+02 : f32
    %110 = vector.broadcast %cst_69 : f32 to vector<8x1xf32>
    %111 = arith.divf %109, %110 : vector<8x1xf32>
    %112 = arith.mulf %107, %107 : vector<8x128xf32>
    %cst_70 = arith.constant dense<0.000000e+00> : vector<8xf32>
    %113 = vector.multi_reduction <add>, %112, %cst_70 [1] : vector<8x128xf32> to vector<8xf32>
    %114 = vector.shape_cast %113 : vector<8xf32> to vector<8x1xf32>
    %cst_71 = arith.constant 1.280000e+02 : f32
    %115 = vector.broadcast %cst_71 : f32 to vector<8x1xf32>
    %116 = arith.divf %114, %115 : vector<8x1xf32>
    %117 = arith.mulf %111, %111 : vector<8x1xf32>
    %118 = arith.subf %116, %117 : vector<8x1xf32>
    %cst_72 = arith.constant 0.000000e+00 : f32
    %119 = vector.broadcast %cst_72 : f32 to vector<8x1xf32>
    %120 = arith.maximumf %118, %119 : vector<8x1xf32>
    %121 = vector.broadcast %111 : vector<8x1xf32> to vector<8x128xf32>
    %122 = arith.subf %107, %121 : vector<8x128xf32>
    %cst_73 = arith.constant 9.99999974E-6 : f32
    %123 = vector.broadcast %cst_73 : f32 to vector<8x1xf32>
    %124 = arith.addf %120, %123 : vector<8x1xf32>
    %125 = math.rsqrt %124 : vector<8x1xf32>
    %126 = vector.broadcast %125 : vector<8x1xf32> to vector<8x128xf32>
    %127 = arith.mulf %122, %126 : vector<8x128xf32>
    %128 = vector.broadcast %93 : vector<1x128xf32> to vector<8x128xf32>
    %129 = arith.mulf %127, %128 : vector<8x128xf32>
    %130 = vector.broadcast %95 : vector<1x128xf32> to vector<8x128xf32>
    %131 = arith.addf %129, %130 : vector<8x128xf32>
    %132 = arith.truncf %131 : vector<8x128xf32> to vector<8x128xbf16>
    %c1_74 = arith.constant 1 : index
    %c0_75 = arith.constant 0 : index
    %c0_76 = arith.constant 0 : index
    %133 = vector.load %arg5[%c1_74, %c0_75, %c0_76] : memref<2x128x2048xbf16, #tpu.memory_space<vmem>>, vector<1x128x2048xbf16>
    %134 = vector.shape_cast %133 : vector<1x128x2048xbf16> to vector<128x2048xbf16>
    %cst_77 = arith.constant dense<0.000000e+00> : vector<8x2048xf32>
    %135 = tpu.matmul %132, %134, %cst_77 {dimension_numbers = #tpu.dot_dimension_numbers<[1], [0], [0], [1], [0, 0, 1, 1], [], []>} : vector<8x128xbf16>, vector<128x2048xbf16>, vector<8x2048xf32> -> vector<8x2048xf32>
    %136 = arith.truncf %135 : vector<8x2048xf32> to vector<8x2048xbf16>
    %c1_78 = arith.constant 1 : index
    %c0_79 = arith.constant 0 : index
    %c0_80 = arith.constant 0 : index
    %137 = vector.load %arg6[%c1_78, %c0_79, %c0_80] : memref<2x1x2048xf32, #tpu.memory_space<vmem>>, vector<1x1x2048xf32>
    %138 = vector.shape_cast %137 : vector<1x1x2048xf32> to vector<1x2048xf32>
    %139 = arith.truncf %138 : vector<1x2048xf32> to vector<1x2048xbf16>
    %140 = vector.broadcast %139 : vector<1x2048xbf16> to vector<8x2048xbf16>
    %141 = arith.addf %136, %140 : vector<8x2048xbf16>
    %cst_81 = arith.constant 0.000000e+00 : bf16
    %142 = vector.broadcast %cst_81 : bf16 to vector<8x2048xbf16>
    %143 = arith.maximumf %141, %142 : vector<8x2048xbf16>
    %c1_82 = arith.constant 1 : index
    %c0_83 = arith.constant 0 : index
    %c0_84 = arith.constant 0 : index
    %144 = vector.load %arg7[%c1_82, %c0_83, %c0_84] : memref<2x2048x128xbf16, #tpu.memory_space<vmem>>, vector<1x2048x128xbf16>
    %145 = vector.shape_cast %144 : vector<1x2048x128xbf16> to vector<2048x128xbf16>
    %cst_85 = arith.constant dense<0.000000e+00> : vector<8x128xf32>
    %146 = tpu.matmul %143, %145, %cst_85 {dimension_numbers = #tpu.dot_dimension_numbers<[1], [0], [0], [1], [0, 0, 1, 1], [], []>} : vector<8x2048xbf16>, vector<2048x128xbf16>, vector<8x128xf32> -> vector<8x128xf32>
    %147 = vector.broadcast %97 : vector<1x128xf32> to vector<8x128xf32>
    %148 = arith.addf %146, %147 : vector<8x128xf32>
    %149 = arith.addf %131, %148 : vector<8x128xf32>
    %cst_86 = arith.constant dense<0.000000e+00> : vector<8xf32>
    %150 = vector.multi_reduction <add>, %149, %cst_86 [1] : vector<8x128xf32> to vector<8xf32>
    %151 = vector.shape_cast %150 : vector<8xf32> to vector<8x1xf32>
    %cst_87 = arith.constant 1.280000e+02 : f32
    %152 = vector.broadcast %cst_87 : f32 to vector<8x1xf32>
    %153 = arith.divf %151, %152 : vector<8x1xf32>
    %154 = arith.mulf %149, %149 : vector<8x128xf32>
    %cst_88 = arith.constant dense<0.000000e+00> : vector<8xf32>
    %155 = vector.multi_reduction <add>, %154, %cst_88 [1] : vector<8x128xf32> to vector<8xf32>
    %156 = vector.shape_cast %155 : vector<8xf32> to vector<8x1xf32>
    %cst_89 = arith.constant 1.280000e+02 : f32
    %157 = vector.broadcast %cst_89 : f32 to vector<8x1xf32>
    %158 = arith.divf %156, %157 : vector<8x1xf32>
    %159 = arith.mulf %153, %153 : vector<8x1xf32>
    %160 = arith.subf %158, %159 : vector<8x1xf32>
    %cst_90 = arith.constant 0.000000e+00 : f32
    %161 = vector.broadcast %cst_90 : f32 to vector<8x1xf32>
    %162 = arith.maximumf %160, %161 : vector<8x1xf32>
    %163 = vector.broadcast %153 : vector<8x1xf32> to vector<8x128xf32>
    %164 = arith.subf %149, %163 : vector<8x128xf32>
    %cst_91 = arith.constant 9.99999974E-6 : f32
    %165 = vector.broadcast %cst_91 : f32 to vector<8x1xf32>
    %166 = arith.addf %162, %165 : vector<8x1xf32>
    %167 = math.rsqrt %166 : vector<8x1xf32>
    %168 = vector.broadcast %167 : vector<8x1xf32> to vector<8x128xf32>
    %169 = arith.mulf %164, %168 : vector<8x128xf32>
    %170 = vector.broadcast %99 : vector<1x128xf32> to vector<8x128xf32>
    %171 = arith.mulf %169, %170 : vector<8x128xf32>
    %172 = vector.broadcast %101 : vector<1x128xf32> to vector<8x128xf32>
    %173 = arith.addf %171, %172 : vector<8x128xf32>
    %174 = arith.truncf %173 : vector<8x128xf32> to vector<8x128xbf16>
    %c0_92 = arith.constant 0 : index
    %c0_93 = arith.constant 0 : index
    %175 = vector.load %arg9[%c0_92, %c0_93] : memref<128x128xbf16, #tpu.memory_space<vmem>>, vector<128x128xbf16>
    %cst_94 = arith.constant dense<0.000000e+00> : vector<8x128xf32>
    %176 = tpu.matmul %174, %175, %cst_94 {dimension_numbers = #tpu.dot_dimension_numbers<[1], [0], [0], [1], [0, 0, 1, 1], [], []>} : vector<8x128xbf16>, vector<128x128xbf16>, vector<8x128xf32> -> vector<8x128xf32>
    %c0_95 = arith.constant 0 : index
    %c0_96 = arith.constant 0 : index
    %177 = vector.load %arg10[%c0_95, %c0_96] : memref<1x128xf32, #tpu.memory_space<vmem>>, vector<1x128xf32>
    %178 = vector.broadcast %177 : vector<1x128xf32> to vector<8x128xf32>
    %179 = arith.addf %176, %178 : vector<8x128xf32>
    %c0_97 = arith.constant 0 : index
    %c0_98 = arith.constant 0 : index
    %180 = vector.load %arg11[%c0_97, %c0_98] : memref<8x128xf32, #tpu.memory_space<vmem>>, vector<8x128xf32>
    tpu.vector_store %arg11[%c0_97, %c0_98], %179 {strides = array<i32>} : memref<8x128xf32, #tpu.memory_space<vmem>>, vector<8x128xf32>,
    return
  }
  func.func @transform_0(%arg0: i32) -> (i32, i32) {
    %c0_i32 = arith.constant 0 : i32
    %c0_i32_0 = arith.constant 0 : i32
    return %arg0, %c0_i32 : i32, i32
  }
  func.func @transform_1(%arg0: i32) -> (i32, i32) {
    %c0_i32 = arith.constant 0 : i32
    %c0_i32_0 = arith.constant 0 : i32
    %c0_i32_1 = arith.constant 0 : i32
    return %c0_i32, %c0_i32_0 : i32, i32
  }
  func.func @transform_2(%arg0: i32) -> (i32, i32) {
    %c0_i32 = arith.constant 0 : i32
    %c0_i32_0 = arith.constant 0 : i32
    %c0_i32_1 = arith.constant 0 : i32
    return %c0_i32, %c0_i32_0 : i32, i32
  }
  func.func @transform_3(%arg0: i32) -> (i32, i32, i32) {
    %c0_i32 = arith.constant 0 : i32
    %c0_i32_0 = arith.constant 0 : i32
    %c0_i32_1 = arith.constant 0 : i32
    %c0_i32_2 = arith.constant 0 : i32
    return %c0_i32, %c0_i32_0, %c0_i32_1 : i32, i32, i32
  }
  func.func @transform_4(%arg0: i32) -> (i32, i32, i32) {
    %c0_i32 = arith.constant 0 : i32
    %c0_i32_0 = arith.constant 0 : i32
    %c0_i32_1 = arith.constant 0 : i32
    %c0_i32_2 = arith.constant 0 : i32
    return %c0_i32, %c0_i32_0, %c0_i32_1 : i32, i32, i32
  }
  func.func @transform_5(%arg0: i32) -> (i32, i32, i32) {
    %c0_i32 = arith.constant 0 : i32
    %c0_i32_0 = arith.constant 0 : i32
    %c0_i32_1 = arith.constant 0 : i32
    %c0_i32_2 = arith.constant 0 : i32
    return %c0_i32, %c0_i32_0, %c0_i32_1 : i32, i32, i32
  }
  func.func @transform_6(%arg0: i32) -> (i32, i32, i32) {
    %c0_i32 = arith.constant 0 : i32
    %c0_i32_0 = arith.constant 0 : i32
    %c0_i32_1 = arith.constant 0 : i32
    %c0_i32_2 = arith.constant 0 : i32
    return %c0_i32, %c0_i32_0, %c0_i32_1 : i32, i32, i32
  }
  func.func @transform_7(%arg0: i32) -> (i32, i32, i32) {
    %c0_i32 = arith.constant 0 : i32
    %c0_i32_0 = arith.constant 0 : i32
    %c0_i32_1 = arith.constant 0 : i32
    %c0_i32_2 = arith.constant 0 : i32
    return %c0_i32, %c0_i32_0, %c0_i32_1 : i32, i32, i32
  }
  func.func @transform_8(%arg0: i32) -> (i32, i32) {
    %c0_i32 = arith.constant 0 : i32
    %c0_i32_0 = arith.constant 0 : i32
    %c0_i32_1 = arith.constant 0 : i32
    return %c0_i32, %c0_i32_0 : i32, i32
  }
  func.func @transform_9(%arg0: i32) -> (i32, i32) {
    %c0_i32 = arith.constant 0 : i32
    %c0_i32_0 = arith.constant 0 : i32
    %c0_i32_1 = arith.constant 0 : i32
    return %c0_i32, %c0_i32_0 : i32, i32
  }
  func.func @transform_10(%arg0: i32) -> (i32, i32) {
    %c0_i32 = arith.constant 0 : i32
    %c0_i32_0 = arith.constant 0 : i32
    return %arg0, %c0_i32 : i32, i32
  }
}

</mosaic_0001>

<llo_original>
// kernel: tpu_custom_call.1
$region0: #{tpu_custom_call.1}
  #allocation0 [shape = 'u32[]', space=smem, size = 0x4, offset = 0x4, fixed_abs, tag = 'smem constant byte address 0x4 - core index']
  #allocation1 [shape = 'u32[144,128]{1,0:T(1,128)}', space=vmem, size = 0x12000, scoped, tag = 'internal scratch']
  %s0 = inlined_call_operand.hbm [shape: bf16[8,16], index: 0, kind: input, shape index: {}]
  %s1 = inlined_call_operand.hbm [shape: bf16[16,128], index: 1, kind: input, shape index: {}]
  %s2 = inlined_call_operand.hbm [shape: f32[1,128], index: 2, kind: input, shape index: {}]
  %s3 = inlined_call_operand.hbm [shape: bf16[2,128,128], index: 3, kind: input, shape index: {}]
  %s4 = inlined_call_operand.hbm [shape: bf16[2,128,2048], index: 4, kind: input, shape index: {}]
  %s5 = inlined_call_operand.hbm [shape: f32[2,1,2048], index: 5, kind: input, shape index: {}]
  %s6 = inlined_call_operand.hbm [shape: bf16[2,2048,128], index: 6, kind: input, shape index: {}]
  %s7 = inlined_call_operand.hbm [shape: f32[2,8,128], index: 7, kind: input, shape index: {}]
  %s8 = inlined_call_operand.hbm [shape: bf16[128,128], index: 8, kind: input, shape index: {}]
  %s9 = inlined_call_operand.hbm [shape: f32[1,128], index: 9, kind: input, shape index: {}]
  %s10 = inlined_call_operand.hbm [shape: f32[8,128], index: 10, kind: output, shape index: {}]
  %s11 = sld [smem:[#allocation0]]
  $region90: #{tpu_custom_call.1} parent=0
    _
  %s13 = ssub.s32 1, %s11
  %s14 = scalar_select 0, %s13, %s11
  $region1: #{tpu_custom_call.1} parent=0
    #allocation2 [shape = 'u8[2048]{0}', space=vmem, size = 0x800, scoped, tag = 'input window, operand 0, single buffered']
    #allocation3 [shape = 's32[1]{0}', space=sflag, size = 0x4, scoped, tag = 'scoped memory for tpu_custom_call.1']
    #allocation4 [shape = 's32[1]{0}', space=sflag, size = 0x4, scoped, tag = 'scoped memory for tpu_custom_call.1']
    #allocation5 [shape = 'u8[4096]{0}', space=vmem, size = 0x1000, scoped, tag = 'input window, operand 1, single buffered']
    #allocation6 [shape = 's32[1]{0}', space=sflag, size = 0x4, scoped, tag = 'scoped memory for tpu_custom_call.1']
    #allocation7 [shape = 'u8[512]{0}', space=vmem, size = 0x400, scoped, tag = 'input window, operand 2, single buffered']
    #allocation8 [shape = 'u8[65536]{0}', space=vmem, size = 0x10000, scoped, tag = 'input window, operand 3, single buffered']
    #allocation9 [shape = 's32[1]{0}', space=sflag, size = 0x4, scoped, tag = 'scoped memory for tpu_custom_call.1']
    #allocation10 [shape = 'u8[1048576]{0}', space=vmem, size = 0x100000, scoped, tag = 'input window, operand 4, single buffered']
    #allocation11 [shape = 'u8[16384]{0}', space=vmem, size = 0x4000, scoped, tag = 'input window, operand 5, single buffered']
    #allocation12 [shape = 's32[1]{0}', space=sflag, size = 0x4, scoped, tag = 'scoped memory for tpu_custom_call.1']
    #allocation13 [shape = 'u8[1048576]{0}', space=vmem, size = 0x100000, scoped, tag = 'input window, operand 6, single buffered']
    #allocation14 [shape = 'u8[8192]{0}', space=vmem, size = 0x2000, scoped, tag = 'input window, operand 7, single buffered']
    #allocation15 [shape = 's32[1]{0}', space=sflag, size = 0x4, scoped, tag = 'scoped memory for tpu_custom_call.1']
    #allocation16 [shape = 'u8[32768]{0}', space=vmem, size = 0x8000, scoped, tag = 'input window, operand 8, single buffered']
    #allocation17 [shape = 'u8[512]{0}', space=vmem, size = 0x400, scoped, tag = 'input window, operand 9, single buffered']
    #allocation18 [shape = 's32[1]{0}', space=sflag, size = 0x4, scoped, tag = 'scoped memory for tpu_custom_call.1']
    #allocation19 [shape = 'u8[4096]{0}', space=vmem, size = 0x1000, scoped, tag = 'output window, operand 0, single buffered']
    %15 = vsyncpa [#allocation3], 0
    %16 = vsyncpa [#allocation6], 0
    %17 = vsyncpa [#allocation9], 0
    %18 = vsyncpa [#allocation12], 0
    %19 = vsyncpa [#allocation15], 0
    %20 = vsyncpa [#allocation18], 0
    %21 = vsyncpa [#allocation4], 0
    // Predicated region
    $region2: #{tpu_custom_call.1} parent=1 // pred_check
      _
    $region3: #{tpu_custom_call.1} parent=1 // pred_check_branch
      %23 = sbr.rel (0) target = $region5
    $region4: #{tpu_custom_call.1} parent=1 // pred_region
      %s25 = ssub.s32 64, 64
      %26 = vsyncadd [#allocation3], %s25
      %s28 = sshll.u32 [#allocation2], 4
      %s29 = int_to_ptr.vmem [resolvable:$true] %s28
      %31 = dma.hbm_to_vmem [thread:$0]  %s0, 64, %s29, [#allocation3]
    $region5: #{tpu_custom_call.1} parent=1 // pred_fallthru
      _
    // Predicated region
    $region6: #{tpu_custom_call.1} parent=1 // pred_check
      _
    $region7: #{tpu_custom_call.1} parent=1 // pred_check_branch
      %33 = sbr.rel (0) target = $region9
    $region8: #{tpu_custom_call.1} parent=1 // pred_region
      %s35 = ssub.s32 128, 128
      %36 = vsyncadd [#allocation6], %s35
      %s37 = sshll.u32 [#allocation5], 4
      %s38 = int_to_ptr.vmem [resolvable:$true] %s37
      %43 = dma.hbm_to_vmem [thread:$0]  %s1, 128, %s38, [#allocation6], 64, 64, 4
    $region9: #{tpu_custom_call.1} parent=1 // pred_fallthru
      _
    // Predicated region
    $region10: #{tpu_custom_call.1} parent=1 // pred_check
      _
    $region11: #{tpu_custom_call.1} parent=1 // pred_check_branch
      %45 = sbr.rel (0) target = $region13
    $region12: #{tpu_custom_call.1} parent=1 // pred_region
      %s47 = ssub.s32 16, 16
      %48 = vsyncadd [#allocation6], %s47
      %s50 = sshll.u32 [#allocation7], 4
      %s51 = int_to_ptr.vmem [resolvable:$true] %s50
      %53 = dma.hbm_to_vmem [thread:$0]  %s2, 16, %s51, [#allocation6]
    $region13: #{tpu_custom_call.1} parent=1 // pred_fallthru
      _
    // Predicated region
    $region14: #{tpu_custom_call.1} parent=1 // pred_check
      _
    $region15: #{tpu_custom_call.1} parent=1 // pred_check_branch
      %55 = sbr.rel (0) target = $region17
    $region16: #{tpu_custom_call.1} parent=1 // pred_region
      %s57 = ssub.s32 2048, 2048
      %58 = vsyncadd [#allocation9], %s57
      %s59 = sshll.u32 [#allocation8], 4
      %s60 = int_to_ptr.vmem [resolvable:$true] %s59
      %65 = dma.hbm_to_vmem [thread:$0]  %s3, 2048, %s60, [#allocation9], 64, 64, 4
    $region17: #{tpu_custom_call.1} parent=1 // pred_fallthru
      _
    // Predicated region
    $region18: #{tpu_custom_call.1} parent=1 // pred_check
      _
    $region19: #{tpu_custom_call.1} parent=1 // pred_check_branch
      %67 = sbr.rel (0) target = $region21
    $region20: #{tpu_custom_call.1} parent=1 // pred_region
      %s69 = ssub.s32 32768, 32768
      %70 = vsyncadd [#allocation9], %s69
      %s71 = sshll.u32 [#allocation10], 4
      %s72 = int_to_ptr.vmem [resolvable:$true] %s71
      %77 = dma.hbm_to_vmem [thread:$0]  %s4, 32768, %s72, [#allocation9], 1024, 1024, 64
    $region21: #{tpu_custom_call.1} parent=1 // pred_fallthru
      _
    // Predicated region
    $region22: #{tpu_custom_call.1} parent=1 // pred_check
      _
    $region23: #{tpu_custom_call.1} parent=1 // pred_check_branch
      %79 = sbr.rel (0) target = $region25
    $region24: #{tpu_custom_call.1} parent=1 // pred_region
      %s81 = ssub.s32 512, 512
      %82 = vsyncadd [#allocation12], %s81
      %s83 = sshll.u32 [#allocation11], 4
      %s84 = int_to_ptr.vmem [resolvable:$true] %s83
      %89 = dma.hbm_to_vmem [thread:$0]  %s5, 512, %s84, [#allocation12], 256, 256, 16
    $region25: #{tpu_custom_call.1} parent=1 // pred_fallthru
      _
    // Predicated region
    $region26: #{tpu_custom_call.1} parent=1 // pred_check
      _
    $region27: #{tpu_custom_call.1} parent=1 // pred_check_branch
      %91 = sbr.rel (0) target = $region29
    $region28: #{tpu_custom_call.1} parent=1 // pred_region
      %s93 = ssub.s32 32768, 32768
      %94 = vsyncadd [#allocation12], %s93
      %s95 = sshll.u32 [#allocation13], 4
      %s96 = int_to_ptr.vmem [resolvable:$true] %s95
      %101 = dma.hbm_to_vmem [thread:$0]  %s6, 32768, %s96, [#allocation12], 64, 64, 4
    $region29: #{tpu_custom_call.1} parent=1 // pred_fallthru
      _
    // Predicated region
    $region30: #{tpu_custom_call.1} parent=1 // pred_check
      _
    $region31: #{tpu_custom_call.1} parent=1 // pred_check_branch
      %103 = sbr.rel (0) target = $region33
    $region32: #{tpu_custom_call.1} parent=1 // pred_region
      %s105 = ssub.s32 256, 256
      %106 = vsyncadd [#allocation15], %s105
      %s107 = sshll.u32 [#allocation14], 4
      %s108 = int_to_ptr.vmem [resolvable:$true] %s107
      %113 = dma.hbm_to_vmem [thread:$0]  %s7, 256, %s108, [#allocation15], 128, 128, 8
    $region33: #{tpu_custom_call.1} parent=1 // pred_fallthru
      _
    // Predicated region
    $region34: #{tpu_custom_call.1} parent=1 // pred_check
      _
    $region35: #{tpu_custom_call.1} parent=1 // pred_check_branch
      %115 = sbr.rel (0) target = $region37
    $region36: #{tpu_custom_call.1} parent=1 // pred_region
      %s117 = ssub.s32 1024, 1024
      %118 = vsyncadd [#allocation15], %s117
      %s119 = sshll.u32 [#allocation16], 4
      %s120 = int_to_ptr.vmem [resolvable:$true] %s119
      %125 = dma.hbm_to_vmem [thread:$0]  %s8, 1024, %s120, [#allocation15], 64, 64, 4
    $region37: #{tpu_custom_call.1} parent=1 // pred_fallthru
      _
    // Predicated region
    $region38: #{tpu_custom_call.1} parent=1 // pred_check
      _
    $region39: #{tpu_custom_call.1} parent=1 // pred_check_branch
      %127 = sbr.rel (0) target = $region41
    $region40: #{tpu_custom_call.1} parent=1 // pred_region
      %s129 = ssub.s32 16, 16
      %130 = vsyncadd [#allocation18], %s129
      %s132 = sshll.u32 [#allocation17], 4
      %s133 = int_to_ptr.vmem [resolvable:$true] %s132
      %135 = dma.hbm_to_vmem [thread:$0]  %s9, 16, %s133, [#allocation18]
    $region41: #{tpu_custom_call.1} parent=1 // pred_fallthru
      _
    // Predicated region
    $region42: #{tpu_custom_call.1} parent=1 // pred_check
      _
    $region43: #{tpu_custom_call.1} parent=1 // pred_check_branch
      %137 = sbr.rel (0) target = $region45
    $region44: #{tpu_custom_call.1} parent=1 // pred_region
      %138 = dma.done [#allocation3], 64
    $region45: #{tpu_custom_call.1} parent=1 // pred_fallthru
      _
    // Predicated region
    $region46: #{tpu_custom_call.1} parent=1 // pred_check
      _
    $region47: #{tpu_custom_call.1} parent=1 // pred_check_branch
      %140 = sbr.rel (0) target = $region49
    $region48: #{tpu_custom_call.1} parent=1 // pred_region
      %141 = dma.done [#allocation6], 128
    $region49: #{tpu_custom_call.1} parent=1 // pred_fallthru
      _
    // Predicated region
    $region50: #{tpu_custom_call.1} parent=1 // pred_check
      _
    $region51: #{tpu_custom_call.1} parent=1 // pred_check_branch
      %143 = sbr.rel (0) target = $region53
    $region52: #{tpu_custom_call.1} parent=1 // pred_region
      %144 = dma.done [#allocation6], 16
    $region53: #{tpu_custom_call.1} parent=1 // pred_fallthru
      _
    // Predicated region
    $region54: #{tpu_custom_call.1} parent=1 // pred_check
      _
    $region55: #{tpu_custom_call.1} parent=1 // pred_check_branch
      %146 = sbr.rel (0) target = $region57
    $region56: #{tpu_custom_call.1} parent=1 // pred_region
      %147 = dma.done [#allocation9], 2048
    $region57: #{tpu_custom_call.1} parent=1 // pred_fallthru
      _
    // Predicated region
    $region58: #{tpu_custom_call.1} parent=1 // pred_check
      _
    $region59: #{tpu_custom_call.1} parent=1 // pred_check_branch
      %149 = sbr.rel (0) target = $region61
    $region60: #{tpu_custom_call.1} parent=1 // pred_region
      %150 = dma.done [#allocation9], 32768
    $region61: #{tpu_custom_call.1} parent=1 // pred_fallthru
      _
    // Predicated region
    $region62: #{tpu_custom_call.1} parent=1 // pred_check
      _
    $region63: #{tpu_custom_call.1} parent=1 // pred_check_branch
      %152 = sbr.rel (0) target = $region65
    $region64: #{tpu_custom_call.1} parent=1 // pred_region
      %153 = dma.done [#allocation12], 512
    $region65: #{tpu_custom_call.1} parent=1 // pred_fallthru
      _
    // Predicated region
    $region66: #{tpu_custom_call.1} parent=1 // pred_check
      _
    $region67: #{tpu_custom_call.1} parent=1 // pred_check_branch
      %155 = sbr.rel (0) target = $region69
    $region68: #{tpu_custom_call.1} parent=1 // pred_region
      %156 = dma.done [#allocation12], 32768
    $region69: #{tpu_custom_call.1} parent=1 // pred_fallthru
      _
    // Predicated region
    $region70: #{tpu_custom_call.1} parent=1 // pred_check
      _
    $region71: #{tpu_custom_call.1} parent=1 // pred_check_branch
      %158 = sbr.rel (0) target = $region73
    $region72: #{tpu_custom_call.1} parent=1 // pred_region
      %159 = dma.done [#allocation15], 256
    $region73: #{tpu_custom_call.1} parent=1 // pred_fallthru
      _
    // Predicated region
    $region74: #{tpu_custom_call.1} parent=1 // pred_check
      _
    $region75: #{tpu_custom_call.1} parent=1 // pred_check_branch
      %161 = sbr.rel (0) target = $region77
    $region76: #{tpu_custom_call.1} parent=1 // pred_region
      %162 = dma.done [#allocation15], 1024
    $region77: #{tpu_custom_call.1} parent=1 // pred_fallthru
      _
    // Predicated region
    $region78: #{tpu_custom_call.1} parent=1 // pred_check
      _
    $region79: #{tpu_custom_call.1} parent=1 // pred_check_branch
      %164 = sbr.rel (0) target = $region81
    $region80: #{tpu_custom_call.1} parent=1 // pred_region
      %165 = dma.done [#allocation18], 16
    $region81: #{tpu_custom_call.1} parent=1 // pred_fallthru
      _
    %v167 = vld [vmem:[#allocation2] sm:$0xf]
    %v168 = vld [vmem:[#allocation5] sm:$0xf]
    %v169 = vld [vmem:[#allocation5 + $0x4] sm:$0xf]
    %v170 = vld [vmem:[#allocation7] sm:$0x1]
    %v172 = vlaneseq
    %v173 = vshrl.u32 %v172, 7
    %v174 = vsub.s32 0, %v173
    %v175 = vrot.slane %v170, %v174
    %v179 = vunpack.c.l.b16 %v168
    %v180 = vunpack.c.l.b16 %v169
    %v181 = vpack.c.b16 %v180, %v179
    %vm183 = vcmask 130048
    %v185 = vsel %vm183, %v167, 0
    %187 = vmatprep.subr.bf16.mxu0 0
    %188 = vmatpush1.bf16.msra.mxu0 %v181
    %189 = vmatprep.subr.bf16.mxu0 0
    %190 = vmatpush1.bf16.msra.mxu0 0
    %191 = vmatprep.subr.bf16.mxu0 0
    %192 = vmatpush1.bf16.msra.mxu0 0
    %193 = vmatprep.subr.bf16.mxu0 0
    %194 = vmatpush1.bf16.msra.mxu0 0
    %195 = vmatprep.subr.bf16.mxu0 0
    %196 = vmatpush1.bf16.msra.mxu0 0
    %197 = vmatprep.subr.bf16.mxu0 0
    %198 = vmatpush1.bf16.msra.mxu0 0
    %199 = vmatprep.subr.bf16.mxu0 0
    %200 = vmatpush1.bf16.msra.mxu0 0
    %201 = vmatprep.subr.bf16.mxu0 0
    %202 = vmatpush1.bf16.msra.mxu0 0
    %203 = vmatprep.subr.bf16.mxu0 0
    %204 = vmatpush1.bf16.msra.mxu0 0
    %205 = vmatprep.subr.bf16.mxu0 0
    %206 = vmatpush1.bf16.msra.mxu0 0
    %207 = vmatprep.subr.bf16.mxu0 0
    %208 = vmatpush1.bf16.msra.mxu0 0
    %209 = vmatprep.subr.bf16.mxu0 0
    %210 = vmatpush1.bf16.msra.mxu0 0
    %211 = vmatprep.subr.bf16.mxu0 0
    %212 = vmatpush1.bf16.msra.mxu0 0
    %213 = vmatprep.subr.bf16.mxu0 0
    %214 = vmatpush1.bf16.msra.mxu0 0
    %215 = vmatprep.subr.bf16.mxu0 0
    %216 = vmatpush1.bf16.msra.mxu0 0
    %217 = vmatprep.subr.bf16.mxu0 0
    %218 = vmatpush1.bf16.msra.mxu0 0
    %219 = vmatprep.mubr.bf16.mxu0 0
    %220 = vmatmul.mubr.bf16.gmra.mrb[0].mxu0 %v185
    %v221 = vpop.f32.mrb[0].mxu0
    %v222 = vadd.f32 %v175, %v221
    %v223 = vpop.f32.mrb[0].mxu0
    %v224 = vpop.f32.mrb[0].mxu0
    %v225 = vpop.f32.mrb[0].mxu0
    %226 = vdwg.mxu0
    %v227 = vld [vmem:[#allocation14] sm:$0x1]
    %v228 = vld [vmem:[#allocation14 + $0x1] sm:$0x1]
    %v229 = vld [vmem:[#allocation14 + $0x2] sm:$0x1]
    %v230 = vld [vmem:[#allocation14 + $0x3] sm:$0x1]
    %v231 = vld [vmem:[#allocation14 + $0x4] sm:$0x1]
    %v232 = vld [vmem:[#allocation14 + $0x5] sm:$0x1]
    %v233 = vpack.c.bf16 %v222, %v222
    %v234 = vld [vmem:[#allocation8] sm:$0xf]
    %v235 = vld [vmem:[#allocation8 + $0x4] sm:$0xf]
    %v236 = vld [vmem:[#allocation8 + $0x8] sm:$0xf]
    %v237 = vld [vmem:[#allocation8 + $0xc] sm:$0xf]
    %v238 = vld [vmem:[#allocation8 + $0x10] sm:$0xf]
    %v239 = vld [vmem:[#allocation8 + $0x14] sm:$0xf]
    %v240 = vld [vmem:[#allocation8 + $0x18] sm:$0xf]
    %v241 = vld [vmem:[#allocation8 + $0x1c] sm:$0xf]
    %v242 = vld [vmem:[#allocation8 + $0x20] sm:$0xf]
    %v243 = vld [vmem:[#allocation8 + $0x24] sm:$0xf]
    %v244 = vld [vmem:[#allocation8 + $0x28] sm:$0xf]
    %v245 = vld [vmem:[#allocation8 + $0x2c] sm:$0xf]
    %v246 = vld [vmem:[#allocation8 + $0x30] sm:$0xf]
    %v247 = vld [vmem:[#allocation8 + $0x34] sm:$0xf]
    %v248 = vld [vmem:[#allocation8 + $0x38] sm:$0xf]
    %v249 = vld [vmem:[#allocation8 + $0x3c] sm:$0xf]
    %v250 = vlaneseq
    %v251 = vshrl.u32 %v250, 7
    %v252 = vsub.s32 0, %v251
    %v253 = vrot.slane %v227, %v252
    %v270 = vunpack.c.l.b16 %v234
    %v271 = vunpack.c.l.b16 %v235
    %v272 = vunpack.c.l.b16 %v236
    %v273 = vunpack.c.l.b16 %v237
    %v274 = vunpack.c.l.b16 %v238
    %v275 = vunpack.c.l.b16 %v239
    %v276 = vunpack.c.l.b16 %v240
    %v277 = vunpack.c.l.b16 %v241
    %v278 = vunpack.c.l.b16 %v242
    %v279 = vunpack.c.l.b16 %v243
    %v280 = vunpack.c.l.b16 %v244
    %v281 = vunpack.c.l.b16 %v245
    %v282 = vunpack.c.l.b16 %v246
    %v283 = vunpack.c.l.b16 %v247
    %v284 = vunpack.c.l.b16 %v248
    %v285 = vunpack.c.l.b16 %v249
    %v286 = vpack.c.b16 %v271, %v270
    %v287 = vpack.c.b16 %v273, %v272
    %v288 = vpack.c.b16 %v275, %v274
    %v289 = vpack.c.b16 %v277, %v276
    %v290 = vpack.c.b16 %v279, %v278
    %v291 = vpack.c.b16 %v281, %v280
    %v292 = vpack.c.b16 %v283, %v282
    %v293 = vpack.c.b16 %v285, %v284
    %302 = vmatprep.subr.bf16.mxu0 0
    %303 = vmatpush1.bf16.msra.mxu0 %v286
    %304 = vmatprep.subr.bf16.mxu0 0
    %305 = vmatpush1.bf16.msra.mxu0 %v287
    %306 = vmatprep.subr.bf16.mxu0 0
    %307 = vmatpush1.bf16.msra.mxu0 %v288
    %308 = vmatprep.subr.bf16.mxu0 0
    %309 = vmatpush1.bf16.msra.mxu0 %v289
    %310 = vmatprep.subr.bf16.mxu0 0
    %311 = vmatpush1.bf16.msra.mxu0 %v290
    %312 = vmatprep.subr.bf16.mxu0 0
    %313 = vmatpush1.bf16.msra.mxu0 %v291
    %314 = vmatprep.subr.bf16.mxu0 0
    %315 = vmatpush1.bf16.msra.mxu0 %v292
    %316 = vmatprep.subr.bf16.mxu0 0
    %317 = vmatpush1.bf16.msra.mxu0 %v293
    %318 = vmatprep.subr.bf16.mxu0 0
    %319 = vmatpush1.bf16.msra.mxu0 0
    %320 = vmatprep.subr.bf16.mxu0 0
    %321 = vmatpush1.bf16.msra.mxu0 0
    %322 = vmatprep.subr.bf16.mxu0 0
    %323 = vmatpush1.bf16.msra.mxu0 0
    %324 = vmatprep.subr.bf16.mxu0 0
    %325 = vmatpush1.bf16.msra.mxu0 0
    %326 = vmatprep.subr.bf16.mxu0 0
    %327 = vmatpush1.bf16.msra.mxu0 0
    %328 = vmatprep.subr.bf16.mxu0 0
    %329 = vmatpush1.bf16.msra.mxu0 0
    %330 = vmatprep.subr.bf16.mxu0 0
    %331 = vmatpush1.bf16.msra.mxu0 0
    %332 = vmatprep.subr.bf16.mxu0 0
    %333 = vmatpush1.bf16.msra.mxu0 0
    %334 = vmatprep.mubr.bf16.mxu0 0
    %335 = vmatmul.mubr.bf16.gmra.mrb[0].mxu0 %v233
    %v336 = vpop.f32.mrb[0].mxu0
    %v337 = vadd.f32 %v253, %v336
    %v338 = vpop.f32.mrb[0].mxu0
    %v339 = vpop.f32.mrb[0].mxu0
    %v340 = vpop.f32.mrb[0].mxu0
    %341 = vdwg.mxu0
    %342 = vadd.xlane.f32.xlu0 %v337
    %v343 = vpop.xlane.xlu0 %342
    %v344 = vrcp.pop 128.0
    %v345 = vmul.f32 %v343, %v344
    %v346 = vmul.f32 %v337, %v337
    %347 = vadd.xlane.f32.xlu0 %v346
    %v348 = vpop.xlane.xlu0 %347
    %v349 = vmul.f32 %v348, %v344
    %v350 = vmul.f32 %v345, %v345
    %v351 = vsub.f32 %v349, %v350
    %v352 = vmax.f32 %v351, 0.0
    %v353 = vsub.f32 %v337, %v345
    %v354 = vadd.f32 %v352, 1e-05
    %v355 = vrsqrt.pop %v354
    %v356 = vmul.f32 %v353, %v355
    %v357 = vlaneseq
    %v358 = vshrl.u32 %v357, 7
    %v359 = vsub.s32 0, %v358
    %v360 = vrot.slane %v228, %v359
    %v361 = vmul.f32 %v356, %v360
    %v362 = vlaneseq
    %v363 = vshrl.u32 %v362, 7
    %v364 = vsub.s32 0, %v363
    %v365 = vrot.slane %v229, %v364
    %v366 = vadd.f32 %v361, %v365
    %v367 = vpack.c.bf16 %v366, %v366
    %v368 = vld [vmem:[#allocation10] sm:$0xff]
    %v369 = vld [vmem:[#allocation10 + $0x8] sm:$0xff]
    %v370 = vld [vmem:[#allocation10 + $0x10] sm:$0xff]
    %v371 = vld [vmem:[#allocation10 + $0x18] sm:$0xff]
    %v372 = vld [vmem:[#allocation10 + $0x20] sm:$0xff]
    %v373 = vld [vmem:[#allocation10 + $0x28] sm:$0xff]
    %v374 = vld [vmem:[#allocation10 + $0x30] sm:$0xff]
    %v375 = vld [vmem:[#allocation10 + $0x38] sm:$0xff]
    %v376 = vld [vmem:[#allocation10 + $0x40] sm:$0xff]
    %v377 = vld [vmem:[#allocation10 + $0x48] sm:$0xff]
    %v378 = vld [vmem:[#allocation10 + $0x50] sm:$0xff]
    %v379 = vld [vmem:[#allocation10 + $0x58] sm:$0xff]
    %v380 = vld [vmem:[#allocation10 + $0x60] sm:$0xff]
    %v381 = vld [vmem:[#allocation10 + $0x68] sm:$0xff]
    %v382 = vld [vmem:[#allocation10 + $0x70] sm:$0xff]
    %v383 = vld [vmem:[#allocation10 + $0x78] sm:$0xff]
    %v384 = vld [vmem:[#allocation10 + $0x80] sm:$0xff]
    %v385 = vld [vmem:[#allocation10 + $0x88] sm:$0xff]
    %v386 = vld [vmem:[#allocation10 + $0x90] sm:$0xff]
    %v387 = vld [vmem:[#allocation10 + $0x98] sm:$0xff]
    %v388 = vld [vmem:[#allocation10 + $0xa0] sm:$0xff]
    %v389 = vld [vmem:[#allocation10 + $0xa8] sm:$0xff]
    %v390 = vld [vmem:[#allocation10 + $0xb0] sm:$0xff]
    %v391 = vld [vmem:[#allocation10 + $0xb8] sm:$0xff]
    %v392 = vld [vmem:[#allocation10 + $0xc0] sm:$0xff]
    %v393 = vld [vmem:[#allocation10 + $0xc8] sm:$0xff]
    %v394 = vld [vmem:[#allocation10 + $0xd0] sm:$0xff]
    %v395 = vld [vmem:[#allocation10 + $0xd8] sm:$0xff]
    %v396 = vld [vmem:[#allocation10 + $0xe0] sm:$0xff]
    %v397 = vld [vmem:[#allocation10 + $0xe8] sm:$0xff]
    %v398 = vld [vmem:[#allocation10 + $0xf0] sm:$0xff]
    %v399 = vld [vmem:[#allocation10 + $0xf8] sm:$0xff]
    %v400 = vld [vmem:[#allocation10 + $0x100] sm:$0xff]
    %v401 = vld [vmem:[#allocation10 + $0x108] sm:$0xff]
    %v402 = vld [vmem:[#allocation10 + $0x110] sm:$0xff]
    %v403 = vld [vmem:[#allocation10 + $0x118] sm:$0xff]
    %v404 = vld [vmem:[#allocation10 + $0x120] sm:$0xff]
    %v405 = vld [vmem:[#allocation10 + $0x128] sm:$0xff]
    %v406 = vld [vmem:[#allocation10 + $0x130] sm:$0xff]
    %v407 = vld [vmem:[#allocation10 + $0x138] sm:$0xff]
    %v408 = vld [vmem:[#allocation10 + $0x140] sm:$0xff]
    %v409 = vld [vmem:[#allocation10 + $0x148] sm:$0xff]
    %v410 = vld [vmem:[#allocation10 + $0x150] sm:$0xff]
    %v411 = vld [vmem:[#allocation10 + $0x158] sm:$0xff]
    %v412 = vld [vmem:[#allocation10 + $0x160] sm:$0xff]
    %v413 = vld [vmem:[#allocation10 + $0x168] sm:$0xff]
    %v414 = vld [vmem:[#allocation10 + $0x170] sm:$0xff]
    %v415 = vld [vmem:[#allocation10 + $0x178] sm:$0xff]
    %v416 = vld [vmem:[#allocation10 + $0x180] sm:$0xff]
    %v417 = vld [vmem:[#allocation10 + $0x188] sm:$0xff]
    %v418 = vld [vmem:[#allocation10 + $0x190] sm:$0xff]
    %v419 = vld [vmem:[#allocation10 + $0x198] sm:$0xff]
    %v420 = vld [vmem:[#allocation10 + $0x1a0] sm:$0xff]
    %v421 = vld [vmem:[#allocation10 + $0x1a8] sm:$0xff]
    %v422 = vld [vmem:[#allocation10 + $0x1b0] sm:$0xff]
    %v423 = vld [vmem:[#allocation10 + $0x1b8] sm:$0xff]
    %v424 = vld [vmem:[#allocation10 + $0x1c0] sm:$0xff]
    %v425 = vld [vmem:[#allocation10 + $0x1c8] sm:$0xff]
    %v426 = vld [vmem:[#allocation10 + $0x1d0] sm:$0xff]
    %v427 = vld [vmem:[#allocation10 + $0x1d8] sm:$0xff]
    %v428 = vld [vmem:[#allocation10 + $0x1e0] sm:$0xff]
    %v429 = vld [vmem:[#allocation10 + $0x1e8] sm:$0xff]
    %v430 = vld [vmem:[#allocation10 + $0x1f0] sm:$0xff]
    %v431 = vld [vmem:[#allocation10 + $0x1f8] sm:$0xff]
    %v432 = vld [vmem:[#allocation10 + $0x200] sm:$0xff]
    %v433 = vld [vmem:[#allocation10 + $0x208] sm:$0xff]
    %v434 = vld [vmem:[#allocation10 + $0x210] sm:$0xff]
    %v435 = vld [vmem:[#allocation10 + $0x218] sm:$0xff]
    %v436 = vld [vmem:[#allocation10 + $0x220] sm:$0xff]
    %v437 = vld [vmem:[#allocation10 + $0x228] sm:$0xff]
    %v438 = vld [vmem:[#allocation10 + $0x230] sm:$0xff]
    %v439 = vld [vmem:[#allocation10 + $0x238] sm:$0xff]
    %v440 = vld [vmem:[#allocation10 + $0x240] sm:$0xff]
    %v441 = vld [vmem:[#allocation10 + $0x248] sm:$0xff]
    %v442 = vld [vmem:[#allocation10 + $0x250] sm:$0xff]
    %v443 = vld [vmem:[#allocation10 + $0x258] sm:$0xff]
    %v444 = vld [vmem:[#allocation10 + $0x260] sm:$0xff]
    %v445 = vld [vmem:[#allocation10 + $0x268] sm:$0xff]
    %v446 = vld [vmem:[#allocation10 + $0x270] sm:$0xff]
    %v447 = vld [vmem:[#allocation10 + $0x278] sm:$0xff]
    %v448 = vld [vmem:[#allocation10 + $0x280] sm:$0xff]
    %v449 = vld [vmem:[#allocation10 + $0x288] sm:$0xff]
    %v450 = vld [vmem:[#allocation10 + $0x290] sm:$0xff]
    %v451 = vld [vmem:[#allocation10 + $0x298] sm:$0xff]
    %v452 = vld [vmem:[#allocation10 + $0x2a0] sm:$0xff]
    %v453 = vld [vmem:[#allocation10 + $0x2a8] sm:$0xff]
    %v454 = vld [vmem:[#allocation10 + $0x2b0] sm:$0xff]
    %v455 = vld [vmem:[#allocation10 + $0x2b8] sm:$0xff]
    %v456 = vld [vmem:[#allocation10 + $0x2c0] sm:$0xff]
    %v457 = vld [vmem:[#allocation10 + $0x2c8] sm:$0xff]
    %v458 = vld [vmem:[#allocation10 + $0x2d0] sm:$0xff]
    %v459 = vld [vmem:[#allocation10 + $0x2d8] sm:$0xff]
    %v460 = vld [vmem:[#allocation10 + $0x2e0] sm:$0xff]
    %v461 = vld [vmem:[#allocation10 + $0x2e8] sm:$0xff]
    %v462 = vld [vmem:[#allocation10 + $0x2f0] sm:$0xff]
    %v463 = vld [vmem:[#allocation10 + $0x2f8] sm:$0xff]
    %v464 = vld [vmem:[#allocation10 + $0x300] sm:$0xff]
    %v465 = vld [vmem:[#allocation10 + $0x308] sm:$0xff]
    %v466 = vld [vmem:[#allocation10 + $0x310] sm:$0xff]
    %v467 = vld [vmem:[#allocation10 + $0x318] sm:$0xff]
    %v468 = vld [vmem:[#allocation10 + $0x320] sm:$0xff]
    %v469 = vld [vmem:[#allocation10 + $0x328] sm:$0xff]
    %v470 = vld [vmem:[#allocation10 + $0x330] sm:$0xff]
    %v471 = vld [vmem:[#allocation10 + $0x338] sm:$0xff]
    %v472 = vld [vmem:[#allocation10 + $0x340] sm:$0xff]
    %v473 = vld [vmem:[#allocation10 + $0x348] sm:$0xff]
    %v474 = vld [vmem:[#allocation10 + $0x350] sm:$0xff]
    %v475 = vld [vmem:[#allocation10 + $0x358] sm:$0xff]
    %v476 = vld [vmem:[#allocation10 + $0x360] sm:$0xff]
    %v477 = vld [vmem:[#allocation10 + $0x368] sm:$0xff]
    %v478 = vld [vmem:[#allocation10 + $0x370] sm:$0xff]
    %v479 = vld [vmem:[#allocation10 + $0x378] sm:$0xff]
    %v480 = vld [vmem:[#allocation10 + $0x380] sm:$0xff]
    %v481 = vld [vmem:[#allocation10 + $0x388] sm:$0xff]
    %v482 = vld [vmem:[#allocation10 + $0x390] sm:$0xff]
    %v483 = vld [vmem:[#allocation10 + $0x398] sm:$0xff]
    %v484 = vld [vmem:[#allocation10 + $0x3a0] sm:$0xff]
    %v485 = vld [vmem:[#allocation10 + $0x3a8] sm:$0xff]
    %v486 = vld [vmem:[#allocation10 + $0x3b0] sm:$0xff]
    %v487 = vld [vmem:[#allocation10 + $0x3b8] sm:$0xff]
    %v488 = vld [vmem:[#allocation10 + $0x3c0] sm:$0xff]
    %v489 = vld [vmem:[#allocation10 + $0x3c8] sm:$0xff]
    %v490 = vld [vmem:[#allocation10 + $0x3d0] sm:$0xff]
    %v491 = vld [vmem:[#allocation10 + $0x3d8] sm:$0xff]
    %v492 = vld [vmem:[#allocation10 + $0x3e0] sm:$0xff]
    %v493 = vld [vmem:[#allocation10 + $0x3e8] sm:$0xff]
    %v494 = vld [vmem:[#allocation10 + $0x3f0] sm:$0xff]
    %v495 = vld [vmem:[#allocation10 + $0x3f8] sm:$0xff]
    %v624 = vunpack.c.l.b16 %v368
    %v625 = vunpack.c.h.b16 %v368
    %v626 = vunpack.c.l.b16 %v369
    %v627 = vunpack.c.h.b16 %v369
    %v628 = vunpack.c.l.b16 %v370
    %v629 = vunpack.c.h.b16 %v370
    %v630 = vunpack.c.l.b16 %v371
    %v631 = vunpack.c.h.b16 %v371
    %v632 = vunpack.c.l.b16 %v372
    %v633 = vunpack.c.h.b16 %v372
    %v634 = vunpack.c.l.b16 %v373
    %v635 = vunpack.c.h.b16 %v373
    %v636 = vunpack.c.l.b16 %v374
    %v637 = vunpack.c.h.b16 %v374
    %v638 = vunpack.c.l.b16 %v375
    %v639 = vunpack.c.h.b16 %v375
    %v640 = vunpack.c.l.b16 %v376
    %v641 = vunpack.c.h.b16 %v376
    %v642 = vunpack.c.l.b16 %v377
    %v643 = vunpack.c.h.b16 %v377
    %v644 = vunpack.c.l.b16 %v378
    %v645 = vunpack.c.h.b16 %v378
    %v646 = vunpack.c.l.b16 %v379
    %v647 = vunpack.c.h.b16 %v379
    %v648 = vunpack.c.l.b16 %v380
    %v649 = vunpack.c.h.b16 %v380
    %v650 = vunpack.c.l.b16 %v381
    %v651 = vunpack.c.h.b16 %v381
    %v652 = vunpack.c.l.b16 %v382
    %v653 = vunpack.c.h.b16 %v382
    %v654 = vunpack.c.l.b16 %v383
    %v655 = vunpack.c.h.b16 %v383
    %v656 = vunpack.c.l.b16 %v384
    %v657 = vunpack.c.h.b16 %v384
    %v658 = vunpack.c.l.b16 %v385
    %v659 = vunpack.c.h.b16 %v385
    %v660 = vunpack.c.l.b16 %v386
    %v661 = vunpack.c.h.b16 %v386
    %v662 = vunpack.c.l.b16 %v387
    %v663 = vunpack.c.h.b16 %v387
    %v664 = vunpack.c.l.b16 %v388
    %v665 = vunpack.c.h.b16 %v388
    %v666 = vunpack.c.l.b16 %v389
    %v667 = vunpack.c.h.b16 %v389
    %v668 = vunpack.c.l.b16 %v390
    %v669 = vunpack.c.h.b16 %v390
    %v670 = vunpack.c.l.b16 %v391
    %v671 = vunpack.c.h.b16 %v391
    %v672 = vunpack.c.l.b16 %v392
    %v673 = vunpack.c.h.b16 %v392
    %v674 = vunpack.c.l.b16 %v393
    %v675 = vunpack.c.h.b16 %v393
    %v676 = vunpack.c.l.b16 %v394
    %v677 = vunpack.c.h.b16 %v394
    %v678 = vunpack.c.l.b16 %v395
    %v679 = vunpack.c.h.b16 %v395
    %v680 = vunpack.c.l.b16 %v396
    %v681 = vunpack.c.h.b16 %v396
    %v682 = vunpack.c.l.b16 %v397
    %v683 = vunpack.c.h.b16 %v397
    %v684 = vunpack.c.l.b16 %v398
    %v685 = vunpack.c.h.b16 %v398
    %v686 = vunpack.c.l.b16 %v399
    %v687 = vunpack.c.h.b16 %v399
    %v688 = vunpack.c.l.b16 %v400
    %v689 = vunpack.c.h.b16 %v400
    %v690 = vunpack.c.l.b16 %v401
    %v691 = vunpack.c.h.b16 %v401
    %v692 = vunpack.c.l.b16 %v402
    %v693 = vunpack.c.h.b16 %v402
    %v694 = vunpack.c.l.b16 %v403
    %v695 = vunpack.c.h.b16 %v403
    %v696 = vunpack.c.l.b16 %v404
    %v697 = vunpack.c.h.b16 %v404
    %v698 = vunpack.c.l.b16 %v405
    %v699 = vunpack.c.h.b16 %v405
    %v700 = vunpack.c.l.b16 %v406
    %v701 = vunpack.c.h.b16 %v406
    %v702 = vunpack.c.l.b16 %v407
    %v703 = vunpack.c.h.b16 %v407
    %v704 = vunpack.c.l.b16 %v408
    %v705 = vunpack.c.h.b16 %v408
    %v706 = vunpack.c.l.b16 %v409
    %v707 = vunpack.c.h.b16 %v409
    %v708 = vunpack.c.l.b16 %v410
    %v709 = vunpack.c.h.b16 %v410
    %v710 = vunpack.c.l.b16 %v411
    %v711 = vunpack.c.h.b16 %v411
    %v712 = vunpack.c.l.b16 %v412
    %v713 = vunpack.c.h.b16 %v412
    %v714 = vunpack.c.l.b16 %v413
    %v715 = vunpack.c.h.b16 %v413
    %v716 = vunpack.c.l.b16 %v414
    %v717 = vunpack.c.h.b16 %v414
    %v718 = vunpack.c.l.b16 %v415
    %v719 = vunpack.c.h.b16 %v415
    %v720 = vunpack.c.l.b16 %v416
    %v721 = vunpack.c.h.b16 %v416
    %v722 = vunpack.c.l.b16 %v417
    %v723 = vunpack.c.h.b16 %v417
    %v724 = vunpack.c.l.b16 %v418
    %v725 = vunpack.c.h.b16 %v418
    %v726 = vunpack.c.l.b16 %v419
    %v727 = vunpack.c.h.b16 %v419
    %v728 = vunpack.c.l.b16 %v420
    %v729 = vunpack.c.h.b16 %v420
    %v730 = vunpack.c.l.b16 %v421
    %v731 = vunpack.c.h.b16 %v421
    %v732 = vunpack.c.l.b16 %v422
    %v733 = vunpack.c.h.b16 %v422
    %v734 = vunpack.c.l.b16 %v423
    %v735 = vunpack.c.h.b16 %v423
    %v736 = vunpack.c.l.b16 %v424
    %v737 = vunpack.c.h.b16 %v424
    %v738 = vunpack.c.l.b16 %v425
    %v739 = vunpack.c.h.b16 %v425
    %v740 = vunpack.c.l.b16 %v426
    %v741 = vunpack.c.h.b16 %v426
    %v742 = vunpack.c.l.b16 %v427
    %v743 = vunpack.c.h.b16 %v427
    %v744 = vunpack.c.l.b16 %v428
    %v745 = vunpack.c.h.b16 %v428
    %v746 = vunpack.c.l.b16 %v429
    %v747 = vunpack.c.h.b16 %v429
    %v748 = vunpack.c.l.b16 %v430
    %v749 = vunpack.c.h.b16 %v430
    %v750 = vunpack.c.l.b16 %v431
    %v751 = vunpack.c.h.b16 %v431
    %v752 = vunpack.c.l.b16 %v432
    %v753 = vunpack.c.h.b16 %v432
    %v754 = vunpack.c.l.b16 %v433
    %v755 = vunpack.c.h.b16 %v433
    %v756 = vunpack.c.l.b16 %v434
    %v757 = vunpack.c.h.b16 %v434
    %v758 = vunpack.c.l.b16 %v435
    %v759 = vunpack.c.h.b16 %v435
    %v760 = vunpack.c.l.b16 %v436
    %v761 = vunpack.c.h.b16 %v436
    %v762 = vunpack.c.l.b16 %v437
    %v763 = vunpack.c.h.b16 %v437
    %v764 = vunpack.c.l.b16 %v438
    %v765 = vunpack.c.h.b16 %v438
    %v766 = vunpack.c.l.b16 %v439
    %v767 = vunpack.c.h.b16 %v439
    %v768 = vunpack.c.l.b16 %v440
    %v769 = vunpack.c.h.b16 %v440
    %v770 = vunpack.c.l.b16 %v441
    %v771 = vunpack.c.h.b16 %v441
    %v772 = vunpack.c.l.b16 %v442
    %v773 = vunpack.c.h.b16 %v442
    %v774 = vunpack.c.l.b16 %v443
    %v775 = vunpack.c.h.b16 %v443
    %v776 = vunpack.c.l.b16 %v444
    %v777 = vunpack.c.h.b16 %v444
    %v778 = vunpack.c.l.b16 %v445
    %v779 = vunpack.c.h.b16 %v445
    %v780 = vunpack.c.l.b16 %v446
    %v781 = vunpack.c.h.b16 %v446
    %v782 = vunpack.c.l.b16 %v447
    %v783 = vunpack.c.h.b16 %v447
    %v784 = vunpack.c.l.b16 %v448
    %v785 = vunpack.c.h.b16 %v448
    %v786 = vunpack.c.l.b16 %v449
    %v787 = vunpack.c.h.b16 %v449
    %v788 = vunpack.c.l.b16 %v450
    %v789 = vunpack.c.h.b16 %v450
    %v790 = vunpack.c.l.b16 %v451
    %v791 = vunpack.c.h.b16 %v451
    %v792 = vunpack.c.l.b16 %v452
    %v793 = vunpack.c.h.b16 %v452
    %v794 = vunpack.c.l.b16 %v453
    %v795 = vunpack.c.h.b16 %v453
    %v796 = vunpack.c.l.b16 %v454
    %v797 = vunpack.c.h.b16 %v454
    %v798 = vunpack.c.l.b16 %v455
    %v799 = vunpack.c.h.b16 %v455
    %v800 = vunpack.c.l.b16 %v456
    %v801 = vunpack.c.h.b16 %v456
    %v802 = vunpack.c.l.b16 %v457
    %v803 = vunpack.c.h.b16 %v457
    %v804 = vunpack.c.l.b16 %v458
    %v805 = vunpack.c.h.b16 %v458
    %v806 = vunpack.c.l.b16 %v459
    %v807 = vunpack.c.h.b16 %v459
    %v808 = vunpack.c.l.b16 %v460
    %v809 = vunpack.c.h.b16 %v460
    %v810 = vunpack.c.l.b16 %v461
    %v811 = vunpack.c.h.b16 %v461
    %v812 = vunpack.c.l.b16 %v462
    %v813 = vunpack.c.h.b16 %v462
    %v814 = vunpack.c.l.b16 %v463
    %v815 = vunpack.c.h.b16 %v463
    %v816 = vunpack.c.l.b16 %v464
    %v817 = vunpack.c.h.b16 %v464
    %v818 = vunpack.c.l.b16 %v465
    %v819 = vunpack.c.h.b16 %v465
    %v820 = vunpack.c.l.b16 %v466
    %v821 = vunpack.c.h.b16 %v466
    %v822 = vunpack.c.l.b16 %v467
    %v823 = vunpack.c.h.b16 %v467
    %v824 = vunpack.c.l.b16 %v468
    %v825 = vunpack.c.h.b16 %v468
    %v826 = vunpack.c.l.b16 %v469
    %v827 = vunpack.c.h.b16 %v469
    %v828 = vunpack.c.l.b16 %v470
    %v829 = vunpack.c.h.b16 %v470
    %v830 = vunpack.c.l.b16 %v471
    %v831 = vunpack.c.h.b16 %v471
    %v832 = vunpack.c.l.b16 %v472
    %v833 = vunpack.c.h.b16 %v472
    %v834 = vunpack.c.l.b16 %v473
    %v835 = vunpack.c.h.b16 %v473
    %v836 = vunpack.c.l.b16 %v474
    %v837 = vunpack.c.h.b16 %v474
    %v838 = vunpack.c.l.b16 %v475
    %v839 = vunpack.c.h.b16 %v475
    %v840 = vunpack.c.l.b16 %v476
    %v841 = vunpack.c.h.b16 %v476
    %v842 = vunpack.c.l.b16 %v477
    %v843 = vunpack.c.h.b16 %v477
    %v844 = vunpack.c.l.b16 %v478
    %v845 = vunpack.c.h.b16 %v478
    %v846 = vunpack.c.l.b16 %v479
    %v847 = vunpack.c.h.b16 %v479
    %v848 = vunpack.c.l.b16 %v480
    %v849 = vunpack.c.h.b16 %v480
    %v850 = vunpack.c.l.b16 %v481
    %v851 = vunpack.c.h.b16 %v481
    %v852 = vunpack.c.l.b16 %v482
    %v853 = vunpack.c.h.b16 %v482
    %v854 = vunpack.c.l.b16 %v483
    %v855 = vunpack.c.h.b16 %v483
    %v856 = vunpack.c.l.b16 %v484
    %v857 = vunpack.c.h.b16 %v484
    %v858 = vunpack.c.l.b16 %v485
    %v859 = vunpack.c.h.b16 %v485
    %v860 = vunpack.c.l.b16 %v486
    %v861 = vunpack.c.h.b16 %v486
    %v862 = vunpack.c.l.b16 %v487
    %v863 = vunpack.c.h.b16 %v487
    %v864 = vunpack.c.l.b16 %v488
    %v865 = vunpack.c.h.b16 %v488
    %v866 = vunpack.c.l.b16 %v489
    %v867 = vunpack.c.h.b16 %v489
    %v868 = vunpack.c.l.b16 %v490
    %v869 = vunpack.c.h.b16 %v490
    %v870 = vunpack.c.l.b16 %v491
    %v871 = vunpack.c.h.b16 %v491
    %v872 = vunpack.c.l.b16 %v492
    %v873 = vunpack.c.h.b16 %v492
    %v874 = vunpack.c.l.b16 %v493
    %v875 = vunpack.c.h.b16 %v493
    %v876 = vunpack.c.l.b16 %v494
    %v877 = vunpack.c.h.b16 %v494
    %v878 = vunpack.c.l.b16 %v495
    %v879 = vunpack.c.h.b16 %v495
    %v880 = vpack.c.b16 %v640, %v624
    %v881 = vpack.c.b16 %v641, %v625
    %v882 = vpack.c.b16 %v642, %v626
    %v883 = vpack.c.b16 %v643, %v627
    %v884 = vpack.c.b16 %v644, %v628
    %v885 = vpack.c.b16 %v645, %v629
    %v886 = vpack.c.b16 %v646, %v630
    %v887 = vpack.c.b16 %v647, %v631
    %v888 = vpack.c.b16 %v648, %v632
    %v889 = vpack.c.b16 %v649, %v633
    %v890 = vpack.c.b16 %v650, %v634
    %v891 = vpack.c.b16 %v651, %v635
    %v892 = vpack.c.b16 %v652, %v636
    %v893 = vpack.c.b16 %v653, %v637
    %v894 = vpack.c.b16 %v654, %v638
    %v895 = vpack.c.b16 %v655, %v639
    %v896 = vpack.c.b16 %v672, %v656
    %v897 = vpack.c.b16 %v673, %v657
    %v898 = vpack.c.b16 %v674, %v658
    %v899 = vpack.c.b16 %v675, %v659
    %v900 = vpack.c.b16 %v676, %v660
    %v901 = vpack.c.b16 %v677, %v661
    %v902 = vpack.c.b16 %v678, %v662
    %v903 = vpack.c.b16 %v679, %v663
    %v904 = vpack.c.b16 %v680, %v664
    %v905 = vpack.c.b16 %v681, %v665
    %v906 = vpack.c.b16 %v682, %v666
    %v907 = vpack.c.b16 %v683, %v667
    %v908 = vpack.c.b16 %v684, %v668
    %v909 = vpack.c.b16 %v685, %v669
    %v910 = vpack.c.b16 %v686, %v670
    %v911 = vpack.c.b16 %v687, %v671
    %v912 = vpack.c.b16 %v704, %v688
    %v913 = vpack.c.b16 %v705, %v689
    %v914 = vpack.c.b16 %v706, %v690
    %v915 = vpack.c.b16 %v707, %v691
    %v916 = vpack.c.b16 %v708, %v692
    %v917 = vpack.c.b16 %v709, %v693
    %v918 = vpack.c.b16 %v710, %v694
    %v919 = vpack.c.b16 %v711, %v695
    %v920 = vpack.c.b16 %v712, %v696
    %v921 = vpack.c.b16 %v713, %v697
    %v922 = vpack.c.b16 %v714, %v698
    %v923 = vpack.c.b16 %v715, %v699
    %v924 = vpack.c.b16 %v716, %v700
    %v925 = vpack.c.b16 %v717, %v701
    %v926 = vpack.c.b16 %v718, %v702
    %v927 = vpack.c.b16 %v719, %v703
    %v928 = vpack.c.b16 %v736, %v720
    %v929 = vpack.c.b16 %v737, %v721
    %v930 = vpack.c.b16 %v738, %v722
    %v931 = vpack.c.b16 %v739, %v723
    %v932 = vpack.c.b16 %v740, %v724
    %v933 = vpack.c.b16 %v741, %v725
    %v934 = vpack.c.b16 %v742, %v726
    %v935 = vpack.c.b16 %v743, %v727
    %v936 = vpack.c.b16 %v744, %v728
    %v937 = vpack.c.b16 %v745, %v729
    %v938 = vpack.c.b16 %v746, %v730
    %v939 = vpack.c.b16 %v747, %v731
    %v940 = vpack.c.b16 %v748, %v732
    %v941 = vpack.c.b16 %v749, %v733
    %v942 = vpack.c.b16 %v750, %v734
    %v943 = vpack.c.b16 %v751, %v735
    %v944 = vpack.c.b16 %v768, %v752
    %v945 = vpack.c.b16 %v769, %v753
    %v946 = vpack.c.b16 %v770, %v754
    %v947 = vpack.c.b16 %v771, %v755
    %v948 = vpack.c.b16 %v772, %v756
    %v949 = vpack.c.b16 %v773, %v757
    %v950 = vpack.c.b16 %v774, %v758
    %v951 = vpack.c.b16 %v775, %v759
    %v952 = vpack.c.b16 %v776, %v760
    %v953 = vpack.c.b16 %v777, %v761
    %v954 = vpack.c.b16 %v778, %v762
    %v955 = vpack.c.b16 %v779, %v763
    %v956 = vpack.c.b16 %v780, %v764
    %v957 = vpack.c.b16 %v781, %v765
    %v958 = vpack.c.b16 %v782, %v766
    %v959 = vpack.c.b16 %v783, %v767
    %v960 = vpack.c.b16 %v800, %v784
    %v961 = vpack.c.b16 %v801, %v785
    %v962 = vpack.c.b16 %v802, %v786
    %v963 = vpack.c.b16 %v803, %v787
    %v964 = vpack.c.b16 %v804, %v788
    %v965 = vpack.c.b16 %v805, %v789
    %v966 = vpack.c.b16 %v806, %v790
    %v967 = vpack.c.b16 %v807, %v791
    %v968 = vpack.c.b16 %v808, %v792
    %v969 = vpack.c.b16 %v809, %v793
    %v970 = vpack.c.b16 %v810, %v794
    %v971 = vpack.c.b16 %v811, %v795
    %v972 = vpack.c.b16 %v812, %v796
    %v973 = vpack.c.b16 %v813, %v797
    %v974 = vpack.c.b16 %v814, %v798
    %v975 = vpack.c.b16 %v815, %v799
    %v976 = vpack.c.b16 %v832, %v816
    %v977 = vpack.c.b16 %v833, %v817
    %v978 = vpack.c.b16 %v834, %v818
    %v979 = vpack.c.b16 %v835, %v819
    %v980 = vpack.c.b16 %v836, %v820
    %v981 = vpack.c.b16 %v837, %v821
    %v982 = vpack.c.b16 %v838, %v822
    %v983 = vpack.c.b16 %v839, %v823
    %v984 = vpack.c.b16 %v840, %v824
    %v985 = vpack.c.b16 %v841, %v825
    %v986 = vpack.c.b16 %v842, %v826
    %v987 = vpack.c.b16 %v843, %v827
    %v988 = vpack.c.b16 %v844, %v828
    %v989 = vpack.c.b16 %v845, %v829
    %v990 = vpack.c.b16 %v846, %v830
    %v991 = vpack.c.b16 %v847, %v831
    %v992 = vpack.c.b16 %v864, %v848
    %v993 = vpack.c.b16 %v865, %v849
    %v994 = vpack.c.b16 %v866, %v850
    %v995 = vpack.c.b16 %v867, %v851
    %v996 = vpack.c.b16 %v868, %v852
    %v997 = vpack.c.b16 %v869, %v853
    %v998 = vpack.c.b16 %v870, %v854
    %v999 = vpack.c.b16 %v871, %v855
    %v1000 = vpack.c.b16 %v872, %v856
    %v1001 = vpack.c.b16 %v873, %v857
    %v1002 = vpack.c.b16 %v874, %v858
    %v1003 = vpack.c.b16 %v875, %v859
    %v1004 = vpack.c.b16 %v876, %v860
    %v1005 = vpack.c.b16 %v877, %v861
    %v1006 = vpack.c.b16 %v878, %v862
    %v1007 = vpack.c.b16 %v879, %v863
    %1136 = vmatprep.subr.bf16.mxu0 %v881
    %1137 = vmatpush1.bf16.msra.mxu0 %v880
    %1138 = vmatprep.subr.bf16.mxu0 %v897
    %1139 = vmatpush1.bf16.msra.mxu0 %v896
    %1140 = vmatprep.subr.bf16.mxu0 %v913
    %1141 = vmatpush1.bf16.msra.mxu0 %v912
    %1142 = vmatprep.subr.bf16.mxu0 %v929
    %1143 = vmatpush1.bf16.msra.mxu0 %v928
    %1144 = vmatprep.subr.bf16.mxu0 %v945
    %1145 = vmatpush1.bf16.msra.mxu0 %v944
    %1146 = vmatprep.subr.bf16.mxu0 %v961
    %1147 = vmatpush1.bf16.msra.mxu0 %v960
    %1148 = vmatprep.subr.bf16.mxu0 %v977
    %1149 = vmatpush1.bf16.msra.mxu0 %v976
    %1150 = vmatprep.subr.bf16.mxu0 %v993
    %1151 = vmatpush1.bf16.msra.mxu0 %v992
    %1152 = vmatprep.subr.bf16.mxu0 0
    %1153 = vmatpush1.bf16.msra.mxu0 0
    %1154 = vmatprep.subr.bf16.mxu0 0
    %1155 = vmatpush1.bf16.msra.mxu0 0
    %1156 = vmatprep.subr.bf16.mxu0 0
    %1157 = vmatpush1.bf16.msra.mxu0 0
    %1158 = vmatprep.subr.bf16.mxu0 0
    %1159 = vmatpush1.bf16.msra.mxu0 0
    %1160 = vmatprep.subr.bf16.mxu0 0
    %1161 = vmatpush1.bf16.msra.mxu0 0
    %1162 = vmatprep.subr.bf16.mxu0 0
    %1163 = vmatpush1.bf16.msra.mxu0 0
    %1164 = vmatprep.subr.bf16.mxu0 0
    %1165 = vmatpush1.bf16.msra.mxu0 0
    %1166 = vmatprep.subr.bf16.mxu0 0
    %1167 = vmatpush1.bf16.msra.mxu0 0
    %1168 = vmatprep.mubr.bf16.mxu0 0
    %1169 = vmatmul.mubr.bf16.gmra.mrb[0].mxu0 %v367
    %v1170 = vpop.f32.mrb[0].mxu0
    %v1171 = vadd.f32 0.0, %v1170
    %v1172 = vpop.f32.mrb[0].mxu0
    %v1173 = vadd.f32 0.0, %v1172
    %v1174 = vpop.f32.mrb[0].mxu0
    %v1175 = vpop.f32.mrb[0].mxu0
    %1176 = vdwg.mxu0
    %1177 = vmatprep.subr.bf16.mxu0 %v883
    %1178 = vmatpush1.bf16.msra.mxu0 %v882
    %1179 = vmatprep.subr.bf16.mxu0 %v899
    %1180 = vmatpush1.bf16.msra.mxu0 %v898
    %1181 = vmatprep.subr.bf16.mxu0 %v915
    %1182 = vmatpush1.bf16.msra.mxu0 %v914
    %1183 = vmatprep.subr.bf16.mxu0 %v931
    %1184 = vmatpush1.bf16.msra.mxu0 %v930
    %1185 = vmatprep.subr.bf16.mxu0 %v947
    %1186 = vmatpush1.bf16.msra.mxu0 %v946
    %1187 = vmatprep.subr.bf16.mxu0 %v963
    %1188 = vmatpush1.bf16.msra.mxu0 %v962
    %1189 = vmatprep.subr.bf16.mxu0 %v979
    %1190 = vmatpush1.bf16.msra.mxu0 %v978
    %1191 = vmatprep.subr.bf16.mxu0 %v995
    %1192 = vmatpush1.bf16.msra.mxu0 %v994
    %1193 = vmatprep.subr.bf16.mxu0 0
    %1194 = vmatpush1.bf16.msra.mxu0 0
    %1195 = vmatprep.subr.bf16.mxu0 0
    %1196 = vmatpush1.bf16.msra.mxu0 0
    %1197 = vmatprep.subr.bf16.mxu0 0
    %1198 = vmatpush1.bf16.msra.mxu0 0
    %1199 = vmatprep.subr.bf16.mxu0 0
    %1200 = vmatpush1.bf16.msra.mxu0 0
    %1201 = vmatprep.subr.bf16.mxu0 0
    %1202 = vmatpush1.bf16.msra.mxu0 0
    %1203 = vmatprep.subr.bf16.mxu0 0
    %1204 = vmatpush1.bf16.msra.mxu0 0
    %1205 = vmatprep.subr.bf16.mxu0 0
    %1206 = vmatpush1.bf16.msra.mxu0 0
    %1207 = vmatprep.subr.bf16.mxu0 0
    %1208 = vmatpush1.bf16.msra.mxu0 0
    %1209 = vmatprep.mubr.bf16.mxu0 0
    %1210 = vmatmul.mubr.bf16.gmra.mrb[0].mxu0 %v367
    %v1211 = vpop.f32.mrb[0].mxu0
    %v1212 = vadd.f32 0.0, %v1211
    %v1213 = vpop.f32.mrb[0].mxu0
    %v1214 = vadd.f32 0.0, %v1213
    %v1215 = vpop.f32.mrb[0].mxu0
    %v1216 = vpop.f32.mrb[0].mxu0
    %1217 = vdwg.mxu0
    %1218 = vmatprep.subr.bf16.mxu0 %v885
    %1219 = vmatpush1.bf16.msra.mxu0 %v884
    %1220 = vmatprep.subr.bf16.mxu0 %v901
    %1221 = vmatpush1.bf16.msra.mxu0 %v900
    %1222 = vmatprep.subr.bf16.mxu0 %v917
    %1223 = vmatpush1.bf16.msra.mxu0 %v916
    %1224 = vmatprep.subr.bf16.mxu0 %v933
    %1225 = vmatpush1.bf16.msra.mxu0 %v932
    %1226 = vmatprep.subr.bf16.mxu0 %v949
    %1227 = vmatpush1.bf16.msra.mxu0 %v948
    %1228 = vmatprep.subr.bf16.mxu0 %v965
    %1229 = vmatpush1.bf16.msra.mxu0 %v964
    %1230 = vmatprep.subr.bf16.mxu0 %v981
    %1231 = vmatpush1.bf16.msra.mxu0 %v980
    %1232 = vmatprep.subr.bf16.mxu0 %v997
    %1233 = vmatpush1.bf16.msra.mxu0 %v996
    %1234 = vmatprep.subr.bf16.mxu0 0
    %1235 = vmatpush1.bf16.msra.mxu0 0
    %1236 = vmatprep.subr.bf16.mxu0 0
    %1237 = vmatpush1.bf16.msra.mxu0 0
    %1238 = vmatprep.subr.bf16.mxu0 0
    %1239 = vmatpush1.bf16.msra.mxu0 0
    %1240 = vmatprep.subr.bf16.mxu0 0
    %1241 = vmatpush1.bf16.msra.mxu0 0
    %1242 = vmatprep.subr.bf16.mxu0 0
    %1243 = vmatpush1.bf16.msra.mxu0 0
    %1244 = vmatprep.subr.bf16.mxu0 0
    %1245 = vmatpush1.bf16.msra.mxu0 0
    %1246 = vmatprep.subr.bf16.mxu0 0
    %1247 = vmatpush1.bf16.msra.mxu0 0
    %1248 = vmatprep.subr.bf16.mxu0 0
    %1249 = vmatpush1.bf16.msra.mxu0 0
    %1250 = vmatprep.mubr.bf16.mxu0 0
    %1251 = vmatmul.mubr.bf16.gmra.mrb[0].mxu0 %v367
    %v1252 = vpop.f32.mrb[0].mxu0
    %v1253 = vadd.f32 0.0, %v1252
    %v1254 = vpop.f32.mrb[0].mxu0
    %v1255 = vadd.f32 0.0, %v1254
    %v1256 = vpop.f32.mrb[0].mxu0
    %v1257 = vpop.f32.mrb[0].mxu0
    %1258 = vdwg.mxu0
    %1259 = vmatprep.subr.bf16.mxu0 %v887
    %1260 = vmatpush1.bf16.msra.mxu0 %v886
    %1261 = vmatprep.subr.bf16.mxu0 %v903
    %1262 = vmatpush1.bf16.msra.mxu0 %v902
    %1263 = vmatprep.subr.bf16.mxu0 %v919
    %1264 = vmatpush1.bf16.msra.mxu0 %v918
    %1265 = vmatprep.subr.bf16.mxu0 %v935
    %1266 = vmatpush1.bf16.msra.mxu0 %v934
    %1267 = vmatprep.subr.bf16.mxu0 %v951
    %1268 = vmatpush1.bf16.msra.mxu0 %v950
    %1269 = vmatprep.subr.bf16.mxu0 %v967
    %1270 = vmatpush1.bf16.msra.mxu0 %v966
    %1271 = vmatprep.subr.bf16.mxu0 %v983
    %1272 = vmatpush1.bf16.msra.mxu0 %v982
    %1273 = vmatprep.subr.bf16.mxu0 %v999
    %1274 = vmatpush1.bf16.msra.mxu0 %v998
    %1275 = vmatprep.subr.bf16.mxu0 0
    %1276 = vmatpush1.bf16.msra.mxu0 0
    %1277 = vmatprep.subr.bf16.mxu0 0
    %1278 = vmatpush1.bf16.msra.mxu0 0
    %1279 = vmatprep.subr.bf16.mxu0 0
    %1280 = vmatpush1.bf16.msra.mxu0 0
    %1281 = vmatprep.subr.bf16.mxu0 0
    %1282 = vmatpush1.bf16.msra.mxu0 0
    %1283 = vmatprep.subr.bf16.mxu0 0
    %1284 = vmatpush1.bf16.msra.mxu0 0
    %1285 = vmatprep.subr.bf16.mxu0 0
    %1286 = vmatpush1.bf16.msra.mxu0 0
    %1287 = vmatprep.subr.bf16.mxu0 0
    %1288 = vmatpush1.bf16.msra.mxu0 0
    %1289 = vmatprep.subr.bf16.mxu0 0
    %1290 = vmatpush1.bf16.msra.mxu0 0
    %1291 = vmatprep.mubr.bf16.mxu0 0
    %1292 = vmatmul.mubr.bf16.gmra.mrb[0].mxu0 %v367
    %v1293 = vpop.f32.mrb[0].mxu0
    %v1294 = vadd.f32 0.0, %v1293
    %v1295 = vpop.f32.mrb[0].mxu0
    %v1296 = vadd.f32 0.0, %v1295
    %v1297 = vpop.f32.mrb[0].mxu0
    %v1298 = vpop.f32.mrb[0].mxu0
    %1299 = vdwg.mxu0
    %1300 = vmatprep.subr.bf16.mxu0 %v889
    %1301 = vmatpush1.bf16.msra.mxu0 %v888
    %1302 = vmatprep.subr.bf16.mxu0 %v905
    %1303 = vmatpush1.bf16.msra.mxu0 %v904
    %1304 = vmatprep.subr.bf16.mxu0 %v921
    %1305 = vmatpush1.bf16.msra.mxu0 %v920
    %1306 = vmatprep.subr.bf16.mxu0 %v937
    %1307 = vmatpush1.bf16.msra.mxu0 %v936
    %1308 = vmatprep.subr.bf16.mxu0 %v953
    %1309 = vmatpush1.bf16.msra.mxu0 %v952
    %1310 = vmatprep.subr.bf16.mxu0 %v969
    %1311 = vmatpush1.bf16.msra.mxu0 %v968
    %1312 = vmatprep.subr.bf16.mxu0 %v985
    %1313 = vmatpush1.bf16.msra.mxu0 %v984
    %1314 = vmatprep.subr.bf16.mxu0 %v1001
    %1315 = vmatpush1.bf16.msra.mxu0 %v1000
    %1316 = vmatprep.subr.bf16.mxu0 0
    %1317 = vmatpush1.bf16.msra.mxu0 0
    %1318 = vmatprep.subr.bf16.mxu0 0
    %1319 = vmatpush1.bf16.msra.mxu0 0
    %1320 = vmatprep.subr.bf16.mxu0 0
    %1321 = vmatpush1.bf16.msra.mxu0 0
    %1322 = vmatprep.subr.bf16.mxu0 0
    %1323 = vmatpush1.bf16.msra.mxu0 0
    %1324 = vmatprep.subr.bf16.mxu0 0
    %1325 = vmatpush1.bf16.msra.mxu0 0
    %1326 = vmatprep.subr.bf16.mxu0 0
    %1327 = vmatpush1.bf16.msra.mxu0 0
    %1328 = vmatprep.subr.bf16.mxu0 0
    %1329 = vmatpush1.bf16.msra.mxu0 0
    %1330 = vmatprep.subr.bf16.mxu0 0
    %1331 = vmatpush1.bf16.msra.mxu0 0
    %1332 = vmatprep.mubr.bf16.mxu0 0
    %1333 = vmatmul.mubr.bf16.gmra.mrb[0].mxu0 %v367
    %v1334 = vpop.f32.mrb[0].mxu0
    %v1335 = vadd.f32 0.0, %v1334
    %v1336 = vpop.f32.mrb[0].mxu0
    %v1337 = vadd.f32 0.0, %v1336
    %v1338 = vpop.f32.mrb[0].mxu0
    %v1339 = vpop.f32.mrb[0].mxu0
    %1340 = vdwg.mxu0
    %1341 = vmatprep.subr.bf16.mxu0 %v891
    %1342 = vmatpush1.bf16.msra.mxu0 %v890
    %1343 = vmatprep.subr.bf16.mxu0 %v907
    %1344 = vmatpush1.bf16.msra.mxu0 %v906
    %1345 = vmatprep.subr.bf16.mxu0 %v923
    %1346 = vmatpush1.bf16.msra.mxu0 %v922
    %1347 = vmatprep.subr.bf16.mxu0 %v939
    %1348 = vmatpush1.bf16.msra.mxu0 %v938
    %1349 = vmatprep.subr.bf16.mxu0 %v955
    %1350 = vmatpush1.bf16.msra.mxu0 %v954
    %1351 = vmatprep.subr.bf16.mxu0 %v971
    %1352 = vmatpush1.bf16.msra.mxu0 %v970
    %1353 = vmatprep.subr.bf16.mxu0 %v987
    %1354 = vmatpush1.bf16.msra.mxu0 %v986
    %1355 = vmatprep.subr.bf16.mxu0 %v1003
    %1356 = vmatpush1.bf16.msra.mxu0 %v1002
    %1357 = vmatprep.subr.bf16.mxu0 0
    %1358 = vmatpush1.bf16.msra.mxu0 0
    %1359 = vmatprep.subr.bf16.mxu0 0
    %1360 = vmatpush1.bf16.msra.mxu0 0
    %1361 = vmatprep.subr.bf16.mxu0 0
    %1362 = vmatpush1.bf16.msra.mxu0 0
    %1363 = vmatprep.subr.bf16.mxu0 0
    %1364 = vmatpush1.bf16.msra.mxu0 0
    %1365 = vmatprep.subr.bf16.mxu0 0
    %1366 = vmatpush1.bf16.msra.mxu0 0
    %1367 = vmatprep.subr.bf16.mxu0 0
    %1368 = vmatpush1.bf16.msra.mxu0 0
    %1369 = vmatprep.subr.bf16.mxu0 0
    %1370 = vmatpush1.bf16.msra.mxu0 0
    %1371 = vmatprep.subr.bf16.mxu0 0
    %1372 = vmatpush1.bf16.msra.mxu0 0
    %1373 = vmatprep.mubr.bf16.mxu0 0
    %1374 = vmatmul.mubr.bf16.gmra.mrb[0].mxu0 %v367
    %v1375 = vpop.f32.mrb[0].mxu0
    %v1376 = vadd.f32 0.0, %v1375
    %v1377 = vpop.f32.mrb[0].mxu0
    %v1378 = vadd.f32 0.0, %v1377
    %v1379 = vpop.f32.mrb[0].mxu0
    %v1380 = vpop.f32.mrb[0].mxu0
    %1381 = vdwg.mxu0
    %1382 = vmatprep.subr.bf16.mxu0 %v893
    %1383 = vmatpush1.bf16.msra.mxu0 %v892
    %1384 = vmatprep.subr.bf16.mxu0 %v909
    %1385 = vmatpush1.bf16.msra.mxu0 %v908
    %1386 = vmatprep.subr.bf16.mxu0 %v925
    %1387 = vmatpush1.bf16.msra.mxu0 %v924
    %1388 = vmatprep.subr.bf16.mxu0 %v941
    %1389 = vmatpush1.bf16.msra.mxu0 %v940
    %1390 = vmatprep.subr.bf16.mxu0 %v957
    %1391 = vmatpush1.bf16.msra.mxu0 %v956
    %1392 = vmatprep.subr.bf16.mxu0 %v973
    %1393 = vmatpush1.bf16.msra.mxu0 %v972
    %1394 = vmatprep.subr.bf16.mxu0 %v989
    %1395 = vmatpush1.bf16.msra.mxu0 %v988
    %1396 = vmatprep.subr.bf16.mxu0 %v1005
    %1397 = vmatpush1.bf16.msra.mxu0 %v1004
    %1398 = vmatprep.subr.bf16.mxu0 0
    %1399 = vmatpush1.bf16.msra.mxu0 0
    %1400 = vmatprep.subr.bf16.mxu0 0
    %1401 = vmatpush1.bf16.msra.mxu0 0
    %1402 = vmatprep.subr.bf16.mxu0 0
    %1403 = vmatpush1.bf16.msra.mxu0 0
    %1404 = vmatprep.subr.bf16.mxu0 0
    %1405 = vmatpush1.bf16.msra.mxu0 0
    %1406 = vmatprep.subr.bf16.mxu0 0
    %1407 = vmatpush1.bf16.msra.mxu0 0
    %1408 = vmatprep.subr.bf16.mxu0 0
    %1409 = vmatpush1.bf16.msra.mxu0 0
    %1410 = vmatprep.subr.bf16.mxu0 0
    %1411 = vmatpush1.bf16.msra.mxu0 0
    %1412 = vmatprep.subr.bf16.mxu0 0
    %1413 = vmatpush1.bf16.msra.mxu0 0
    %1414 = vmatprep.mubr.bf16.mxu0 0
    %1415 = vmatmul.mubr.bf16.gmra.mrb[0].mxu0 %v367
    %v1416 = vpop.f32.mrb[0].mxu0
    %v1417 = vadd.f32 0.0, %v1416
    %v1418 = vpop.f32.mrb[0].mxu0
    %v1419 = vadd.f32 0.0, %v1418
    %v1420 = vpop.f32.mrb[0].mxu0
    %v1421 = vpop.f32.mrb[0].mxu0
    %1422 = vdwg.mxu0
    %1423 = vmatprep.subr.bf16.mxu0 %v895
    %1424 = vmatpush1.bf16.msra.mxu0 %v894
    %1425 = vmatprep.subr.bf16.mxu0 %v911
    %1426 = vmatpush1.bf16.msra.mxu0 %v910
    %1427 = vmatprep.subr.bf16.mxu0 %v927
    %1428 = vmatpush1.bf16.msra.mxu0 %v926
    %1429 = vmatprep.subr.bf16.mxu0 %v943
    %1430 = vmatpush1.bf16.msra.mxu0 %v942
    %1431 = vmatprep.subr.bf16.mxu0 %v959
    %1432 = vmatpush1.bf16.msra.mxu0 %v958
    %1433 = vmatprep.subr.bf16.mxu0 %v975
    %1434 = vmatpush1.bf16.msra.mxu0 %v974
    %1435 = vmatprep.subr.bf16.mxu0 %v991
    %1436 = vmatpush1.bf16.msra.mxu0 %v990
    %1437 = vmatprep.subr.bf16.mxu0 %v1007
    %1438 = vmatpush1.bf16.msra.mxu0 %v1006
    %1439 = vmatprep.subr.bf16.mxu0 0
    %1440 = vmatpush1.bf16.msra.mxu0 0
    %1441 = vmatprep.subr.bf16.mxu0 0
    %1442 = vmatpush1.bf16.msra.mxu0 0
    %1443 = vmatprep.subr.bf16.mxu0 0
    %1444 = vmatpush1.bf16.msra.mxu0 0
    %1445 = vmatprep.subr.bf16.mxu0 0
    %1446 = vmatpush1.bf16.msra.mxu0 0
    %1447 = vmatprep.subr.bf16.mxu0 0
    %1448 = vmatpush1.bf16.msra.mxu0 0
    %1449 = vmatprep.subr.bf16.mxu0 0
    %1450 = vmatpush1.bf16.msra.mxu0 0
    %1451 = vmatprep.subr.bf16.mxu0 0
    %1452 = vmatpush1.bf16.msra.mxu0 0
    %1453 = vmatprep.subr.bf16.mxu0 0
    %1454 = vmatpush1.bf16.msra.mxu0 0
    %1455 = vmatprep.mubr.bf16.mxu0 0
    %1456 = vmatmul.mubr.bf16.gmra.mrb[0].mxu0 %v367
    %v1457 = vpop.f32.mrb[0].mxu0
    %v1458 = vadd.f32 0.0, %v1457
    %v1459 = vpop.f32.mrb[0].mxu0
    %v1460 = vadd.f32 0.0, %v1459
    %v1461 = vpop.f32.mrb[0].mxu0
    %v1462 = vpop.f32.mrb[0].mxu0
    %1463 = vdwg.mxu0
    %v1464 = vpack.c.bf16 %v1171, %v1171
    %v1465 = vpack.c.bf16 %v1173, %v1173
    %v1466 = vpack.c.bf16 %v1212, %v1212
    %v1467 = vpack.c.bf16 %v1214, %v1214
    %v1468 = vpack.c.bf16 %v1253, %v1253
    %v1469 = vpack.c.bf16 %v1255, %v1255
    %v1470 = vpack.c.bf16 %v1294, %v1294
    %v1471 = vpack.c.bf16 %v1296, %v1296
    %v1472 = vpack.c.bf16 %v1335, %v1335
    %v1473 = vpack.c.bf16 %v1337, %v1337
    %v1474 = vpack.c.bf16 %v1376, %v1376
    %v1475 = vpack.c.bf16 %v1378, %v1378
    %v1476 = vpack.c.bf16 %v1417, %v1417
    %v1477 = vpack.c.bf16 %v1419, %v1419
    %v1478 = vpack.c.bf16 %v1458, %v1458
    %v1479 = vpack.c.bf16 %v1460, %v1460
    %v1480 = vld [vmem:[#allocation11] sm:$0xff]
    %v1481 = vld [vmem:[#allocation11 + $0x8] sm:$0xff]
    %v1484 = vlaneseq
    %v1485 = vshrl.u32 %v1484, 7
    %v1486 = vsub.s32 0, %v1485
    %v1487 = vrot.slane %v1480, %v1486
    %v1488 = vlaneseq
    %v1489 = vshrl.u32 %v1488, 7
    %v1490 = vsub.s32 1, %v1489
    %v1491 = vrot.slane %v1480, %v1490
    %v1492 = vlaneseq
    %v1493 = vshrl.u32 %v1492, 7
    %v1494 = vsub.s32 2, %v1493
    %v1495 = vrot.slane %v1480, %v1494
    %v1496 = vlaneseq
    %v1497 = vshrl.u32 %v1496, 7
    %v1498 = vsub.s32 3, %v1497
    %v1499 = vrot.slane %v1480, %v1498
    %v1500 = vlaneseq
    %v1501 = vshrl.u32 %v1500, 7
    %v1502 = vsub.s32 4, %v1501
    %v1503 = vrot.slane %v1480, %v1502
    %v1504 = vlaneseq
    %v1505 = vshrl.u32 %v1504, 7
    %v1506 = vsub.s32 5, %v1505
    %v1507 = vrot.slane %v1480, %v1506
    %v1508 = vlaneseq
    %v1509 = vshrl.u32 %v1508, 7
    %v1510 = vsub.s32 6, %v1509
    %v1511 = vrot.slane %v1480, %v1510
    %v1512 = vlaneseq
    %v1513 = vshrl.u32 %v1512, 7
    %v1514 = vsub.s32 7, %v1513
    %v1515 = vrot.slane %v1480, %v1514
    %v1516 = vlaneseq
    %v1517 = vshrl.u32 %v1516, 7
    %v1518 = vsub.s32 0, %v1517
    %v1519 = vrot.slane %v1481, %v1518
    %v1520 = vlaneseq
    %v1521 = vshrl.u32 %v1520, 7
    %v1522 = vsub.s32 1, %v1521
    %v1523 = vrot.slane %v1481, %v1522
    %v1524 = vlaneseq
    %v1525 = vshrl.u32 %v1524, 7
    %v1526 = vsub.s32 2, %v1525
    %v1527 = vrot.slane %v1481, %v1526
    %v1528 = vlaneseq
    %v1529 = vshrl.u32 %v1528, 7
    %v1530 = vsub.s32 3, %v1529
    %v1531 = vrot.slane %v1481, %v1530
    %v1532 = vlaneseq
    %v1533 = vshrl.u32 %v1532, 7
    %v1534 = vsub.s32 4, %v1533
    %v1535 = vrot.slane %v1481, %v1534
    %v1536 = vlaneseq
    %v1537 = vshrl.u32 %v1536, 7
    %v1538 = vsub.s32 5, %v1537
    %v1539 = vrot.slane %v1481, %v1538
    %v1540 = vlaneseq
    %v1541 = vshrl.u32 %v1540, 7
    %v1542 = vsub.s32 6, %v1541
    %v1543 = vrot.slane %v1481, %v1542
    %v1544 = vlaneseq
    %v1545 = vshrl.u32 %v1544, 7
    %v1546 = vsub.s32 7, %v1545
    %v1547 = vrot.slane %v1481, %v1546
    %v1564 = vpack.c.bf16 %v1487, %v1487
    %v1565 = vpack.c.bf16 %v1491, %v1491
    %v1566 = vpack.c.bf16 %v1495, %v1495
    %v1567 = vpack.c.bf16 %v1499, %v1499
    %v1568 = vpack.c.bf16 %v1503, %v1503
    %v1569 = vpack.c.bf16 %v1507, %v1507
    %v1570 = vpack.c.bf16 %v1511, %v1511
    %v1571 = vpack.c.bf16 %v1515, %v1515
    %v1572 = vpack.c.bf16 %v1519, %v1519
    %v1573 = vpack.c.bf16 %v1523, %v1523
    %v1574 = vpack.c.bf16 %v1527, %v1527
    %v1575 = vpack.c.bf16 %v1531, %v1531
    %v1576 = vpack.c.bf16 %v1535, %v1535
    %v1577 = vpack.c.bf16 %v1539, %v1539
    %v1578 = vpack.c.bf16 %v1543, %v1543
    %v1579 = vpack.c.bf16 %v1547, %v1547
    %v1581 = vpack.i.b16 %v1564, %v1564
    %v1583 = vlaneseq
    %v1584 = vshrl.u32 %v1583, 7
    %v1585 = vsub.s32 0, %v1584
    %v1586 = vrot.slane %v1581, %v1585
    %v1588 = vpack.i.b16 %v1565, %v1565
    %v1590 = vlaneseq
    %v1591 = vshrl.u32 %v1590, 7
    %v1592 = vsub.s32 0, %v1591
    %v1593 = vrot.slane %v1588, %v1592
    %v1595 = vpack.i.b16 %v1566, %v1566
    %v1597 = vlaneseq
    %v1598 = vshrl.u32 %v1597, 7
    %v1599 = vsub.s32 0, %v1598
    %v1600 = vrot.slane %v1595, %v1599
    %v1602 = vpack.i.b16 %v1567, %v1567
    %v1604 = vlaneseq
    %v1605 = vshrl.u32 %v1604, 7
    %v1606 = vsub.s32 0, %v1605
    %v1607 = vrot.slane %v1602, %v1606
    %v1609 = vpack.i.b16 %v1568, %v1568
    %v1611 = vlaneseq
    %v1612 = vshrl.u32 %v1611, 7
    %v1613 = vsub.s32 0, %v1612
    %v1614 = vrot.slane %v1609, %v1613
    %v1616 = vpack.i.b16 %v1569, %v1569
    %v1618 = vlaneseq
    %v1619 = vshrl.u32 %v1618, 7
    %v1620 = vsub.s32 0, %v1619
    %v1621 = vrot.slane %v1616, %v1620
    %v1623 = vpack.i.b16 %v1570, %v1570
    %v1625 = vlaneseq
    %v1626 = vshrl.u32 %v1625, 7
    %v1627 = vsub.s32 0, %v1626
    %v1628 = vrot.slane %v1623, %v1627
    %v1630 = vpack.i.b16 %v1571, %v1571
    %v1632 = vlaneseq
    %v1633 = vshrl.u32 %v1632, 7
    %v1634 = vsub.s32 0, %v1633
    %v1635 = vrot.slane %v1630, %v1634
    %v1637 = vpack.i.b16 %v1572, %v1572
    %v1639 = vlaneseq
    %v1640 = vshrl.u32 %v1639, 7
    %v1641 = vsub.s32 0, %v1640
    %v1642 = vrot.slane %v1637, %v1641
    %v1644 = vpack.i.b16 %v1573, %v1573
    %v1646 = vlaneseq
    %v1647 = vshrl.u32 %v1646, 7
    %v1648 = vsub.s32 0, %v1647
    %v1649 = vrot.slane %v1644, %v1648
    %v1651 = vpack.i.b16 %v1574, %v1574
    %v1653 = vlaneseq
    %v1654 = vshrl.u32 %v1653, 7
    %v1655 = vsub.s32 0, %v1654
    %v1656 = vrot.slane %v1651, %v1655
    %v1658 = vpack.i.b16 %v1575, %v1575
    %v1660 = vlaneseq
    %v1661 = vshrl.u32 %v1660, 7
    %v1662 = vsub.s32 0, %v1661
    %v1663 = vrot.slane %v1658, %v1662
    %v1665 = vpack.i.b16 %v1576, %v1576
    %v1667 = vlaneseq
    %v1668 = vshrl.u32 %v1667, 7
    %v1669 = vsub.s32 0, %v1668
    %v1670 = vrot.slane %v1665, %v1669
    %v1672 = vpack.i.b16 %v1577, %v1577
    %v1674 = vlaneseq
    %v1675 = vshrl.u32 %v1674, 7
    %v1676 = vsub.s32 0, %v1675
    %v1677 = vrot.slane %v1672, %v1676
    %v1679 = vpack.i.b16 %v1578, %v1578
    %v1681 = vlaneseq
    %v1682 = vshrl.u32 %v1681, 7
    %v1683 = vsub.s32 0, %v1682
    %v1684 = vrot.slane %v1679, %v1683
    %v1686 = vpack.i.b16 %v1579, %v1579
    %v1688 = vlaneseq
    %v1689 = vshrl.u32 %v1688, 7
    %v1690 = vsub.s32 0, %v1689
    %v1691 = vrot.slane %v1686, %v1690
    %v1692 = vadd.bf16 %v1464, %v1586
    %v1693 = vadd.bf16 %v1465, %v1593
    %v1694 = vadd.bf16 %v1466, %v1600
    %v1695 = vadd.bf16 %v1467, %v1607
    %v1696 = vadd.bf16 %v1468, %v1614
    %v1697 = vadd.bf16 %v1469, %v1621
    %v1698 = vadd.bf16 %v1470, %v1628
    %v1699 = vadd.bf16 %v1471, %v1635
    %v1700 = vadd.bf16 %v1472, %v1642
    %v1701 = vadd.bf16 %v1473, %v1649
    %v1702 = vadd.bf16 %v1474, %v1656
    %v1703 = vadd.bf16 %v1475, %v1663
    %v1704 = vadd.bf16 %v1476, %v1670
    %v1705 = vadd.bf16 %v1477, %v1677
    %v1706 = vadd.bf16 %v1478, %v1684
    %v1707 = vadd.bf16 %v1479, %v1691
    %v1708 = vmax.bf16 %v1692, 0
    %v1709 = vmax.bf16 %v1693, 0
    %v1710 = vmax.bf16 %v1694, 0
    %v1711 = vmax.bf16 %v1695, 0
    %v1712 = vmax.bf16 %v1696, 0
    %v1713 = vmax.bf16 %v1697, 0
    %v1714 = vmax.bf16 %v1698, 0
    %v1715 = vmax.bf16 %v1699, 0
    %v1716 = vmax.bf16 %v1700, 0
    %v1717 = vmax.bf16 %v1701, 0
    %v1718 = vmax.bf16 %v1702, 0
    %v1719 = vmax.bf16 %v1703, 0
    %v1720 = vmax.bf16 %v1704, 0
    %v1721 = vmax.bf16 %v1705, 0
    %v1722 = vmax.bf16 %v1706, 0
    %v1723 = vmax.bf16 %v1707, 0
    %v1724 = vld [vmem:[#allocation13] sm:$0xf]
    %v1725 = vld [vmem:[#allocation13 + $0x4] sm:$0xf]
    %v1726 = vld [vmem:[#allocation13 + $0x8] sm:$0xf]
    %v1727 = vld [vmem:[#allocation13 + $0xc] sm:$0xf]
    %v1728 = vld [vmem:[#allocation13 + $0x10] sm:$0xf]
    %v1729 = vld [vmem:[#allocation13 + $0x14] sm:$0xf]
    %v1730 = vld [vmem:[#allocation13 + $0x18] sm:$0xf]
    %v1731 = vld [vmem:[#allocation13 + $0x1c] sm:$0xf]
    %v1732 = vld [vmem:[#allocation13 + $0x20] sm:$0xf]
    %v1733 = vld [vmem:[#allocation13 + $0x24] sm:$0xf]
    %v1734 = vld [vmem:[#allocation13 + $0x28] sm:$0xf]
    %v1735 = vld [vmem:[#allocation13 + $0x2c] sm:$0xf]
    %v1736 = vld [vmem:[#allocation13 + $0x30] sm:$0xf]
    %v1737 = vld [vmem:[#allocation13 + $0x34] sm:$0xf]
    %v1738 = vld [vmem:[#allocation13 + $0x38] sm:$0xf]
    %v1739 = vld [vmem:[#allocation13 + $0x3c] sm:$0xf]
    %v1740 = vld [vmem:[#allocation13 + $0x40] sm:$0xf]
    %v1741 = vld [vmem:[#allocation13 + $0x44] sm:$0xf]
    %v1742 = vld [vmem:[#allocation13 + $0x48] sm:$0xf]
    %v1743 = vld [vmem:[#allocation13 + $0x4c] sm:$0xf]
    %v1744 = vld [vmem:[#allocation13 + $0x50] sm:$0xf]
    %v1745 = vld [vmem:[#allocation13 + $0x54] sm:$0xf]
    %v1746 = vld [vmem:[#allocation13 + $0x58] sm:$0xf]
    %v1747 = vld [vmem:[#allocation13 + $0x5c] sm:$0xf]
    %v1748 = vld [vmem:[#allocation13 + $0x60] sm:$0xf]
    %v1749 = vld [vmem:[#allocation13 + $0x64] sm:$0xf]
    %v1750 = vld [vmem:[#allocation13 + $0x68] sm:$0xf]
    %v1751 = vld [vmem:[#allocation13 + $0x6c] sm:$0xf]
    %v1752 = vld [vmem:[#allocation13 + $0x70] sm:$0xf]
    %v1753 = vld [vmem:[#allocation13 + $0x74] sm:$0xf]
    %v1754 = vld [vmem:[#allocation13 + $0x78] sm:$0xf]
    %v1755 = vld [vmem:[#allocation13 + $0x7c] sm:$0xf]
    %v1756 = vld [vmem:[#allocation13 + $0x80] sm:$0xf]
    %v1757 = vld [vmem:[#allocation13 + $0x84] sm:$0xf]
    %v1758 = vld [vmem:[#allocation13 + $0x88] sm:$0xf]
    %v1759 = vld [vmem:[#allocation13 + $0x8c] sm:$0xf]
    %v1760 = vld [vmem:[#allocation13 + $0x90] sm:$0xf]
    %v1761 = vld [vmem:[#allocation13 + $0x94] sm:$0xf]
    %v1762 = vld [vmem:[#allocation13 + $0x98] sm:$0xf]
    %v1763 = vld [vmem:[#allocation13 + $0x9c] sm:$0xf]
    %v1764 = vld [vmem:[#allocation13 + $0xa0] sm:$0xf]
    %v1765 = vld [vmem:[#allocation13 + $0xa4] sm:$0xf]
    %v1766 = vld [vmem:[#allocation13 + $0xa8] sm:$0xf]
    %v1767 = vld [vmem:[#allocation13 + $0xac] sm:$0xf]
    %v1768 = vld [vmem:[#allocation13 + $0xb0] sm:$0xf]
    %v1769 = vld [vmem:[#allocation13 + $0xb4] sm:$0xf]
    %v1770 = vld [vmem:[#allocation13 + $0xb8] sm:$0xf]
    %v1771 = vld [vmem:[#allocation13 + $0xbc] sm:$0xf]
    %v1772 = vld [vmem:[#allocation13 + $0xc0] sm:$0xf]
    %v1773 = vld [vmem:[#allocation13 + $0xc4] sm:$0xf]
    %v1774 = vld [vmem:[#allocation13 + $0xc8] sm:$0xf]
    %v1775 = vld [vmem:[#allocation13 + $0xcc] sm:$0xf]
    %v1776 = vld [vmem:[#allocation13 + $0xd0] sm:$0xf]
    %v1777 = vld [vmem:[#allocation13 + $0xd4] sm:$0xf]
    %v1778 = vld [vmem:[#allocation13 + $0xd8] sm:$0xf]
    %v1779 = vld [vmem:[#allocation13 + $0xdc] sm:$0xf]
    %v1780 = vld [vmem:[#allocation13 + $0xe0] sm:$0xf]
    %v1781 = vld [vmem:[#allocation13 + $0xe4] sm:$0xf]
    %v1782 = vld [vmem:[#allocation13 + $0xe8] sm:$0xf]
    %v1783 = vld [vmem:[#allocation13 + $0xec] sm:$0xf]
    %v1784 = vld [vmem:[#allocation13 + $0xf0] sm:$0xf]
    %v1785 = vld [vmem:[#allocation13 + $0xf4] sm:$0xf]
    %v1786 = vld [vmem:[#allocation13 + $0xf8] sm:$0xf]
    %v1787 = vld [vmem:[#allocation13 + $0xfc] sm:$0xf]
    %v1788 = vld [vmem:[#allocation13 + $0x100] sm:$0xf]
    %v1789 = vld [vmem:[#allocation13 + $0x104] sm:$0xf]
    %v1790 = vld [vmem:[#allocation13 + $0x108] sm:$0xf]
    %v1791 = vld [vmem:[#allocation13 + $0x10c] sm:$0xf]
    %v1792 = vld [vmem:[#allocation13 + $0x110] sm:$0xf]
    %v1793 = vld [vmem:[#allocation13 + $0x114] sm:$0xf]
    %v1794 = vld [vmem:[#allocation13 + $0x118] sm:$0xf]
    %v1795 = vld [vmem:[#allocation13 + $0x11c] sm:$0xf]
    %v1796 = vld [vmem:[#allocation13 + $0x120] sm:$0xf]
    %v1797 = vld [vmem:[#allocation13 + $0x124] sm:$0xf]
    %v1798 = vld [vmem:[#allocation13 + $0x128] sm:$0xf]
    %v1799 = vld [vmem:[#allocation13 + $0x12c] sm:$0xf]
    %v1800 = vld [vmem:[#allocation13 + $0x130] sm:$0xf]
    %v1801 = vld [vmem:[#allocation13 + $0x134] sm:$0xf]
    %v1802 = vld [vmem:[#allocation13 + $0x138] sm:$0xf]
    %v1803 = vld [vmem:[#allocation13 + $0x13c] sm:$0xf]
    %v1804 = vld [vmem:[#allocation13 + $0x140] sm:$0xf]
    %v1805 = vld [vmem:[#allocation13 + $0x144] sm:$0xf]
    %v1806 = vld [vmem:[#allocation13 + $0x148] sm:$0xf]
    %v1807 = vld [vmem:[#allocation13 + $0x14c] sm:$0xf]
    %v1808 = vld [vmem:[#allocation13 + $0x150] sm:$0xf]
    %v1809 = vld [vmem:[#allocation13 + $0x154] sm:$0xf]
    %v1810 = vld [vmem:[#allocation13 + $0x158] sm:$0xf]
    %v1811 = vld [vmem:[#allocation13 + $0x15c] sm:$0xf]
    %v1812 = vld [vmem:[#allocation13 + $0x160] sm:$0xf]
    %v1813 = vld [vmem:[#allocation13 + $0x164] sm:$0xf]
    %v1814 = vld [vmem:[#allocation13 + $0x168] sm:$0xf]
    %v1815 = vld [vmem:[#allocation13 + $0x16c] sm:$0xf]
    %v1816 = vld [vmem:[#allocation13 + $0x170] sm:$0xf]
    %v1817 = vld [vmem:[#allocation13 + $0x174] sm:$0xf]
    %v1818 = vld [vmem:[#allocation13 + $0x178] sm:$0xf]
    %v1819 = vld [vmem:[#allocation13 + $0x17c] sm:$0xf]
    %v1820 = vld [vmem:[#allocation13 + $0x180] sm:$0xf]
    %v1821 = vld [vmem:[#allocation13 + $0x184] sm:$0xf]
    %v1822 = vld [vmem:[#allocation13 + $0x188] sm:$0xf]
    %v1823 = vld [vmem:[#allocation13 + $0x18c] sm:$0xf]
    %v1824 = vld [vmem:[#allocation13 + $0x190] sm:$0xf]
    %v1825 = vld [vmem:[#allocation13 + $0x194] sm:$0xf]
    %v1826 = vld [vmem:[#allocation13 + $0x198] sm:$0xf]
    %v1827 = vld [vmem:[#allocation13 + $0x19c] sm:$0xf]
    %v1828 = vld [vmem:[#allocation13 + $0x1a0] sm:$0xf]
    %v1829 = vld [vmem:[#allocation13 + $0x1a4] sm:$0xf]
    %v1830 = vld [vmem:[#allocation13 + $0x1a8] sm:$0xf]
    %v1831 = vld [vmem:[#allocation13 + $0x1ac] sm:$0xf]
    %v1832 = vld [vmem:[#allocation13 + $0x1b0] sm:$0xf]
    %v1833 = vld [vmem:[#allocation13 + $0x1b4] sm:$0xf]
    %v1834 = vld [vmem:[#allocation13 + $0x1b8] sm:$0xf]
    %v1835 = vld [vmem:[#allocation13 + $0x1bc] sm:$0xf]
    %v1836 = vld [vmem:[#allocation13 + $0x1c0] sm:$0xf]
    %v1837 = vld [vmem:[#allocation13 + $0x1c4] sm:$0xf]
    %v1838 = vld [vmem:[#allocation13 + $0x1c8] sm:$0xf]
    %v1839 = vld [vmem:[#allocation13 + $0x1cc] sm:$0xf]
    %v1840 = vld [vmem:[#allocation13 + $0x1d0] sm:$0xf]
    %v1841 = vld [vmem:[#allocation13 + $0x1d4] sm:$0xf]
    %v1842 = vld [vmem:[#allocation13 + $0x1d8] sm:$0xf]
    %v1843 = vld [vmem:[#allocation13 + $0x1dc] sm:$0xf]
    %v1844 = vld [vmem:[#allocation13 + $0x1e0] sm:$0xf]
    %v1845 = vld [vmem:[#allocation13 + $0x1e4] sm:$0xf]
    %v1846 = vld [vmem:[#allocation13 + $0x1e8] sm:$0xf]
    %v1847 = vld [vmem:[#allocation13 + $0x1ec] sm:$0xf]
    %v1848 = vld [vmem:[#allocation13 + $0x1f0] sm:$0xf]
    %v1849 = vld [vmem:[#allocation13 + $0x1f4] sm:$0xf]
    %v1850 = vld [vmem:[#allocation13 + $0x1f8] sm:$0xf]
    %v1851 = vld [vmem:[#allocation13 + $0x1fc] sm:$0xf]
    %v1852 = vld [vmem:[#allocation13 + $0x200] sm:$0xf]
    %v1853 = vld [vmem:[#allocation13 + $0x204] sm:$0xf]
    %v1854 = vld [vmem:[#allocation13 + $0x208] sm:$0xf]
    %v1855 = vld [vmem:[#allocation13 + $0x20c] sm:$0xf]
    %v1856 = vld [vmem:[#allocation13 + $0x210] sm:$0xf]
    %v1857 = vld [vmem:[#allocation13 + $0x214] sm:$0xf]
    %v1858 = vld [vmem:[#allocation13 + $0x218] sm:$0xf]
    %v1859 = vld [vmem:[#allocation13 + $0x21c] sm:$0xf]
    %v1860 = vld [vmem:[#allocation13 + $0x220] sm:$0xf]
    %v1861 = vld [vmem:[#allocation13 + $0x224] sm:$0xf]
    %v1862 = vld [vmem:[#allocation13 + $0x228] sm:$0xf]
    %v1863 = vld [vmem:[#allocation13 + $0x22c] sm:$0xf]
    %v1864 = vld [vmem:[#allocation13 + $0x230] sm:$0xf]
    %v1865 = vld [vmem:[#allocation13 + $0x234] sm:$0xf]
    %v1866 = vld [vmem:[#allocation13 + $0x238] sm:$0xf]
    %v1867 = vld [vmem:[#allocation13 + $0x23c] sm:$0xf]
    %v1868 = vld [vmem:[#allocation13 + $0x240] sm:$0xf]
    %v1869 = vld [vmem:[#allocation13 + $0x244] sm:$0xf]
    %v1870 = vld [vmem:[#allocation13 + $0x248] sm:$0xf]
    %v1871 = vld [vmem:[#allocation13 + $0x24c] sm:$0xf]
    %v1872 = vld [vmem:[#allocation13 + $0x250] sm:$0xf]
    %v1873 = vld [vmem:[#allocation13 + $0x254] sm:$0xf]
    %v1874 = vld [vmem:[#allocation13 + $0x258] sm:$0xf]
    %v1875 = vld [vmem:[#allocation13 + $0x25c] sm:$0xf]
    %v1876 = vld [vmem:[#allocation13 + $0x260] sm:$0xf]
    %v1877 = vld [vmem:[#allocation13 + $0x264] sm:$0xf]
    %v1878 = vld [vmem:[#allocation13 + $0x268] sm:$0xf]
    %v1879 = vld [vmem:[#allocation13 + $0x26c] sm:$0xf]
    %v1880 = vld [vmem:[#allocation13 + $0x270] sm:$0xf]
    %v1881 = vld [vmem:[#allocation13 + $0x274] sm:$0xf]
    %v1882 = vld [vmem:[#allocation13 + $0x278] sm:$0xf]
    %v1883 = vld [vmem:[#allocation13 + $0x27c] sm:$0xf]
    %v1884 = vld [vmem:[#allocation13 + $0x280] sm:$0xf]
    %v1885 = vld [vmem:[#allocation13 + $0x284] sm:$0xf]
    %v1886 = vld [vmem:[#allocation13 + $0x288] sm:$0xf]
    %v1887 = vld [vmem:[#allocation13 + $0x28c] sm:$0xf]
    %v1888 = vld [vmem:[#allocation13 + $0x290] sm:$0xf]
    %v1889 = vld [vmem:[#allocation13 + $0x294] sm:$0xf]
    %v1890 = vld [vmem:[#allocation13 + $0x298] sm:$0xf]
    %v1891 = vld [vmem:[#allocation13 + $0x29c] sm:$0xf]
    %v1892 = vld [vmem:[#allocation13 + $0x2a0] sm:$0xf]
    %v1893 = vld [vmem:[#allocation13 + $0x2a4] sm:$0xf]
    %v1894 = vld [vmem:[#allocation13 + $0x2a8] sm:$0xf]
    %v1895 = vld [vmem:[#allocation13 + $0x2ac] sm:$0xf]
    %v1896 = vld [vmem:[#allocation13 + $0x2b0] sm:$0xf]
    %v1897 = vld [vmem:[#allocation13 + $0x2b4] sm:$0xf]
    %v1898 = vld [vmem:[#allocation13 + $0x2b8] sm:$0xf]
    %v1899 = vld [vmem:[#allocation13 + $0x2bc] sm:$0xf]
    %v1900 = vld [vmem:[#allocation13 + $0x2c0] sm:$0xf]
    %v1901 = vld [vmem:[#allocation13 + $0x2c4] sm:$0xf]
    %v1902 = vld [vmem:[#allocation13 + $0x2c8] sm:$0xf]
    %v1903 = vld [vmem:[#allocation13 + $0x2cc] sm:$0xf]
    %v1904 = vld [vmem:[#allocation13 + $0x2d0] sm:$0xf]
    %v1905 = vld [vmem:[#allocation13 + $0x2d4] sm:$0xf]
    %v1906 = vld [vmem:[#allocation13 + $0x2d8] sm:$0xf]
    %v1907 = vld [vmem:[#allocation13 + $0x2dc] sm:$0xf]
    %v1908 = vld [vmem:[#allocation13 + $0x2e0] sm:$0xf]
    %v1909 = vld [vmem:[#allocation13 + $0x2e4] sm:$0xf]
    %v1910 = vld [vmem:[#allocation13 + $0x2e8] sm:$0xf]
    %v1911 = vld [vmem:[#allocation13 + $0x2ec] sm:$0xf]
    %v1912 = vld [vmem:[#allocation13 + $0x2f0] sm:$0xf]
    %v1913 = vld [vmem:[#allocation13 + $0x2f4] sm:$0xf]
    %v1914 = vld [vmem:[#allocation13 + $0x2f8] sm:$0xf]
    %v1915 = vld [vmem:[#allocation13 + $0x2fc] sm:$0xf]
    %v1916 = vld [vmem:[#allocation13 + $0x300] sm:$0xf]
    %v1917 = vld [vmem:[#allocation13 + $0x304] sm:$0xf]
    %v1918 = vld [vmem:[#allocation13 + $0x308] sm:$0xf]
    %v1919 = vld [vmem:[#allocation13 + $0x30c] sm:$0xf]
    %v1920 = vld [vmem:[#allocation13 + $0x310] sm:$0xf]
    %v1921 = vld [vmem:[#allocation13 + $0x314] sm:$0xf]
    %v1922 = vld [vmem:[#allocation13 + $0x318] sm:$0xf]
    %v1923 = vld [vmem:[#allocation13 + $0x31c] sm:$0xf]
    %v1924 = vld [vmem:[#allocation13 + $0x320] sm:$0xf]
    %v1925 = vld [vmem:[#allocation13 + $0x324] sm:$0xf]
    %v1926 = vld [vmem:[#allocation13 + $0x328] sm:$0xf]
    %v1927 = vld [vmem:[#allocation13 + $0x32c] sm:$0xf]
    %v1928 = vld [vmem:[#allocation13 + $0x330] sm:$0xf]
    %v1929 = vld [vmem:[#allocation13 + $0x334] sm:$0xf]
    %v1930 = vld [vmem:[#allocation13 + $0x338] sm:$0xf]
    %v1931 = vld [vmem:[#allocation13 + $0x33c] sm:$0xf]
    %v1932 = vld [vmem:[#allocation13 + $0x340] sm:$0xf]
    %v1933 = vld [vmem:[#allocation13 + $0x344] sm:$0xf]
    %v1934 = vld [vmem:[#allocation13 + $0x348] sm:$0xf]
    %v1935 = vld [vmem:[#allocation13 + $0x34c] sm:$0xf]
    %v1936 = vld [vmem:[#allocation13 + $0x350] sm:$0xf]
    %v1937 = vld [vmem:[#allocation13 + $0x354] sm:$0xf]
    %v1938 = vld [vmem:[#allocation13 + $0x358] sm:$0xf]
    %v1939 = vld [vmem:[#allocation13 + $0x35c] sm:$0xf]
    %v1940 = vld [vmem:[#allocation13 + $0x360] sm:$0xf]
    %v1941 = vld [vmem:[#allocation13 + $0x364] sm:$0xf]
    %v1942 = vld [vmem:[#allocation13 + $0x368] sm:$0xf]
    %v1943 = vld [vmem:[#allocation13 + $0x36c] sm:$0xf]
    %v1944 = vld [vmem:[#allocation13 + $0x370] sm:$0xf]
    %v1945 = vld [vmem:[#allocation13 + $0x374] sm:$0xf]
    %v1946 = vld [vmem:[#allocation13 + $0x378] sm:$0xf]
    %v1947 = vld [vmem:[#allocation13 + $0x37c] sm:$0xf]
    %v1948 = vld [vmem:[#allocation13 + $0x380] sm:$0xf]
    %v1949 = vld [vmem:[#allocation13 + $0x384] sm:$0xf]
    %v1950 = vld [vmem:[#allocation13 + $0x388] sm:$0xf]
    %v1951 = vld [vmem:[#allocation13 + $0x38c] sm:$0xf]
    %v1952 = vld [vmem:[#allocation13 + $0x390] sm:$0xf]
    %v1953 = vld [vmem:[#allocation13 + $0x394] sm:$0xf]
    %v1954 = vld [vmem:[#allocation13 + $0x398] sm:$0xf]
    %v1955 = vld [vmem:[#allocation13 + $0x39c] sm:$0xf]
    %v1956 = vld [vmem:[#allocation13 + $0x3a0] sm:$0xf]
    %v1957 = vld [vmem:[#allocation13 + $0x3a4] sm:$0xf]
    %v1958 = vld [vmem:[#allocation13 + $0x3a8] sm:$0xf]
    %v1959 = vld [vmem:[#allocation13 + $0x3ac] sm:$0xf]
    %v1960 = vld [vmem:[#allocation13 + $0x3b0] sm:$0xf]
    %v1961 = vld [vmem:[#allocation13 + $0x3b4] sm:$0xf]
    %v1962 = vld [vmem:[#allocation13 + $0x3b8] sm:$0xf]
    %v1963 = vld [vmem:[#allocation13 + $0x3bc] sm:$0xf]
    %v1964 = vld [vmem:[#allocation13 + $0x3c0] sm:$0xf]
    %v1965 = vld [vmem:[#allocation13 + $0x3c4] sm:$0xf]
    %v1966 = vld [vmem:[#allocation13 + $0x3c8] sm:$0xf]
    %v1967 = vld [vmem:[#allocation13 + $0x3cc] sm:$0xf]
    %v1968 = vld [vmem:[#allocation13 + $0x3d0] sm:$0xf]
    %v1969 = vld [vmem:[#allocation13 + $0x3d4] sm:$0xf]
    %v1970 = vld [vmem:[#allocation13 + $0x3d8] sm:$0xf]
    %v1971 = vld [vmem:[#allocation13 + $0x3dc] sm:$0xf]
    %v1972 = vld [vmem:[#allocation13 + $0x3e0] sm:$0xf]
    %v1973 = vld [vmem:[#allocation13 + $0x3e4] sm:$0xf]
    %v1974 = vld [vmem:[#allocation13 + $0x3e8] sm:$0xf]
    %v1975 = vld [vmem:[#allocation13 + $0x3ec] sm:$0xf]
    %v1976 = vld [vmem:[#allocation13 + $0x3f0] sm:$0xf]
    %v1977 = vld [vmem:[#allocation13 + $0x3f4] sm:$0xf]
    %v1978 = vld [vmem:[#allocation13 + $0x3f8] sm:$0xf]
    %v1979 = vld [vmem:[#allocation13 + $0x3fc] sm:$0xf]
    %v1980 = vlaneseq
    %v1981 = vshrl.u32 %v1980, 7
    %v1982 = vsub.s32 0, %v1981
    %v1983 = vrot.slane %v230, %v1982
    %v2240 = vunpack.c.l.b16 %v1724
    %v2241 = vunpack.c.l.b16 %v1725
    %v2242 = vunpack.c.l.b16 %v1726
    %v2243 = vunpack.c.l.b16 %v1727
    %v2244 = vunpack.c.l.b16 %v1728
    %v2245 = vunpack.c.l.b16 %v1729
    %v2246 = vunpack.c.l.b16 %v1730
    %v2247 = vunpack.c.l.b16 %v1731
    %v2248 = vunpack.c.l.b16 %v1732
    %v2249 = vunpack.c.l.b16 %v1733
    %v2250 = vunpack.c.l.b16 %v1734
    %v2251 = vunpack.c.l.b16 %v1735
    %v2252 = vunpack.c.l.b16 %v1736
    %v2253 = vunpack.c.l.b16 %v1737
    %v2254 = vunpack.c.l.b16 %v1738
    %v2255 = vunpack.c.l.b16 %v1739
    %v2256 = vunpack.c.l.b16 %v1740
    %v2257 = vunpack.c.l.b16 %v1741
    %v2258 = vunpack.c.l.b16 %v1742
    %v2259 = vunpack.c.l.b16 %v1743
    %v2260 = vunpack.c.l.b16 %v1744
    %v2261 = vunpack.c.l.b16 %v1745
    %v2262 = vunpack.c.l.b16 %v1746
    %v2263 = vunpack.c.l.b16 %v1747
    %v2264 = vunpack.c.l.b16 %v1748
    %v2265 = vunpack.c.l.b16 %v1749
    %v2266 = vunpack.c.l.b16 %v1750
    %v2267 = vunpack.c.l.b16 %v1751
    %v2268 = vunpack.c.l.b16 %v1752
    %v2269 = vunpack.c.l.b16 %v1753
    %v2270 = vunpack.c.l.b16 %v1754
    %v2271 = vunpack.c.l.b16 %v1755
    %v2272 = vunpack.c.l.b16 %v1756
    %v2273 = vunpack.c.l.b16 %v1757
    %v2274 = vunpack.c.l.b16 %v1758
    %v2275 = vunpack.c.l.b16 %v1759
    %v2276 = vunpack.c.l.b16 %v1760
    %v2277 = vunpack.c.l.b16 %v1761
    %v2278 = vunpack.c.l.b16 %v1762
    %v2279 = vunpack.c.l.b16 %v1763
    %v2280 = vunpack.c.l.b16 %v1764
    %v2281 = vunpack.c.l.b16 %v1765
    %v2282 = vunpack.c.l.b16 %v1766
    %v2283 = vunpack.c.l.b16 %v1767
    %v2284 = vunpack.c.l.b16 %v1768
    %v2285 = vunpack.c.l.b16 %v1769
    %v2286 = vunpack.c.l.b16 %v1770
    %v2287 = vunpack.c.l.b16 %v1771
    %v2288 = vunpack.c.l.b16 %v1772
    %v2289 = vunpack.c.l.b16 %v1773
    %v2290 = vunpack.c.l.b16 %v1774
    %v2291 = vunpack.c.l.b16 %v1775
    %v2292 = vunpack.c.l.b16 %v1776
    %v2293 = vunpack.c.l.b16 %v1777
    %v2294 = vunpack.c.l.b16 %v1778
    %v2295 = vunpack.c.l.b16 %v1779
    %v2296 = vunpack.c.l.b16 %v1780
    %v2297 = vunpack.c.l.b16 %v1781
    %v2298 = vunpack.c.l.b16 %v1782
    %v2299 = vunpack.c.l.b16 %v1783
    %v2300 = vunpack.c.l.b16 %v1784
    %v2301 = vunpack.c.l.b16 %v1785
    %v2302 = vunpack.c.l.b16 %v1786
    %v2303 = vunpack.c.l.b16 %v1787
    %v2304 = vunpack.c.l.b16 %v1788
    %v2305 = vunpack.c.l.b16 %v1789
    %v2306 = vunpack.c.l.b16 %v1790
    %v2307 = vunpack.c.l.b16 %v1791
    %v2308 = vunpack.c.l.b16 %v1792
    %v2309 = vunpack.c.l.b16 %v1793
    %v2310 = vunpack.c.l.b16 %v1794
    %v2311 = vunpack.c.l.b16 %v1795
    %v2312 = vunpack.c.l.b16 %v1796
    %v2313 = vunpack.c.l.b16 %v1797
    %v2314 = vunpack.c.l.b16 %v1798
    %v2315 = vunpack.c.l.b16 %v1799
    %v2316 = vunpack.c.l.b16 %v1800
    %v2317 = vunpack.c.l.b16 %v1801
    %v2318 = vunpack.c.l.b16 %v1802
    %v2319 = vunpack.c.l.b16 %v1803
    %v2320 = vunpack.c.l.b16 %v1804
    %v2321 = vunpack.c.l.b16 %v1805
    %v2322 = vunpack.c.l.b16 %v1806
    %v2323 = vunpack.c.l.b16 %v1807
    %v2324 = vunpack.c.l.b16 %v1808
    %v2325 = vunpack.c.l.b16 %v1809
    %v2326 = vunpack.c.l.b16 %v1810
    %v2327 = vunpack.c.l.b16 %v1811
    %v2328 = vunpack.c.l.b16 %v1812
    %v2329 = vunpack.c.l.b16 %v1813
    %v2330 = vunpack.c.l.b16 %v1814
    %v2331 = vunpack.c.l.b16 %v1815
    %v2332 = vunpack.c.l.b16 %v1816
    %v2333 = vunpack.c.l.b16 %v1817
    %v2334 = vunpack.c.l.b16 %v1818
    %v2335 = vunpack.c.l.b16 %v1819
    %v2336 = vunpack.c.l.b16 %v1820
    %v2337 = vunpack.c.l.b16 %v1821
    %v2338 = vunpack.c.l.b16 %v1822
    %v2339 = vunpack.c.l.b16 %v1823
    %v2340 = vunpack.c.l.b16 %v1824
    %v2341 = vunpack.c.l.b16 %v1825
    %v2342 = vunpack.c.l.b16 %v1826
    %v2343 = vunpack.c.l.b16 %v1827
    %v2344 = vunpack.c.l.b16 %v1828
    %v2345 = vunpack.c.l.b16 %v1829
    %v2346 = vunpack.c.l.b16 %v1830
    %v2347 = vunpack.c.l.b16 %v1831
    %v2348 = vunpack.c.l.b16 %v1832
    %v2349 = vunpack.c.l.b16 %v1833
    %v2350 = vunpack.c.l.b16 %v1834
    %v2351 = vunpack.c.l.b16 %v1835
    %v2352 = vunpack.c.l.b16 %v1836
    %v2353 = vunpack.c.l.b16 %v1837
    %v2354 = vunpack.c.l.b16 %v1838
    %v2355 = vunpack.c.l.b16 %v1839
    %v2356 = vunpack.c.l.b16 %v1840
    %v2357 = vunpack.c.l.b16 %v1841
    %v2358 = vunpack.c.l.b16 %v1842
    %v2359 = vunpack.c.l.b16 %v1843
    %v2360 = vunpack.c.l.b16 %v1844
    %v2361 = vunpack.c.l.b16 %v1845
    %v2362 = vunpack.c.l.b16 %v1846
    %v2363 = vunpack.c.l.b16 %v1847
    %v2364 = vunpack.c.l.b16 %v1848
    %v2365 = vunpack.c.l.b16 %v1849
    %v2366 = vunpack.c.l.b16 %v1850
    %v2367 = vunpack.c.l.b16 %v1851
    %v2368 = vunpack.c.l.b16 %v1852
    %v2369 = vunpack.c.l.b16 %v1853
    %v2370 = vunpack.c.l.b16 %v1854
    %v2371 = vunpack.c.l.b16 %v1855
    %v2372 = vunpack.c.l.b16 %v1856
    %v2373 = vunpack.c.l.b16 %v1857
    %v2374 = vunpack.c.l.b16 %v1858
    %v2375 = vunpack.c.l.b16 %v1859
    %v2376 = vunpack.c.l.b16 %v1860
    %v2377 = vunpack.c.l.b16 %v1861
    %v2378 = vunpack.c.l.b16 %v1862
    %v2379 = vunpack.c.l.b16 %v1863
    %v2380 = vunpack.c.l.b16 %v1864
    %v2381 = vunpack.c.l.b16 %v1865
    %v2382 = vunpack.c.l.b16 %v1866
    %v2383 = vunpack.c.l.b16 %v1867
    %v2384 = vunpack.c.l.b16 %v1868
    %v2385 = vunpack.c.l.b16 %v1869
    %v2386 = vunpack.c.l.b16 %v1870
    %v2387 = vunpack.c.l.b16 %v1871
    %v2388 = vunpack.c.l.b16 %v1872
    %v2389 = vunpack.c.l.b16 %v1873
    %v2390 = vunpack.c.l.b16 %v1874
    %v2391 = vunpack.c.l.b16 %v1875
    %v2392 = vunpack.c.l.b16 %v1876
    %v2393 = vunpack.c.l.b16 %v1877
    %v2394 = vunpack.c.l.b16 %v1878
    %v2395 = vunpack.c.l.b16 %v1879
    %v2396 = vunpack.c.l.b16 %v1880
    %v2397 = vunpack.c.l.b16 %v1881
    %v2398 = vunpack.c.l.b16 %v1882
    %v2399 = vunpack.c.l.b16 %v1883
    %v2400 = vunpack.c.l.b16 %v1884
    %v2401 = vunpack.c.l.b16 %v1885
    %v2402 = vunpack.c.l.b16 %v1886
    %v2403 = vunpack.c.l.b16 %v1887
    %v2404 = vunpack.c.l.b16 %v1888
    %v2405 = vunpack.c.l.b16 %v1889
    %v2406 = vunpack.c.l.b16 %v1890
    %v2407 = vunpack.c.l.b16 %v1891
    %v2408 = vunpack.c.l.b16 %v1892
    %v2409 = vunpack.c.l.b16 %v1893
    %v2410 = vunpack.c.l.b16 %v1894
    %v2411 = vunpack.c.l.b16 %v1895
    %v2412 = vunpack.c.l.b16 %v1896
    %v2413 = vunpack.c.l.b16 %v1897
    %v2414 = vunpack.c.l.b16 %v1898
    %v2415 = vunpack.c.l.b16 %v1899
    %v2416 = vunpack.c.l.b16 %v1900
    %v2417 = vunpack.c.l.b16 %v1901
    %v2418 = vunpack.c.l.b16 %v1902
    %v2419 = vunpack.c.l.b16 %v1903
    %v2420 = vunpack.c.l.b16 %v1904
    %v2421 = vunpack.c.l.b16 %v1905
    %v2422 = vunpack.c.l.b16 %v1906
    %v2423 = vunpack.c.l.b16 %v1907
    %v2424 = vunpack.c.l.b16 %v1908
    %v2425 = vunpack.c.l.b16 %v1909
    %v2426 = vunpack.c.l.b16 %v1910
    %v2427 = vunpack.c.l.b16 %v1911
    %v2428 = vunpack.c.l.b16 %v1912
    %v2429 = vunpack.c.l.b16 %v1913
    %v2430 = vunpack.c.l.b16 %v1914
    %v2431 = vunpack.c.l.b16 %v1915
    %v2432 = vunpack.c.l.b16 %v1916
    %v2433 = vunpack.c.l.b16 %v1917
    %v2434 = vunpack.c.l.b16 %v1918
    %v2435 = vunpack.c.l.b16 %v1919
    %v2436 = vunpack.c.l.b16 %v1920
    %v2437 = vunpack.c.l.b16 %v1921
    %v2438 = vunpack.c.l.b16 %v1922
    %v2439 = vunpack.c.l.b16 %v1923
    %v2440 = vunpack.c.l.b16 %v1924
    %v2441 = vunpack.c.l.b16 %v1925
    %v2442 = vunpack.c.l.b16 %v1926
    %v2443 = vunpack.c.l.b16 %v1927
    %v2444 = vunpack.c.l.b16 %v1928
    %v2445 = vunpack.c.l.b16 %v1929
    %v2446 = vunpack.c.l.b16 %v1930
    %v2447 = vunpack.c.l.b16 %v1931
    %v2448 = vunpack.c.l.b16 %v1932
    %v2449 = vunpack.c.l.b16 %v1933
    %v2450 = vunpack.c.l.b16 %v1934
    %v2451 = vunpack.c.l.b16 %v1935
    %v2452 = vunpack.c.l.b16 %v1936
    %v2453 = vunpack.c.l.b16 %v1937
    %v2454 = vunpack.c.l.b16 %v1938
    %v2455 = vunpack.c.l.b16 %v1939
    %v2456 = vunpack.c.l.b16 %v1940
    %v2457 = vunpack.c.l.b16 %v1941
    %v2458 = vunpack.c.l.b16 %v1942
    %v2459 = vunpack.c.l.b16 %v1943
    %v2460 = vunpack.c.l.b16 %v1944
    %v2461 = vunpack.c.l.b16 %v1945
    %v2462 = vunpack.c.l.b16 %v1946
    %v2463 = vunpack.c.l.b16 %v1947
    %v2464 = vunpack.c.l.b16 %v1948
    %v2465 = vunpack.c.l.b16 %v1949
    %v2466 = vunpack.c.l.b16 %v1950
    %v2467 = vunpack.c.l.b16 %v1951
    %v2468 = vunpack.c.l.b16 %v1952
    %v2469 = vunpack.c.l.b16 %v1953
    %v2470 = vunpack.c.l.b16 %v1954
    %v2471 = vunpack.c.l.b16 %v1955
    %v2472 = vunpack.c.l.b16 %v1956
    %v2473 = vunpack.c.l.b16 %v1957
    %v2474 = vunpack.c.l.b16 %v1958
    %v2475 = vunpack.c.l.b16 %v1959
    %v2476 = vunpack.c.l.b16 %v1960
    %v2477 = vunpack.c.l.b16 %v1961
    %v2478 = vunpack.c.l.b16 %v1962
    %v2479 = vunpack.c.l.b16 %v1963
    %v2480 = vunpack.c.l.b16 %v1964
    %v2481 = vunpack.c.l.b16 %v1965
    %v2482 = vunpack.c.l.b16 %v1966
    %v2483 = vunpack.c.l.b16 %v1967
    %v2484 = vunpack.c.l.b16 %v1968
    %v2485 = vunpack.c.l.b16 %v1969
    %v2486 = vunpack.c.l.b16 %v1970
    %v2487 = vunpack.c.l.b16 %v1971
    %v2488 = vunpack.c.l.b16 %v1972
    %v2489 = vunpack.c.l.b16 %v1973
    %v2490 = vunpack.c.l.b16 %v1974
    %v2491 = vunpack.c.l.b16 %v1975
    %v2492 = vunpack.c.l.b16 %v1976
    %v2493 = vunpack.c.l.b16 %v1977
    %v2494 = vunpack.c.l.b16 %v1978
    %v2495 = vunpack.c.l.b16 %v1979
    %v2496 = vpack.c.b16 %v2241, %v2240
    %v2497 = vpack.c.b16 %v2243, %v2242
    %v2498 = vpack.c.b16 %v2245, %v2244
    %v2499 = vpack.c.b16 %v2247, %v2246
    %v2500 = vpack.c.b16 %v2249, %v2248
    %v2501 = vpack.c.b16 %v2251, %v2250
    %v2502 = vpack.c.b16 %v2253, %v2252
    %v2503 = vpack.c.b16 %v2255, %v2254
    %v2504 = vpack.c.b16 %v2257, %v2256
    %v2505 = vpack.c.b16 %v2259, %v2258
    %v2506 = vpack.c.b16 %v2261, %v2260
    %v2507 = vpack.c.b16 %v2263, %v2262
    %v2508 = vpack.c.b16 %v2265, %v2264
    %v2509 = vpack.c.b16 %v2267, %v2266
    %v2510 = vpack.c.b16 %v2269, %v2268
    %v2511 = vpack.c.b16 %v2271, %v2270
    %v2512 = vpack.c.b16 %v2273, %v2272
    %v2513 = vpack.c.b16 %v2275, %v2274
    %v2514 = vpack.c.b16 %v2277, %v2276
    %v2515 = vpack.c.b16 %v2279, %v2278
    %v2516 = vpack.c.b16 %v2281, %v2280
    %v2517 = vpack.c.b16 %v2283, %v2282
    %v2518 = vpack.c.b16 %v2285, %v2284
    %v2519 = vpack.c.b16 %v2287, %v2286
    %v2520 = vpack.c.b16 %v2289, %v2288
    %v2521 = vpack.c.b16 %v2291, %v2290
    %v2522 = vpack.c.b16 %v2293, %v2292
    %v2523 = vpack.c.b16 %v2295, %v2294
    %v2524 = vpack.c.b16 %v2297, %v2296
    %v2525 = vpack.c.b16 %v2299, %v2298
    %v2526 = vpack.c.b16 %v2301, %v2300
    %v2527 = vpack.c.b16 %v2303, %v2302
    %v2528 = vpack.c.b16 %v2305, %v2304
    %v2529 = vpack.c.b16 %v2307, %v2306
    %v2530 = vpack.c.b16 %v2309, %v2308
    %v2531 = vpack.c.b16 %v2311, %v2310
    %v2532 = vpack.c.b16 %v2313, %v2312
    %v2533 = vpack.c.b16 %v2315, %v2314
    %v2534 = vpack.c.b16 %v2317, %v2316
    %v2535 = vpack.c.b16 %v2319, %v2318
    %v2536 = vpack.c.b16 %v2321, %v2320
    %v2537 = vpack.c.b16 %v2323, %v2322
    %v2538 = vpack.c.b16 %v2325, %v2324
    %v2539 = vpack.c.b16 %v2327, %v2326
    %v2540 = vpack.c.b16 %v2329, %v2328
    %v2541 = vpack.c.b16 %v2331, %v2330
    %v2542 = vpack.c.b16 %v2333, %v2332
    %v2543 = vpack.c.b16 %v2335, %v2334
    %v2544 = vpack.c.b16 %v2337, %v2336
    %v2545 = vpack.c.b16 %v2339, %v2338
    %v2546 = vpack.c.b16 %v2341, %v2340
    %v2547 = vpack.c.b16 %v2343, %v2342
    %v2548 = vpack.c.b16 %v2345, %v2344
    %v2549 = vpack.c.b16 %v2347, %v2346
    %v2550 = vpack.c.b16 %v2349, %v2348
    %v2551 = vpack.c.b16 %v2351, %v2350
    %v2552 = vpack.c.b16 %v2353, %v2352
    %v2553 = vpack.c.b16 %v2355, %v2354
    %v2554 = vpack.c.b16 %v2357, %v2356
    %v2555 = vpack.c.b16 %v2359, %v2358
    %v2556 = vpack.c.b16 %v2361, %v2360
    %v2557 = vpack.c.b16 %v2363, %v2362
    %v2558 = vpack.c.b16 %v2365, %v2364
    %v2559 = vpack.c.b16 %v2367, %v2366
    %v2560 = vpack.c.b16 %v2369, %v2368
    %v2561 = vpack.c.b16 %v2371, %v2370
    %v2562 = vpack.c.b16 %v2373, %v2372
    %v2563 = vpack.c.b16 %v2375, %v2374
    %v2564 = vpack.c.b16 %v2377, %v2376
    %v2565 = vpack.c.b16 %v2379, %v2378
    %v2566 = vpack.c.b16 %v2381, %v2380
    %v2567 = vpack.c.b16 %v2383, %v2382
    %v2568 = vpack.c.b16 %v2385, %v2384
    %v2569 = vpack.c.b16 %v2387, %v2386
    %v2570 = vpack.c.b16 %v2389, %v2388
    %v2571 = vpack.c.b16 %v2391, %v2390
    %v2572 = vpack.c.b16 %v2393, %v2392
    %v2573 = vpack.c.b16 %v2395, %v2394
    %v2574 = vpack.c.b16 %v2397, %v2396
    %v2575 = vpack.c.b16 %v2399, %v2398
    %v2576 = vpack.c.b16 %v2401, %v2400
    %v2577 = vpack.c.b16 %v2403, %v2402
    %v2578 = vpack.c.b16 %v2405, %v2404
    %v2579 = vpack.c.b16 %v2407, %v2406
    %v2580 = vpack.c.b16 %v2409, %v2408
    %v2581 = vpack.c.b16 %v2411, %v2410
    %v2582 = vpack.c.b16 %v2413, %v2412
    %v2583 = vpack.c.b16 %v2415, %v2414
    %v2584 = vpack.c.b16 %v2417, %v2416
    %v2585 = vpack.c.b16 %v2419, %v2418
    %v2586 = vpack.c.b16 %v2421, %v2420
    %v2587 = vpack.c.b16 %v2423, %v2422
    %v2588 = vpack.c.b16 %v2425, %v2424
    %v2589 = vpack.c.b16 %v2427, %v2426
    %v2590 = vpack.c.b16 %v2429, %v2428
    %v2591 = vpack.c.b16 %v2431, %v2430
    %v2592 = vpack.c.b16 %v2433, %v2432
    %v2593 = vpack.c.b16 %v2435, %v2434
    %v2594 = vpack.c.b16 %v2437, %v2436
    %v2595 = vpack.c.b16 %v2439, %v2438
    %v2596 = vpack.c.b16 %v2441, %v2440
    %v2597 = vpack.c.b16 %v2443, %v2442
    %v2598 = vpack.c.b16 %v2445, %v2444
    %v2599 = vpack.c.b16 %v2447, %v2446
    %v2600 = vpack.c.b16 %v2449, %v2448
    %v2601 = vpack.c.b16 %v2451, %v2450
    %v2602 = vpack.c.b16 %v2453, %v2452
    %v2603 = vpack.c.b16 %v2455, %v2454
    %v2604 = vpack.c.b16 %v2457, %v2456
    %v2605 = vpack.c.b16 %v2459, %v2458
    %v2606 = vpack.c.b16 %v2461, %v2460
    %v2607 = vpack.c.b16 %v2463, %v2462
    %v2608 = vpack.c.b16 %v2465, %v2464
    %v2609 = vpack.c.b16 %v2467, %v2466
    %v2610 = vpack.c.b16 %v2469, %v2468
    %v2611 = vpack.c.b16 %v2471, %v2470
    %v2612 = vpack.c.b16 %v2473, %v2472
    %v2613 = vpack.c.b16 %v2475, %v2474
    %v2614 = vpack.c.b16 %v2477, %v2476
    %v2615 = vpack.c.b16 %v2479, %v2478
    %v2616 = vpack.c.b16 %v2481, %v2480
    %v2617 = vpack.c.b16 %v2483, %v2482
    %v2618 = vpack.c.b16 %v2485, %v2484
    %v2619 = vpack.c.b16 %v2487, %v2486
    %v2620 = vpack.c.b16 %v2489, %v2488
    %v2621 = vpack.c.b16 %v2491, %v2490
    %v2622 = vpack.c.b16 %v2493, %v2492
    %v2623 = vpack.c.b16 %v2495, %v2494
    %2752 = vmatprep.subr.bf16.mxu0 0
    %2753 = vmatpush1.bf16.msra.mxu0 %v2496
    %2754 = vmatprep.subr.bf16.mxu0 0
    %2755 = vmatpush1.bf16.msra.mxu0 %v2497
    %2756 = vmatprep.subr.bf16.mxu0 0
    %2757 = vmatpush1.bf16.msra.mxu0 %v2498
    %2758 = vmatprep.subr.bf16.mxu0 0
    %2759 = vmatpush1.bf16.msra.mxu0 %v2499
    %2760 = vmatprep.subr.bf16.mxu0 0
    %2761 = vmatpush1.bf16.msra.mxu0 %v2500
    %2762 = vmatprep.subr.bf16.mxu0 0
    %2763 = vmatpush1.bf16.msra.mxu0 %v2501
    %2764 = vmatprep.subr.bf16.mxu0 0
    %2765 = vmatpush1.bf16.msra.mxu0 %v2502
    %2766 = vmatprep.subr.bf16.mxu0 0
    %2767 = vmatpush1.bf16.msra.mxu0 %v2503
    %2768 = vmatprep.subr.bf16.mxu0 0
    %2769 = vmatpush1.bf16.msra.mxu0 %v2504
    %2770 = vmatprep.subr.bf16.mxu0 0
    %2771 = vmatpush1.bf16.msra.mxu0 %v2505
    %2772 = vmatprep.subr.bf16.mxu0 0
    %2773 = vmatpush1.bf16.msra.mxu0 %v2506
    %2774 = vmatprep.subr.bf16.mxu0 0
    %2775 = vmatpush1.bf16.msra.mxu0 %v2507
    %2776 = vmatprep.subr.bf16.mxu0 0
    %2777 = vmatpush1.bf16.msra.mxu0 %v2508
    %2778 = vmatprep.subr.bf16.mxu0 0
    %2779 = vmatpush1.bf16.msra.mxu0 %v2509
    %2780 = vmatprep.subr.bf16.mxu0 0
    %2781 = vmatpush1.bf16.msra.mxu0 %v2510
    %2782 = vmatprep.subr.bf16.mxu0 0
    %2783 = vmatpush1.bf16.msra.mxu0 %v2511
    %2784 = vmatprep.mubr.bf16.mxu0 %v1709
    %2785 = vmatmul.mubr.bf16.gmra.mrb[0].mxu0 %v1708
    %v2786 = vpop.f32.mrb[0].mxu0
    %v2787 = vadd.f32 %v1983, %v2786
    %v2788 = vpop.f32.mrb[0].mxu0
    %v2789 = vpop.f32.mrb[0].mxu0
    %v2790 = vpop.f32.mrb[0].mxu0
    %2791 = vdwg.mxu0
    %2792 = vmatprep.subr.bf16.mxu0 0
    %2793 = vmatpush1.bf16.msra.mxu0 %v2512
    %2794 = vmatprep.subr.bf16.mxu0 0
    %2795 = vmatpush1.bf16.msra.mxu0 %v2513
    %2796 = vmatprep.subr.bf16.mxu0 0
    %2797 = vmatpush1.bf16.msra.mxu0 %v2514
    %2798 = vmatprep.subr.bf16.mxu0 0
    %2799 = vmatpush1.bf16.msra.mxu0 %v2515
    %2800 = vmatprep.subr.bf16.mxu0 0
    %2801 = vmatpush1.bf16.msra.mxu0 %v2516
    %2802 = vmatprep.subr.bf16.mxu0 0
    %2803 = vmatpush1.bf16.msra.mxu0 %v2517
    %2804 = vmatprep.subr.bf16.mxu0 0
    %2805 = vmatpush1.bf16.msra.mxu0 %v2518
    %2806 = vmatprep.subr.bf16.mxu0 0
    %2807 = vmatpush1.bf16.msra.mxu0 %v2519
    %2808 = vmatprep.subr.bf16.mxu0 0
    %2809 = vmatpush1.bf16.msra.mxu0 %v2520
    %2810 = vmatprep.subr.bf16.mxu0 0
    %2811 = vmatpush1.bf16.msra.mxu0 %v2521
    %2812 = vmatprep.subr.bf16.mxu0 0
    %2813 = vmatpush1.bf16.msra.mxu0 %v2522
    %2814 = vmatprep.subr.bf16.mxu0 0
    %2815 = vmatpush1.bf16.msra.mxu0 %v2523
    %2816 = vmatprep.subr.bf16.mxu0 0
    %2817 = vmatpush1.bf16.msra.mxu0 %v2524
    %2818 = vmatprep.subr.bf16.mxu0 0
    %2819 = vmatpush1.bf16.msra.mxu0 %v2525
    %2820 = vmatprep.subr.bf16.mxu0 0
    %2821 = vmatpush1.bf16.msra.mxu0 %v2526
    %2822 = vmatprep.subr.bf16.mxu0 0
    %2823 = vmatpush1.bf16.msra.mxu0 %v2527
    %2824 = vmatprep.mubr.bf16.mxu0 %v1711
    %2825 = vmatmul.mubr.bf16.gmra.mrb[0].mxu0 %v1710
    %v2826 = vpop.f32.mrb[0].mxu0
    %v2827 = vadd.f32 %v2787, %v2826
    %v2828 = vpop.f32.mrb[0].mxu0
    %v2829 = vpop.f32.mrb[0].mxu0
    %v2830 = vpop.f32.mrb[0].mxu0
    %2831 = vdwg.mxu0
    %2832 = vmatprep.subr.bf16.mxu0 0
    %2833 = vmatpush1.bf16.msra.mxu0 %v2528
    %2834 = vmatprep.subr.bf16.mxu0 0
    %2835 = vmatpush1.bf16.msra.mxu0 %v2529
    %2836 = vmatprep.subr.bf16.mxu0 0
    %2837 = vmatpush1.bf16.msra.mxu0 %v2530
    %2838 = vmatprep.subr.bf16.mxu0 0
    %2839 = vmatpush1.bf16.msra.mxu0 %v2531
    %2840 = vmatprep.subr.bf16.mxu0 0
    %2841 = vmatpush1.bf16.msra.mxu0 %v2532
    %2842 = vmatprep.subr.bf16.mxu0 0
    %2843 = vmatpush1.bf16.msra.mxu0 %v2533
    %2844 = vmatprep.subr.bf16.mxu0 0
    %2845 = vmatpush1.bf16.msra.mxu0 %v2534
    %2846 = vmatprep.subr.bf16.mxu0 0
    %2847 = vmatpush1.bf16.msra.mxu0 %v2535
    %2848 = vmatprep.subr.bf16.mxu0 0
    %2849 = vmatpush1.bf16.msra.mxu0 %v2536
    %2850 = vmatprep.subr.bf16.mxu0 0
    %2851 = vmatpush1.bf16.msra.mxu0 %v2537
    %2852 = vmatprep.subr.bf16.mxu0 0
    %2853 = vmatpush1.bf16.msra.mxu0 %v2538
    %2854 = vmatprep.subr.bf16.mxu0 0
    %2855 = vmatpush1.bf16.msra.mxu0 %v2539
    %2856 = vmatprep.subr.bf16.mxu0 0
    %2857 = vmatpush1.bf16.msra.mxu0 %v2540
    %2858 = vmatprep.subr.bf16.mxu0 0
    %2859 = vmatpush1.bf16.msra.mxu0 %v2541
    %2860 = vmatprep.subr.bf16.mxu0 0
    %2861 = vmatpush1.bf16.msra.mxu0 %v2542
    %2862 = vmatprep.subr.bf16.mxu0 0
    %2863 = vmatpush1.bf16.msra.mxu0 %v2543
    %2864 = vmatprep.mubr.bf16.mxu0 %v1713
    %2865 = vmatmul.mubr.bf16.gmra.mrb[0].mxu0 %v1712
    %v2866 = vpop.f32.mrb[0].mxu0
    %v2867 = vadd.f32 %v2827, %v2866
    %v2868 = vpop.f32.mrb[0].mxu0
    %v2869 = vpop.f32.mrb[0].mxu0
    %v2870 = vpop.f32.mrb[0].mxu0
    %2871 = vdwg.mxu0
    %2872 = vmatprep.subr.bf16.mxu0 0
    %2873 = vmatpush1.bf16.msra.mxu0 %v2544
    %2874 = vmatprep.subr.bf16.mxu0 0
    %2875 = vmatpush1.bf16.msra.mxu0 %v2545
    %2876 = vmatprep.subr.bf16.mxu0 0
    %2877 = vmatpush1.bf16.msra.mxu0 %v2546
    %2878 = vmatprep.subr.bf16.mxu0 0
    %2879 = vmatpush1.bf16.msra.mxu0 %v2547
    %2880 = vmatprep.subr.bf16.mxu0 0
    %2881 = vmatpush1.bf16.msra.mxu0 %v2548
    %2882 = vmatprep.subr.bf16.mxu0 0
    %2883 = vmatpush1.bf16.msra.mxu0 %v2549
    %2884 = vmatprep.subr.bf16.mxu0 0
    %2885 = vmatpush1.bf16.msra.mxu0 %v2550
    %2886 = vmatprep.subr.bf16.mxu0 0
    %2887 = vmatpush1.bf16.msra.mxu0 %v2551
    %2888 = vmatprep.subr.bf16.mxu0 0
    %2889 = vmatpush1.bf16.msra.mxu0 %v2552
    %2890 = vmatprep.subr.bf16.mxu0 0
    %2891 = vmatpush1.bf16.msra.mxu0 %v2553
    %2892 = vmatprep.subr.bf16.mxu0 0
    %2893 = vmatpush1.bf16.msra.mxu0 %v2554
    %2894 = vmatprep.subr.bf16.mxu0 0
    %2895 = vmatpush1.bf16.msra.mxu0 %v2555
    %2896 = vmatprep.subr.bf16.mxu0 0
    %2897 = vmatpush1.bf16.msra.mxu0 %v2556
    %2898 = vmatprep.subr.bf16.mxu0 0
    %2899 = vmatpush1.bf16.msra.mxu0 %v2557
    %2900 = vmatprep.subr.bf16.mxu0 0
    %2901 = vmatpush1.bf16.msra.mxu0 %v2558
    %2902 = vmatprep.subr.bf16.mxu0 0
    %2903 = vmatpush1.bf16.msra.mxu0 %v2559
    %2904 = vmatprep.mubr.bf16.mxu0 %v1715
    %2905 = vmatmul.mubr.bf16.gmra.mrb[0].mxu0 %v1714
    %v2906 = vpop.f32.mrb[0].mxu0
    %v2907 = vadd.f32 %v2867, %v2906
    %v2908 = vpop.f32.mrb[0].mxu0
    %v2909 = vpop.f32.mrb[0].mxu0
    %v2910 = vpop.f32.mrb[0].mxu0
    %2911 = vdwg.mxu0
    %2912 = vmatprep.subr.bf16.mxu0 0
    %2913 = vmatpush1.bf16.msra.mxu0 %v2560
    %2914 = vmatprep.subr.bf16.mxu0 0
    %2915 = vmatpush1.bf16.msra.mxu0 %v2561
    %2916 = vmatprep.subr.bf16.mxu0 0
    %2917 = vmatpush1.bf16.msra.mxu0 %v2562
    %2918 = vmatprep.subr.bf16.mxu0 0
    %2919 = vmatpush1.bf16.msra.mxu0 %v2563
    %2920 = vmatprep.subr.bf16.mxu0 0
    %2921 = vmatpush1.bf16.msra.mxu0 %v2564
    %2922 = vmatprep.subr.bf16.mxu0 0
    %2923 = vmatpush1.bf16.msra.mxu0 %v2565
    %2924 = vmatprep.subr.bf16.mxu0 0
    %2925 = vmatpush1.bf16.msra.mxu0 %v2566
    %2926 = vmatprep.subr.bf16.mxu0 0
    %2927 = vmatpush1.bf16.msra.mxu0 %v2567
    %2928 = vmatprep.subr.bf16.mxu0 0
    %2929 = vmatpush1.bf16.msra.mxu0 %v2568
    %2930 = vmatprep.subr.bf16.mxu0 0
    %2931 = vmatpush1.bf16.msra.mxu0 %v2569
    %2932 = vmatprep.subr.bf16.mxu0 0
    %2933 = vmatpush1.bf16.msra.mxu0 %v2570
    %2934 = vmatprep.subr.bf16.mxu0 0
    %2935 = vmatpush1.bf16.msra.mxu0 %v2571
    %2936 = vmatprep.subr.bf16.mxu0 0
    %2937 = vmatpush1.bf16.msra.mxu0 %v2572
    %2938 = vmatprep.subr.bf16.mxu0 0
    %2939 = vmatpush1.bf16.msra.mxu0 %v2573
    %2940 = vmatprep.subr.bf16.mxu0 0
    %2941 = vmatpush1.bf16.msra.mxu0 %v2574
    %2942 = vmatprep.subr.bf16.mxu0 0
    %2943 = vmatpush1.bf16.msra.mxu0 %v2575
    %2944 = vmatprep.mubr.bf16.mxu0 %v1717
    %2945 = vmatmul.mubr.bf16.gmra.mrb[0].mxu0 %v1716
    %v2946 = vpop.f32.mrb[0].mxu0
    %v2947 = vadd.f32 %v2907, %v2946
    %v2948 = vpop.f32.mrb[0].mxu0
    %v2949 = vpop.f32.mrb[0].mxu0
    %v2950 = vpop.f32.mrb[0].mxu0
    %2951 = vdwg.mxu0
    %2952 = vmatprep.subr.bf16.mxu0 0
    %2953 = vmatpush1.bf16.msra.mxu0 %v2576
    %2954 = vmatprep.subr.bf16.mxu0 0
    %2955 = vmatpush1.bf16.msra.mxu0 %v2577
    %2956 = vmatprep.subr.bf16.mxu0 0
    %2957 = vmatpush1.bf16.msra.mxu0 %v2578
    %2958 = vmatprep.subr.bf16.mxu0 0
    %2959 = vmatpush1.bf16.msra.mxu0 %v2579
    %2960 = vmatprep.subr.bf16.mxu0 0
    %2961 = vmatpush1.bf16.msra.mxu0 %v2580
    %2962 = vmatprep.subr.bf16.mxu0 0
    %2963 = vmatpush1.bf16.msra.mxu0 %v2581
    %2964 = vmatprep.subr.bf16.mxu0 0
    %2965 = vmatpush1.bf16.msra.mxu0 %v2582
    %2966 = vmatprep.subr.bf16.mxu0 0
    %2967 = vmatpush1.bf16.msra.mxu0 %v2583
    %2968 = vmatprep.subr.bf16.mxu0 0
    %2969 = vmatpush1.bf16.msra.mxu0 %v2584
    %2970 = vmatprep.subr.bf16.mxu0 0
    %2971 = vmatpush1.bf16.msra.mxu0 %v2585
    %2972 = vmatprep.subr.bf16.mxu0 0
    %2973 = vmatpush1.bf16.msra.mxu0 %v2586
    %2974 = vmatprep.subr.bf16.mxu0 0
    %2975 = vmatpush1.bf16.msra.mxu0 %v2587
    %2976 = vmatprep.subr.bf16.mxu0 0
    %2977 = vmatpush1.bf16.msra.mxu0 %v2588
    %2978 = vmatprep.subr.bf16.mxu0 0
    %2979 = vmatpush1.bf16.msra.mxu0 %v2589
    %2980 = vmatprep.subr.bf16.mxu0 0
    %2981 = vmatpush1.bf16.msra.mxu0 %v2590
    %2982 = vmatprep.subr.bf16.mxu0 0
    %2983 = vmatpush1.bf16.msra.mxu0 %v2591
    %2984 = vmatprep.mubr.bf16.mxu0 %v1719
    %2985 = vmatmul.mubr.bf16.gmra.mrb[0].mxu0 %v1718
    %v2986 = vpop.f32.mrb[0].mxu0
    %v2987 = vadd.f32 %v2947, %v2986
    %v2988 = vpop.f32.mrb[0].mxu0
    %v2989 = vpop.f32.mrb[0].mxu0
    %v2990 = vpop.f32.mrb[0].mxu0
    %2991 = vdwg.mxu0
    %2992 = vmatprep.subr.bf16.mxu0 0
    %2993 = vmatpush1.bf16.msra.mxu0 %v2592
    %2994 = vmatprep.subr.bf16.mxu0 0
    %2995 = vmatpush1.bf16.msra.mxu0 %v2593
    %2996 = vmatprep.subr.bf16.mxu0 0
    %2997 = vmatpush1.bf16.msra.mxu0 %v2594
    %2998 = vmatprep.subr.bf16.mxu0 0
    %2999 = vmatpush1.bf16.msra.mxu0 %v2595
    %3000 = vmatprep.subr.bf16.mxu0 0
    %3001 = vmatpush1.bf16.msra.mxu0 %v2596
    %3002 = vmatprep.subr.bf16.mxu0 0
    %3003 = vmatpush1.bf16.msra.mxu0 %v2597
    %3004 = vmatprep.subr.bf16.mxu0 0
    %3005 = vmatpush1.bf16.msra.mxu0 %v2598
    %3006 = vmatprep.subr.bf16.mxu0 0
    %3007 = vmatpush1.bf16.msra.mxu0 %v2599
    %3008 = vmatprep.subr.bf16.mxu0 0
    %3009 = vmatpush1.bf16.msra.mxu0 %v2600
    %3010 = vmatprep.subr.bf16.mxu0 0
    %3011 = vmatpush1.bf16.msra.mxu0 %v2601
    %3012 = vmatprep.subr.bf16.mxu0 0
    %3013 = vmatpush1.bf16.msra.mxu0 %v2602
    %3014 = vmatprep.subr.bf16.mxu0 0
    %3015 = vmatpush1.bf16.msra.mxu0 %v2603
    %3016 = vmatprep.subr.bf16.mxu0 0
    %3017 = vmatpush1.bf16.msra.mxu0 %v2604
    %3018 = vmatprep.subr.bf16.mxu0 0
    %3019 = vmatpush1.bf16.msra.mxu0 %v2605
    %3020 = vmatprep.subr.bf16.mxu0 0
    %3021 = vmatpush1.bf16.msra.mxu0 %v2606
    %3022 = vmatprep.subr.bf16.mxu0 0
    %3023 = vmatpush1.bf16.msra.mxu0 %v2607
    %3024 = vmatprep.mubr.bf16.mxu0 %v1721
    %3025 = vmatmul.mubr.bf16.gmra.mrb[0].mxu0 %v1720
    %v3026 = vpop.f32.mrb[0].mxu0
    %v3027 = vadd.f32 %v2987, %v3026
    %v3028 = vpop.f32.mrb[0].mxu0
    %v3029 = vpop.f32.mrb[0].mxu0
    %v3030 = vpop.f32.mrb[0].mxu0
    %3031 = vdwg.mxu0
    %3032 = vmatprep.subr.bf16.mxu0 0
    %3033 = vmatpush1.bf16.msra.mxu0 %v2608
    %3034 = vmatprep.subr.bf16.mxu0 0
    %3035 = vmatpush1.bf16.msra.mxu0 %v2609
    %3036 = vmatprep.subr.bf16.mxu0 0
    %3037 = vmatpush1.bf16.msra.mxu0 %v2610
    %3038 = vmatprep.subr.bf16.mxu0 0
    %3039 = vmatpush1.bf16.msra.mxu0 %v2611
    %3040 = vmatprep.subr.bf16.mxu0 0
    %3041 = vmatpush1.bf16.msra.mxu0 %v2612
    %3042 = vmatprep.subr.bf16.mxu0 0
    %3043 = vmatpush1.bf16.msra.mxu0 %v2613
    %3044 = vmatprep.subr.bf16.mxu0 0
    %3045 = vmatpush1.bf16.msra.mxu0 %v2614
    %3046 = vmatprep.subr.bf16.mxu0 0
    %3047 = vmatpush1.bf16.msra.mxu0 %v2615
    %3048 = vmatprep.subr.bf16.mxu0 0
    %3049 = vmatpush1.bf16.msra.mxu0 %v2616
    %3050 = vmatprep.subr.bf16.mxu0 0
    %3051 = vmatpush1.bf16.msra.mxu0 %v2617
    %3052 = vmatprep.subr.bf16.mxu0 0
    %3053 = vmatpush1.bf16.msra.mxu0 %v2618
    %3054 = vmatprep.subr.bf16.mxu0 0
    %3055 = vmatpush1.bf16.msra.mxu0 %v2619
    %3056 = vmatprep.subr.bf16.mxu0 0
    %3057 = vmatpush1.bf16.msra.mxu0 %v2620
    %3058 = vmatprep.subr.bf16.mxu0 0
    %3059 = vmatpush1.bf16.msra.mxu0 %v2621
    %3060 = vmatprep.subr.bf16.mxu0 0
    %3061 = vmatpush1.bf16.msra.mxu0 %v2622
    %3062 = vmatprep.subr.bf16.mxu0 0
    %3063 = vmatpush1.bf16.msra.mxu0 %v2623
    %3064 = vmatprep.mubr.bf16.mxu0 %v1723
    %3065 = vmatmul.mubr.bf16.gmra.mrb[0].mxu0 %v1722
    %v3066 = vpop.f32.mrb[0].mxu0
    %v3067 = vadd.f32 %v3027, %v3066
    %v3068 = vpop.f32.mrb[0].mxu0
    %v3069 = vpop.f32.mrb[0].mxu0
    %v3070 = vpop.f32.mrb[0].mxu0
    %3071 = vdwg.mxu0
    %v3072 = vadd.f32 %v366, %v3067
    %3073 = vadd.xlane.f32.xlu0 %v3072
    %v3074 = vpop.xlane.xlu0 %3073
    %v3075 = vmul.f32 %v3074, %v344
    %v3076 = vmul.f32 %v3072, %v3072
    %3077 = vadd.xlane.f32.xlu0 %v3076
    %v3078 = vpop.xlane.xlu0 %3077
    %v3079 = vmul.f32 %v3078, %v344
    %v3080 = vmul.f32 %v3075, %v3075
    %v3081 = vsub.f32 %v3079, %v3080
    %v3082 = vmax.f32 %v3081, 0.0
    %v3083 = vsub.f32 %v3072, %v3075
    %v3084 = vadd.f32 %v3082, 1e-05
    %v3085 = vrsqrt.pop %v3084
    %v3086 = vmul.f32 %v3083, %v3085
    %v3087 = vlaneseq
    %v3088 = vshrl.u32 %v3087, 7
    %v3089 = vsub.s32 0, %v3088
    %v3090 = vrot.slane %v231, %v3089
    %v3091 = vmul.f32 %v3086, %v3090
    %v3092 = vlaneseq
    %v3093 = vshrl.u32 %v3092, 7
    %v3094 = vsub.s32 0, %v3093
    %v3095 = vrot.slane %v232, %v3094
    %v3096 = vadd.f32 %v3091, %v3095
    %s3097 = scalar_lea.vmem [#allocation14], 8
    %v3098 = vld [vmem:[%s3097] sm:$0x1]
    %v3099 = vld [vmem:[%s3097 + $0x1] sm:$0x1]
    %v3100 = vld [vmem:[%s3097 + $0x2] sm:$0x1]
    %v3101 = vld [vmem:[%s3097 + $0x3] sm:$0x1]
    %v3102 = vld [vmem:[%s3097 + $0x4] sm:$0x1]
    %v3103 = vld [vmem:[%s3097 + $0x5] sm:$0x1]
    %v3104 = vpack.c.bf16 %v3096, %v3096
    %s3105 = scalar_lea.vmem [#allocation8], 64
    %v3106 = vld [vmem:[%s3105] sm:$0xf]
    %v3107 = vld [vmem:[%s3105 + $0x4] sm:$0xf]
    %v3108 = vld [vmem:[%s3105 + $0x8] sm:$0xf]
    %v3109 = vld [vmem:[%s3105 + $0xc] sm:$0xf]
    %v3110 = vld [vmem:[%s3105 + $0x10] sm:$0xf]
    %v3111 = vld [vmem:[%s3105 + $0x14] sm:$0xf]
    %v3112 = vld [vmem:[%s3105 + $0x18] sm:$0xf]
    %v3113 = vld [vmem:[%s3105 + $0x1c] sm:$0xf]
    %v3114 = vld [vmem:[%s3105 + $0x20] sm:$0xf]
    %v3115 = vld [vmem:[%s3105 + $0x24] sm:$0xf]
    %v3116 = vld [vmem:[%s3105 + $0x28] sm:$0xf]
    %v3117 = vld [vmem:[%s3105 + $0x2c] sm:$0xf]
    %v3118 = vld [vmem:[%s3105 + $0x30] sm:$0xf]
    %v3119 = vld [vmem:[%s3105 + $0x34] sm:$0xf]
    %v3120 = vld [vmem:[%s3105 + $0x38] sm:$0xf]
    %v3121 = vld [vmem:[%s3105 + $0x3c] sm:$0xf]
    %v3122 = vlaneseq
    %v3123 = vshrl.u32 %v3122, 7
    %v3124 = vsub.s32 0, %v3123
    %v3125 = vrot.slane %v3098, %v3124
    %v3142 = vunpack.c.l.b16 %v3106
    %v3143 = vunpack.c.l.b16 %v3107
    %v3144 = vunpack.c.l.b16 %v3108
    %v3145 = vunpack.c.l.b16 %v3109
    %v3146 = vunpack.c.l.b16 %v3110
    %v3147 = vunpack.c.l.b16 %v3111
    %v3148 = vunpack.c.l.b16 %v3112
    %v3149 = vunpack.c.l.b16 %v3113
    %v3150 = vunpack.c.l.b16 %v3114
    %v3151 = vunpack.c.l.b16 %v3115
    %v3152 = vunpack.c.l.b16 %v3116
    %v3153 = vunpack.c.l.b16 %v3117
    %v3154 = vunpack.c.l.b16 %v3118
    %v3155 = vunpack.c.l.b16 %v3119
    %v3156 = vunpack.c.l.b16 %v3120
    %v3157 = vunpack.c.l.b16 %v3121
    %v3158 = vpack.c.b16 %v3143, %v3142
    %v3159 = vpack.c.b16 %v3145, %v3144
    %v3160 = vpack.c.b16 %v3147, %v3146
    %v3161 = vpack.c.b16 %v3149, %v3148
    %v3162 = vpack.c.b16 %v3151, %v3150
    %v3163 = vpack.c.b16 %v3153, %v3152
    %v3164 = vpack.c.b16 %v3155, %v3154
    %v3165 = vpack.c.b16 %v3157, %v3156
    %3174 = vmatprep.subr.bf16.mxu0 0
    %3175 = vmatpush1.bf16.msra.mxu0 %v3158
    %3176 = vmatprep.subr.bf16.mxu0 0
    %3177 = vmatpush1.bf16.msra.mxu0 %v3159
    %3178 = vmatprep.subr.bf16.mxu0 0
    %3179 = vmatpush1.bf16.msra.mxu0 %v3160
    %3180 = vmatprep.subr.bf16.mxu0 0
    %3181 = vmatpush1.bf16.msra.mxu0 %v3161
    %3182 = vmatprep.subr.bf16.mxu0 0
    %3183 = vmatpush1.bf16.msra.mxu0 %v3162
    %3184 = vmatprep.subr.bf16.mxu0 0
    %3185 = vmatpush1.bf16.msra.mxu0 %v3163
    %3186 = vmatprep.subr.bf16.mxu0 0
    %3187 = vmatpush1.bf16.msra.mxu0 %v3164
    %3188 = vmatprep.subr.bf16.mxu0 0
    %3189 = vmatpush1.bf16.msra.mxu0 %v3165
    %3190 = vmatprep.subr.bf16.mxu0 0
    %3191 = vmatpush1.bf16.msra.mxu0 0
    %3192 = vmatprep.subr.bf16.mxu0 0
    %3193 = vmatpush1.bf16.msra.mxu0 0
    %3194 = vmatprep.subr.bf16.mxu0 0
    %3195 = vmatpush1.bf16.msra.mxu0 0
    %3196 = vmatprep.subr.bf16.mxu0 0
    %3197 = vmatpush1.bf16.msra.mxu0 0
    %3198 = vmatprep.subr.bf16.mxu0 0
    %3199 = vmatpush1.bf16.msra.mxu0 0
    %3200 = vmatprep.subr.bf16.mxu0 0
    %3201 = vmatpush1.bf16.msra.mxu0 0
    %3202 = vmatprep.subr.bf16.mxu0 0
    %3203 = vmatpush1.bf16.msra.mxu0 0
    %3204 = vmatprep.subr.bf16.mxu0 0
    %3205 = vmatpush1.bf16.msra.mxu0 0
    %3206 = vmatprep.mubr.bf16.mxu0 0
    %3207 = vmatmul.mubr.bf16.gmra.mrb[0].mxu0 %v3104
    %v3208 = vpop.f32.mrb[0].mxu0
    %v3209 = vadd.f32 %v3125, %v3208
    %v3210 = vpop.f32.mrb[0].mxu0
    %v3211 = vpop.f32.mrb[0].mxu0
    %v3212 = vpop.f32.mrb[0].mxu0
    %3213 = vdwg.mxu0
    %3214 = vadd.xlane.f32.xlu0 %v3209
    %v3215 = vpop.xlane.xlu0 %3214
    %v3216 = vmul.f32 %v3215, %v344
    %v3217 = vmul.f32 %v3209, %v3209
    %3218 = vadd.xlane.f32.xlu0 %v3217
    %v3219 = vpop.xlane.xlu0 %3218
    %v3220 = vmul.f32 %v3219, %v344
    %v3221 = vmul.f32 %v3216, %v3216
    %v3222 = vsub.f32 %v3220, %v3221
    %v3223 = vmax.f32 %v3222, 0.0
    %v3224 = vsub.f32 %v3209, %v3216
    %v3225 = vadd.f32 %v3223, 1e-05
    %v3226 = vrsqrt.pop %v3225
    %v3227 = vmul.f32 %v3224, %v3226
    %v3228 = vlaneseq
    %v3229 = vshrl.u32 %v3228, 7
    %v3230 = vsub.s32 0, %v3229
    %v3231 = vrot.slane %v3099, %v3230
    %v3232 = vmul.f32 %v3227, %v3231
    %v3233 = vlaneseq
    %v3234 = vshrl.u32 %v3233, 7
    %v3235 = vsub.s32 0, %v3234
    %v3236 = vrot.slane %v3100, %v3235
    %v3237 = vadd.f32 %v3232, %v3236
    %v3238 = vpack.c.bf16 %v3237, %v3237
    %s3239 = scalar_lea.vmem [#allocation10], 1024
    %v3240 = vld [vmem:[%s3239] sm:$0xff]
    %v3241 = vld [vmem:[%s3239 + $0x8] sm:$0xff]
    %v3242 = vld [vmem:[%s3239 + $0x10] sm:$0xff]
    %v3243 = vld [vmem:[%s3239 + $0x18] sm:$0xff]
    %v3244 = vld [vmem:[%s3239 + $0x20] sm:$0xff]
    %v3245 = vld [vmem:[%s3239 + $0x28] sm:$0xff]
    %v3246 = vld [vmem:[%s3239 + $0x30] sm:$0xff]
    %v3247 = vld [vmem:[%s3239 + $0x38] sm:$0xff]
    %v3248 = vld [vmem:[%s3239 + $0x40] sm:$0xff]
    %v3249 = vld [vmem:[%s3239 + $0x48] sm:$0xff]
    %v3250 = vld [vmem:[%s3239 + $0x50] sm:$0xff]
    %v3251 = vld [vmem:[%s3239 + $0x58] sm:$0xff]
    %v3252 = vld [vmem:[%s3239 + $0x60] sm:$0xff]
    %v3253 = vld [vmem:[%s3239 + $0x68] sm:$0xff]
    %v3254 = vld [vmem:[%s3239 + $0x70] sm:$0xff]
    %v3255 = vld [vmem:[%s3239 + $0x78] sm:$0xff]
    %v3256 = vld [vmem:[%s3239 + $0x80] sm:$0xff]
    %v3257 = vld [vmem:[%s3239 + $0x88] sm:$0xff]
    %v3258 = vld [vmem:[%s3239 + $0x90] sm:$0xff]
    %v3259 = vld [vmem:[%s3239 + $0x98] sm:$0xff]
    %v3260 = vld [vmem:[%s3239 + $0xa0] sm:$0xff]
    %v3261 = vld [vmem:[%s3239 + $0xa8] sm:$0xff]
    %v3262 = vld [vmem:[%s3239 + $0xb0] sm:$0xff]
    %v3263 = vld [vmem:[%s3239 + $0xb8] sm:$0xff]
    %v3264 = vld [vmem:[%s3239 + $0xc0] sm:$0xff]
    %v3265 = vld [vmem:[%s3239 + $0xc8] sm:$0xff]
    %v3266 = vld [vmem:[%s3239 + $0xd0] sm:$0xff]
    %v3267 = vld [vmem:[%s3239 + $0xd8] sm:$0xff]
    %v3268 = vld [vmem:[%s3239 + $0xe0] sm:$0xff]
    %v3269 = vld [vmem:[%s3239 + $0xe8] sm:$0xff]
    %v3270 = vld [vmem:[%s3239 + $0xf0] sm:$0xff]
    %v3271 = vld [vmem:[%s3239 + $0xf8] sm:$0xff]
    %v3272 = vld [vmem:[%s3239 + $0x100] sm:$0xff]
    %v3273 = vld [vmem:[%s3239 + $0x108] sm:$0xff]
    %v3274 = vld [vmem:[%s3239 + $0x110] sm:$0xff]
    %v3275 = vld [vmem:[%s3239 + $0x118] sm:$0xff]
    %v3276 = vld [vmem:[%s3239 + $0x120] sm:$0xff]
    %v3277 = vld [vmem:[%s3239 + $0x128] sm:$0xff]
    %v3278 = vld [vmem:[%s3239 + $0x130] sm:$0xff]
    %v3279 = vld [vmem:[%s3239 + $0x138] sm:$0xff]
    %v3280 = vld [vmem:[%s3239 + $0x140] sm:$0xff]
    %v3281 = vld [vmem:[%s3239 + $0x148] sm:$0xff]
    %v3282 = vld [vmem:[%s3239 + $0x150] sm:$0xff]
    %v3283 = vld [vmem:[%s3239 + $0x158] sm:$0xff]
    %v3284 = vld [vmem:[%s3239 + $0x160] sm:$0xff]
    %v3285 = vld [vmem:[%s3239 + $0x168] sm:$0xff]
    %v3286 = vld [vmem:[%s3239 + $0x170] sm:$0xff]
    %v3287 = vld [vmem:[%s3239 + $0x178] sm:$0xff]
    %v3288 = vld [vmem:[%s3239 + $0x180] sm:$0xff]
    %v3289 = vld [vmem:[%s3239 + $0x188] sm:$0xff]
    %v3290 = vld [vmem:[%s3239 + $0x190] sm:$0xff]
    %v3291 = vld [vmem:[%s3239 + $0x198] sm:$0xff]
    %v3292 = vld [vmem:[%s3239 + $0x1a0] sm:$0xff]
    %v3293 = vld [vmem:[%s3239 + $0x1a8] sm:$0xff]
    %v3294 = vld [vmem:[%s3239 + $0x1b0] sm:$0xff]
    %v3295 = vld [vmem:[%s3239 + $0x1b8] sm:$0xff]
    %v3296 = vld [vmem:[%s3239 + $0x1c0] sm:$0xff]
    %v3297 = vld [vmem:[%s3239 + $0x1c8] sm:$0xff]
    %v3298 = vld [vmem:[%s3239 + $0x1d0] sm:$0xff]
    %v3299 = vld [vmem:[%s3239 + $0x1d8] sm:$0xff]
    %v3300 = vld [vmem:[%s3239 + $0x1e0] sm:$0xff]
    %v3301 = vld [vmem:[%s3239 + $0x1e8] sm:$0xff]
    %v3302 = vld [vmem:[%s3239 + $0x1f0] sm:$0xff]
    %v3303 = vld [vmem:[%s3239 + $0x1f8] sm:$0xff]
    %v3304 = vld [vmem:[%s3239 + $0x200] sm:$0xff]
    %v3305 = vld [vmem:[%s3239 + $0x208] sm:$0xff]
    %v3306 = vld [vmem:[%s3239 + $0x210] sm:$0xff]
    %v3307 = vld [vmem:[%s3239 + $0x218] sm:$0xff]
    %v3308 = vld [vmem:[%s3239 + $0x220] sm:$0xff]
    %v3309 = vld [vmem:[%s3239 + $0x228] sm:$0xff]
    %v3310 = vld [vmem:[%s3239 + $0x230] sm:$0xff]
    %v3311 = vld [vmem:[%s3239 + $0x238] sm:$0xff]
    %v3312 = vld [vmem:[%s3239 + $0x240] sm:$0xff]
    %v3313 = vld [vmem:[%s3239 + $0x248] sm:$0xff]
    %v3314 = vld [vmem:[%s3239 + $0x250] sm:$0xff]
    %v3315 = vld [vmem:[%s3239 + $0x258] sm:$0xff]
    %v3316 = vld [vmem:[%s3239 + $0x260] sm:$0xff]
    %v3317 = vld [vmem:[%s3239 + $0x268] sm:$0xff]
    %v3318 = vld [vmem:[%s3239 + $0x270] sm:$0xff]
    %v3319 = vld [vmem:[%s3239 + $0x278] sm:$0xff]
    %v3320 = vld [vmem:[%s3239 + $0x280] sm:$0xff]
    %v3321 = vld [vmem:[%s3239 + $0x288] sm:$0xff]
    %v3322 = vld [vmem:[%s3239 + $0x290] sm:$0xff]
    %v3323 = vld [vmem:[%s3239 + $0x298] sm:$0xff]
    %v3324 = vld [vmem:[%s3239 + $0x2a0] sm:$0xff]
    %v3325 = vld [vmem:[%s3239 + $0x2a8] sm:$0xff]
    %v3326 = vld [vmem:[%s3239 + $0x2b0] sm:$0xff]
    %v3327 = vld [vmem:[%s3239 + $0x2b8] sm:$0xff]
    %v3328 = vld [vmem:[%s3239 + $0x2c0] sm:$0xff]
    %v3329 = vld [vmem:[%s3239 + $0x2c8] sm:$0xff]
    %v3330 = vld [vmem:[%s3239 + $0x2d0] sm:$0xff]
    %v3331 = vld [vmem:[%s3239 + $0x2d8] sm:$0xff]
    %v3332 = vld [vmem:[%s3239 + $0x2e0] sm:$0xff]
    %v3333 = vld [vmem:[%s3239 + $0x2e8] sm:$0xff]
    %v3334 = vld [vmem:[%s3239 + $0x2f0] sm:$0xff]
    %v3335 = vld [vmem:[%s3239 + $0x2f8] sm:$0xff]
    %v3336 = vld [vmem:[%s3239 + $0x300] sm:$0xff]
    %v3337 = vld [vmem:[%s3239 + $0x308] sm:$0xff]
    %v3338 = vld [vmem:[%s3239 + $0x310] sm:$0xff]
    %v3339 = vld [vmem:[%s3239 + $0x318] sm:$0xff]
    %v3340 = vld [vmem:[%s3239 + $0x320] sm:$0xff]
    %v3341 = vld [vmem:[%s3239 + $0x328] sm:$0xff]
    %v3342 = vld [vmem:[%s3239 + $0x330] sm:$0xff]
    %v3343 = vld [vmem:[%s3239 + $0x338] sm:$0xff]
    %v3344 = vld [vmem:[%s3239 + $0x340] sm:$0xff]
    %v3345 = vld [vmem:[%s3239 + $0x348] sm:$0xff]
    %v3346 = vld [vmem:[%s3239 + $0x350] sm:$0xff]
    %v3347 = vld [vmem:[%s3239 + $0x358] sm:$0xff]
    %v3348 = vld [vmem:[%s3239 + $0x360] sm:$0xff]
    %v3349 = vld [vmem:[%s3239 + $0x368] sm:$0xff]
    %v3350 = vld [vmem:[%s3239 + $0x370] sm:$0xff]
    %v3351 = vld [vmem:[%s3239 + $0x378] sm:$0xff]
    %v3352 = vld [vmem:[%s3239 + $0x380] sm:$0xff]
    %v3353 = vld [vmem:[%s3239 + $0x388] sm:$0xff]
    %v3354 = vld [vmem:[%s3239 + $0x390] sm:$0xff]
    %v3355 = vld [vmem:[%s3239 + $0x398] sm:$0xff]
    %v3356 = vld [vmem:[%s3239 + $0x3a0] sm:$0xff]
    %v3357 = vld [vmem:[%s3239 + $0x3a8] sm:$0xff]
    %v3358 = vld [vmem:[%s3239 + $0x3b0] sm:$0xff]
    %v3359 = vld [vmem:[%s3239 + $0x3b8] sm:$0xff]
    %v3360 = vld [vmem:[%s3239 + $0x3c0] sm:$0xff]
    %v3361 = vld [vmem:[%s3239 + $0x3c8] sm:$0xff]
    %v3362 = vld [vmem:[%s3239 + $0x3d0] sm:$0xff]
    %v3363 = vld [vmem:[%s3239 + $0x3d8] sm:$0xff]
    %v3364 = vld [vmem:[%s3239 + $0x3e0] sm:$0xff]
    %v3365 = vld [vmem:[%s3239 + $0x3e8] sm:$0xff]
    %v3366 = vld [vmem:[%s3239 + $0x3f0] sm:$0xff]
    %v3367 = vld [vmem:[%s3239 + $0x3f8] sm:$0xff]
    %v3496 = vunpack.c.l.b16 %v3240
    %v3497 = vunpack.c.h.b16 %v3240
    %v3498 = vunpack.c.l.b16 %v3241
    %v3499 = vunpack.c.h.b16 %v3241
    %v3500 = vunpack.c.l.b16 %v3242
    %v3501 = vunpack.c.h.b16 %v3242
    %v3502 = vunpack.c.l.b16 %v3243
    %v3503 = vunpack.c.h.b16 %v3243
    %v3504 = vunpack.c.l.b16 %v3244
    %v3505 = vunpack.c.h.b16 %v3244
    %v3506 = vunpack.c.l.b16 %v3245
    %v3507 = vunpack.c.h.b16 %v3245
    %v3508 = vunpack.c.l.b16 %v3246
    %v3509 = vunpack.c.h.b16 %v3246
    %v3510 = vunpack.c.l.b16 %v3247
    %v3511 = vunpack.c.h.b16 %v3247
    %v3512 = vunpack.c.l.b16 %v3248
    %v3513 = vunpack.c.h.b16 %v3248
    %v3514 = vunpack.c.l.b16 %v3249
    %v3515 = vunpack.c.h.b16 %v3249
    %v3516 = vunpack.c.l.b16 %v3250
    %v3517 = vunpack.c.h.b16 %v3250
    %v3518 = vunpack.c.l.b16 %v3251
    %v3519 = vunpack.c.h.b16 %v3251
    %v3520 = vunpack.c.l.b16 %v3252
    %v3521 = vunpack.c.h.b16 %v3252
    %v3522 = vunpack.c.l.b16 %v3253
    %v3523 = vunpack.c.h.b16 %v3253
    %v3524 = vunpack.c.l.b16 %v3254
    %v3525 = vunpack.c.h.b16 %v3254
    %v3526 = vunpack.c.l.b16 %v3255
    %v3527 = vunpack.c.h.b16 %v3255
    %v3528 = vunpack.c.l.b16 %v3256
    %v3529 = vunpack.c.h.b16 %v3256
    %v3530 = vunpack.c.l.b16 %v3257
    %v3531 = vunpack.c.h.b16 %v3257
    %v3532 = vunpack.c.l.b16 %v3258
    %v3533 = vunpack.c.h.b16 %v3258
    %v3534 = vunpack.c.l.b16 %v3259
    %v3535 = vunpack.c.h.b16 %v3259
    %v3536 = vunpack.c.l.b16 %v3260
    %v3537 = vunpack.c.h.b16 %v3260
    %v3538 = vunpack.c.l.b16 %v3261
    %v3539 = vunpack.c.h.b16 %v3261
    %v3540 = vunpack.c.l.b16 %v3262
    %v3541 = vunpack.c.h.b16 %v3262
    %v3542 = vunpack.c.l.b16 %v3263
    %v3543 = vunpack.c.h.b16 %v3263
    %v3544 = vunpack.c.l.b16 %v3264
    %v3545 = vunpack.c.h.b16 %v3264
    %v3546 = vunpack.c.l.b16 %v3265
    %v3547 = vunpack.c.h.b16 %v3265
    %v3548 = vunpack.c.l.b16 %v3266
    %v3549 = vunpack.c.h.b16 %v3266
    %v3550 = vunpack.c.l.b16 %v3267
    %v3551 = vunpack.c.h.b16 %v3267
    %v3552 = vunpack.c.l.b16 %v3268
    %v3553 = vunpack.c.h.b16 %v3268
    %v3554 = vunpack.c.l.b16 %v3269
    %v3555 = vunpack.c.h.b16 %v3269
    %v3556 = vunpack.c.l.b16 %v3270
    %v3557 = vunpack.c.h.b16 %v3270
    %v3558 = vunpack.c.l.b16 %v3271
    %v3559 = vunpack.c.h.b16 %v3271
    %v3560 = vunpack.c.l.b16 %v3272
    %v3561 = vunpack.c.h.b16 %v3272
    %v3562 = vunpack.c.l.b16 %v3273
    %v3563 = vunpack.c.h.b16 %v3273
    %v3564 = vunpack.c.l.b16 %v3274
    %v3565 = vunpack.c.h.b16 %v3274
    %v3566 = vunpack.c.l.b16 %v3275
    %v3567 = vunpack.c.h.b16 %v3275
    %v3568 = vunpack.c.l.b16 %v3276
    %v3569 = vunpack.c.h.b16 %v3276
    %v3570 = vunpack.c.l.b16 %v3277
    %v3571 = vunpack.c.h.b16 %v3277
    %v3572 = vunpack.c.l.b16 %v3278
    %v3573 = vunpack.c.h.b16 %v3278
    %v3574 = vunpack.c.l.b16 %v3279
    %v3575 = vunpack.c.h.b16 %v3279
    %v3576 = vunpack.c.l.b16 %v3280
    %v3577 = vunpack.c.h.b16 %v3280
    %v3578 = vunpack.c.l.b16 %v3281
    %v3579 = vunpack.c.h.b16 %v3281
    %v3580 = vunpack.c.l.b16 %v3282
    %v3581 = vunpack.c.h.b16 %v3282
    %v3582 = vunpack.c.l.b16 %v3283
    %v3583 = vunpack.c.h.b16 %v3283
    %v3584 = vunpack.c.l.b16 %v3284
    %v3585 = vunpack.c.h.b16 %v3284
    %v3586 = vunpack.c.l.b16 %v3285
    %v3587 = vunpack.c.h.b16 %v3285
    %v3588 = vunpack.c.l.b16 %v3286
    %v3589 = vunpack.c.h.b16 %v3286
    %v3590 = vunpack.c.l.b16 %v3287
    %v3591 = vunpack.c.h.b16 %v3287
    %v3592 = vunpack.c.l.b16 %v3288
    %v3593 = vunpack.c.h.b16 %v3288
    %v3594 = vunpack.c.l.b16 %v3289
    %v3595 = vunpack.c.h.b16 %v3289
    %v3596 = vunpack.c.l.b16 %v3290
    %v3597 = vunpack.c.h.b16 %v3290
    %v3598 = vunpack.c.l.b16 %v3291
    %v3599 = vunpack.c.h.b16 %v3291
    %v3600 = vunpack.c.l.b16 %v3292
    %v3601 = vunpack.c.h.b16 %v3292
    %v3602 = vunpack.c.l.b16 %v3293
    %v3603 = vunpack.c.h.b16 %v3293
    %v3604 = vunpack.c.l.b16 %v3294
    %v3605 = vunpack.c.h.b16 %v3294
    %v3606 = vunpack.c.l.b16 %v3295
    %v3607 = vunpack.c.h.b16 %v3295
    %v3608 = vunpack.c.l.b16 %v3296
    %v3609 = vunpack.c.h.b16 %v3296
    %v3610 = vunpack.c.l.b16 %v3297
    %v3611 = vunpack.c.h.b16 %v3297
    %v3612 = vunpack.c.l.b16 %v3298
    %v3613 = vunpack.c.h.b16 %v3298
    %v3614 = vunpack.c.l.b16 %v3299
    %v3615 = vunpack.c.h.b16 %v3299
    %v3616 = vunpack.c.l.b16 %v3300
    %v3617 = vunpack.c.h.b16 %v3300
    %v3618 = vunpack.c.l.b16 %v3301
    %v3619 = vunpack.c.h.b16 %v3301
    %v3620 = vunpack.c.l.b16 %v3302
    %v3621 = vunpack.c.h.b16 %v3302
    %v3622 = vunpack.c.l.b16 %v3303
    %v3623 = vunpack.c.h.b16 %v3303
    %v3624 = vunpack.c.l.b16 %v3304
    %v3625 = vunpack.c.h.b16 %v3304
    %v3626 = vunpack.c.l.b16 %v3305
    %v3627 = vunpack.c.h.b16 %v3305
    %v3628 = vunpack.c.l.b16 %v3306
    %v3629 = vunpack.c.h.b16 %v3306
    %v3630 = vunpack.c.l.b16 %v3307
    %v3631 = vunpack.c.h.b16 %v3307
    %v3632 = vunpack.c.l.b16 %v3308
    %v3633 = vunpack.c.h.b16 %v3308
    %v3634 = vunpack.c.l.b16 %v3309
    %v3635 = vunpack.c.h.b16 %v3309
    %v3636 = vunpack.c.l.b16 %v3310
    %v3637 = vunpack.c.h.b16 %v3310
    %v3638 = vunpack.c.l.b16 %v3311
    %v3639 = vunpack.c.h.b16 %v3311
    %v3640 = vunpack.c.l.b16 %v3312
    %v3641 = vunpack.c.h.b16 %v3312
    %v3642 = vunpack.c.l.b16 %v3313
    %v3643 = vunpack.c.h.b16 %v3313
    %v3644 = vunpack.c.l.b16 %v3314
    %v3645 = vunpack.c.h.b16 %v3314
    %v3646 = vunpack.c.l.b16 %v3315
    %v3647 = vunpack.c.h.b16 %v3315
    %v3648 = vunpack.c.l.b16 %v3316
    %v3649 = vunpack.c.h.b16 %v3316
    %v3650 = vunpack.c.l.b16 %v3317
    %v3651 = vunpack.c.h.b16 %v3317
    %v3652 = vunpack.c.l.b16 %v3318
    %v3653 = vunpack.c.h.b16 %v3318
    %v3654 = vunpack.c.l.b16 %v3319
    %v3655 = vunpack.c.h.b16 %v3319
    %v3656 = vunpack.c.l.b16 %v3320
    %v3657 = vunpack.c.h.b16 %v3320
    %v3658 = vunpack.c.l.b16 %v3321
    %v3659 = vunpack.c.h.b16 %v3321
    %v3660 = vunpack.c.l.b16 %v3322
    %v3661 = vunpack.c.h.b16 %v3322
    %v3662 = vunpack.c.l.b16 %v3323
    %v3663 = vunpack.c.h.b16 %v3323
    %v3664 = vunpack.c.l.b16 %v3324
    %v3665 = vunpack.c.h.b16 %v3324
    %v3666 = vunpack.c.l.b16 %v3325
    %v3667 = vunpack.c.h.b16 %v3325
    %v3668 = vunpack.c.l.b16 %v3326
    %v3669 = vunpack.c.h.b16 %v3326
    %v3670 = vunpack.c.l.b16 %v3327
    %v3671 = vunpack.c.h.b16 %v3327
    %v3672 = vunpack.c.l.b16 %v3328
    %v3673 = vunpack.c.h.b16 %v3328
    %v3674 = vunpack.c.l.b16 %v3329
    %v3675 = vunpack.c.h.b16 %v3329
    %v3676 = vunpack.c.l.b16 %v3330
    %v3677 = vunpack.c.h.b16 %v3330
    %v3678 = vunpack.c.l.b16 %v3331
    %v3679 = vunpack.c.h.b16 %v3331
    %v3680 = vunpack.c.l.b16 %v3332
    %v3681 = vunpack.c.h.b16 %v3332
    %v3682 = vunpack.c.l.b16 %v3333
    %v3683 = vunpack.c.h.b16 %v3333
    %v3684 = vunpack.c.l.b16 %v3334
    %v3685 = vunpack.c.h.b16 %v3334
    %v3686 = vunpack.c.l.b16 %v3335
    %v3687 = vunpack.c.h.b16 %v3335
    %v3688 = vunpack.c.l.b16 %v3336
    %v3689 = vunpack.c.h.b16 %v3336
    %v3690 = vunpack.c.l.b16 %v3337
    %v3691 = vunpack.c.h.b16 %v3337
    %v3692 = vunpack.c.l.b16 %v3338
    %v3693 = vunpack.c.h.b16 %v3338
    %v3694 = vunpack.c.l.b16 %v3339
    %v3695 = vunpack.c.h.b16 %v3339
    %v3696 = vunpack.c.l.b16 %v3340
    %v3697 = vunpack.c.h.b16 %v3340
    %v3698 = vunpack.c.l.b16 %v3341
    %v3699 = vunpack.c.h.b16 %v3341
    %v3700 = vunpack.c.l.b16 %v3342
    %v3701 = vunpack.c.h.b16 %v3342
    %v3702 = vunpack.c.l.b16 %v3343
    %v3703 = vunpack.c.h.b16 %v3343
    %v3704 = vunpack.c.l.b16 %v3344
    %v3705 = vunpack.c.h.b16 %v3344
    %v3706 = vunpack.c.l.b16 %v3345
    %v3707 = vunpack.c.h.b16 %v3345
    %v3708 = vunpack.c.l.b16 %v3346
    %v3709 = vunpack.c.h.b16 %v3346
    %v3710 = vunpack.c.l.b16 %v3347
    %v3711 = vunpack.c.h.b16 %v3347
    %v3712 = vunpack.c.l.b16 %v3348
    %v3713 = vunpack.c.h.b16 %v3348
    %v3714 = vunpack.c.l.b16 %v3349
    %v3715 = vunpack.c.h.b16 %v3349
    %v3716 = vunpack.c.l.b16 %v3350
    %v3717 = vunpack.c.h.b16 %v3350
    %v3718 = vunpack.c.l.b16 %v3351
    %v3719 = vunpack.c.h.b16 %v3351
    %v3720 = vunpack.c.l.b16 %v3352
    %v3721 = vunpack.c.h.b16 %v3352
    %v3722 = vunpack.c.l.b16 %v3353
    %v3723 = vunpack.c.h.b16 %v3353
    %v3724 = vunpack.c.l.b16 %v3354
    %v3725 = vunpack.c.h.b16 %v3354
    %v3726 = vunpack.c.l.b16 %v3355
    %v3727 = vunpack.c.h.b16 %v3355
    %v3728 = vunpack.c.l.b16 %v3356
    %v3729 = vunpack.c.h.b16 %v3356
    %v3730 = vunpack.c.l.b16 %v3357
    %v3731 = vunpack.c.h.b16 %v3357
    %v3732 = vunpack.c.l.b16 %v3358
    %v3733 = vunpack.c.h.b16 %v3358
    %v3734 = vunpack.c.l.b16 %v3359
    %v3735 = vunpack.c.h.b16 %v3359
    %v3736 = vunpack.c.l.b16 %v3360
    %v3737 = vunpack.c.h.b16 %v3360
    %v3738 = vunpack.c.l.b16 %v3361
    %v3739 = vunpack.c.h.b16 %v3361
    %v3740 = vunpack.c.l.b16 %v3362
    %v3741 = vunpack.c.h.b16 %v3362
    %v3742 = vunpack.c.l.b16 %v3363
    %v3743 = vunpack.c.h.b16 %v3363
    %v3744 = vunpack.c.l.b16 %v3364
    %v3745 = vunpack.c.h.b16 %v3364
    %v3746 = vunpack.c.l.b16 %v3365
    %v3747 = vunpack.c.h.b16 %v3365
    %v3748 = vunpack.c.l.b16 %v3366
    %v3749 = vunpack.c.h.b16 %v3366
    %v3750 = vunpack.c.l.b16 %v3367
    %v3751 = vunpack.c.h.b16 %v3367
    %v3752 = vpack.c.b16 %v3512, %v3496
    %v3753 = vpack.c.b16 %v3513, %v3497
    %v3754 = vpack.c.b16 %v3514, %v3498
    %v3755 = vpack.c.b16 %v3515, %v3499
    %v3756 = vpack.c.b16 %v3516, %v3500
    %v3757 = vpack.c.b16 %v3517, %v3501
    %v3758 = vpack.c.b16 %v3518, %v3502
    %v3759 = vpack.c.b16 %v3519, %v3503
    %v3760 = vpack.c.b16 %v3520, %v3504
    %v3761 = vpack.c.b16 %v3521, %v3505
    %v3762 = vpack.c.b16 %v3522, %v3506
    %v3763 = vpack.c.b16 %v3523, %v3507
    %v3764 = vpack.c.b16 %v3524, %v3508
    %v3765 = vpack.c.b16 %v3525, %v3509
    %v3766 = vpack.c.b16 %v3526, %v3510
    %v3767 = vpack.c.b16 %v3527, %v3511
    %v3768 = vpack.c.b16 %v3544, %v3528
    %v3769 = vpack.c.b16 %v3545, %v3529
    %v3770 = vpack.c.b16 %v3546, %v3530
    %v3771 = vpack.c.b16 %v3547, %v3531
    %v3772 = vpack.c.b16 %v3548, %v3532
    %v3773 = vpack.c.b16 %v3549, %v3533
    %v3774 = vpack.c.b16 %v3550, %v3534
    %v3775 = vpack.c.b16 %v3551, %v3535
    %v3776 = vpack.c.b16 %v3552, %v3536
    %v3777 = vpack.c.b16 %v3553, %v3537
    %v3778 = vpack.c.b16 %v3554, %v3538
    %v3779 = vpack.c.b16 %v3555, %v3539
    %v3780 = vpack.c.b16 %v3556, %v3540
    %v3781 = vpack.c.b16 %v3557, %v3541
    %v3782 = vpack.c.b16 %v3558, %v3542
    %v3783 = vpack.c.b16 %v3559, %v3543
    %v3784 = vpack.c.b16 %v3576, %v3560
    %v3785 = vpack.c.b16 %v3577, %v3561
    %v3786 = vpack.c.b16 %v3578, %v3562
    %v3787 = vpack.c.b16 %v3579, %v3563
    %v3788 = vpack.c.b16 %v3580, %v3564
    %v3789 = vpack.c.b16 %v3581, %v3565
    %v3790 = vpack.c.b16 %v3582, %v3566
    %v3791 = vpack.c.b16 %v3583, %v3567
    %v3792 = vpack.c.b16 %v3584, %v3568
    %v3793 = vpack.c.b16 %v3585, %v3569
    %v3794 = vpack.c.b16 %v3586, %v3570
    %v3795 = vpack.c.b16 %v3587, %v3571
    %v3796 = vpack.c.b16 %v3588, %v3572
    %v3797 = vpack.c.b16 %v3589, %v3573
    %v3798 = vpack.c.b16 %v3590, %v3574
    %v3799 = vpack.c.b16 %v3591, %v3575
    %v3800 = vpack.c.b16 %v3608, %v3592
    %v3801 = vpack.c.b16 %v3609, %v3593
    %v3802 = vpack.c.b16 %v3610, %v3594
    %v3803 = vpack.c.b16 %v3611, %v3595
    %v3804 = vpack.c.b16 %v3612, %v3596
    %v3805 = vpack.c.b16 %v3613, %v3597
    %v3806 = vpack.c.b16 %v3614, %v3598
    %v3807 = vpack.c.b16 %v3615, %v3599
    %v3808 = vpack.c.b16 %v3616, %v3600
    %v3809 = vpack.c.b16 %v3617, %v3601
    %v3810 = vpack.c.b16 %v3618, %v3602
    %v3811 = vpack.c.b16 %v3619, %v3603
    %v3812 = vpack.c.b16 %v3620, %v3604
    %v3813 = vpack.c.b16 %v3621, %v3605
    %v3814 = vpack.c.b16 %v3622, %v3606
    %v3815 = vpack.c.b16 %v3623, %v3607
    %v3816 = vpack.c.b16 %v3640, %v3624
    %v3817 = vpack.c.b16 %v3641, %v3625
    %v3818 = vpack.c.b16 %v3642, %v3626
    %v3819 = vpack.c.b16 %v3643, %v3627
    %v3820 = vpack.c.b16 %v3644, %v3628
    %v3821 = vpack.c.b16 %v3645, %v3629
    %v3822 = vpack.c.b16 %v3646, %v3630
    %v3823 = vpack.c.b16 %v3647, %v3631
    %v3824 = vpack.c.b16 %v3648, %v3632
    %v3825 = vpack.c.b16 %v3649, %v3633
    %v3826 = vpack.c.b16 %v3650, %v3634
    %v3827 = vpack.c.b16 %v3651, %v3635
    %v3828 = vpack.c.b16 %v3652, %v3636
    %v3829 = vpack.c.b16 %v3653, %v3637
    %v3830 = vpack.c.b16 %v3654, %v3638
    %v3831 = vpack.c.b16 %v3655, %v3639
    %v3832 = vpack.c.b16 %v3672, %v3656
    %v3833 = vpack.c.b16 %v3673, %v3657
    %v3834 = vpack.c.b16 %v3674, %v3658
    %v3835 = vpack.c.b16 %v3675, %v3659
    %v3836 = vpack.c.b16 %v3676, %v3660
    %v3837 = vpack.c.b16 %v3677, %v3661
    %v3838 = vpack.c.b16 %v3678, %v3662
    %v3839 = vpack.c.b16 %v3679, %v3663
    %v3840 = vpack.c.b16 %v3680, %v3664
    %v3841 = vpack.c.b16 %v3681, %v3665
    %v3842 = vpack.c.b16 %v3682, %v3666
    %v3843 = vpack.c.b16 %v3683, %v3667
    %v3844 = vpack.c.b16 %v3684, %v3668
    %v3845 = vpack.c.b16 %v3685, %v3669
    %v3846 = vpack.c.b16 %v3686, %v3670
    %v3847 = vpack.c.b16 %v3687, %v3671
    %v3848 = vpack.c.b16 %v3704, %v3688
    %v3849 = vpack.c.b16 %v3705, %v3689
    %v3850 = vpack.c.b16 %v3706, %v3690
    %v3851 = vpack.c.b16 %v3707, %v3691
    %v3852 = vpack.c.b16 %v3708, %v3692
    %v3853 = vpack.c.b16 %v3709, %v3693
    %v3854 = vpack.c.b16 %v3710, %v3694
    %v3855 = vpack.c.b16 %v3711, %v3695
    %v3856 = vpack.c.b16 %v3712, %v3696
    %v3857 = vpack.c.b16 %v3713, %v3697
    %v3858 = vpack.c.b16 %v3714, %v3698
    %v3859 = vpack.c.b16 %v3715, %v3699
    %v3860 = vpack.c.b16 %v3716, %v3700
    %v3861 = vpack.c.b16 %v3717, %v3701
    %v3862 = vpack.c.b16 %v3718, %v3702
    %v3863 = vpack.c.b16 %v3719, %v3703
    %v3864 = vpack.c.b16 %v3736, %v3720
    %v3865 = vpack.c.b16 %v3737, %v3721
    %v3866 = vpack.c.b16 %v3738, %v3722
    %v3867 = vpack.c.b16 %v3739, %v3723
    %v3868 = vpack.c.b16 %v3740, %v3724
    %v3869 = vpack.c.b16 %v3741, %v3725
    %v3870 = vpack.c.b16 %v3742, %v3726
    %v3871 = vpack.c.b16 %v3743, %v3727
    %v3872 = vpack.c.b16 %v3744, %v3728
    %v3873 = vpack.c.b16 %v3745, %v3729
    %v3874 = vpack.c.b16 %v3746, %v3730
    %v3875 = vpack.c.b16 %v3747, %v3731
    %v3876 = vpack.c.b16 %v3748, %v3732
    %v3877 = vpack.c.b16 %v3749, %v3733
    %v3878 = vpack.c.b16 %v3750, %v3734
    %v3879 = vpack.c.b16 %v3751, %v3735
    %4008 = vmatprep.subr.bf16.mxu0 %v3753
    %4009 = vmatpush1.bf16.msra.mxu0 %v3752
    %4010 = vmatprep.subr.bf16.mxu0 %v3769
    %4011 = vmatpush1.bf16.msra.mxu0 %v3768
    %4012 = vmatprep.subr.bf16.mxu0 %v3785
    %4013 = vmatpush1.bf16.msra.mxu0 %v3784
    %4014 = vmatprep.subr.bf16.mxu0 %v3801
    %4015 = vmatpush1.bf16.msra.mxu0 %v3800
    %4016 = vmatprep.subr.bf16.mxu0 %v3817
    %4017 = vmatpush1.bf16.msra.mxu0 %v3816
    %4018 = vmatprep.subr.bf16.mxu0 %v3833
    %4019 = vmatpush1.bf16.msra.mxu0 %v3832
    %4020 = vmatprep.subr.bf16.mxu0 %v3849
    %4021 = vmatpush1.bf16.msra.mxu0 %v3848
    %4022 = vmatprep.subr.bf16.mxu0 %v3865
    %4023 = vmatpush1.bf16.msra.mxu0 %v3864
    %4024 = vmatprep.subr.bf16.mxu0 0
    %4025 = vmatpush1.bf16.msra.mxu0 0
    %4026 = vmatprep.subr.bf16.mxu0 0
    %4027 = vmatpush1.bf16.msra.mxu0 0
    %4028 = vmatprep.subr.bf16.mxu0 0
    %4029 = vmatpush1.bf16.msra.mxu0 0
    %4030 = vmatprep.subr.bf16.mxu0 0
    %4031 = vmatpush1.bf16.msra.mxu0 0
    %4032 = vmatprep.subr.bf16.mxu0 0
    %4033 = vmatpush1.bf16.msra.mxu0 0
    %4034 = vmatprep.subr.bf16.mxu0 0
    %4035 = vmatpush1.bf16.msra.mxu0 0
    %4036 = vmatprep.subr.bf16.mxu0 0
    %4037 = vmatpush1.bf16.msra.mxu0 0
    %4038 = vmatprep.subr.bf16.mxu0 0
    %4039 = vmatpush1.bf16.msra.mxu0 0
    %4040 = vmatprep.mubr.bf16.mxu0 0
    %4041 = vmatmul.mubr.bf16.gmra.mrb[0].mxu0 %v3238
    %v4042 = vpop.f32.mrb[0].mxu0
    %v4043 = vadd.f32 0.0, %v4042
    %v4044 = vpop.f32.mrb[0].mxu0
    %v4045 = vadd.f32 0.0, %v4044
    %v4046 = vpop.f32.mrb[0].mxu0
    %v4047 = vpop.f32.mrb[0].mxu0
    %4048 = vdwg.mxu0
    %4049 = vmatprep.subr.bf16.mxu0 %v3755
    %4050 = vmatpush1.bf16.msra.mxu0 %v3754
    %4051 = vmatprep.subr.bf16.mxu0 %v3771
    %4052 = vmatpush1.bf16.msra.mxu0 %v3770
    %4053 = vmatprep.subr.bf16.mxu0 %v3787
    %4054 = vmatpush1.bf16.msra.mxu0 %v3786
    %4055 = vmatprep.subr.bf16.mxu0 %v3803
    %4056 = vmatpush1.bf16.msra.mxu0 %v3802
    %4057 = vmatprep.subr.bf16.mxu0 %v3819
    %4058 = vmatpush1.bf16.msra.mxu0 %v3818
    %4059 = vmatprep.subr.bf16.mxu0 %v3835
    %4060 = vmatpush1.bf16.msra.mxu0 %v3834
    %4061 = vmatprep.subr.bf16.mxu0 %v3851
    %4062 = vmatpush1.bf16.msra.mxu0 %v3850
    %4063 = vmatprep.subr.bf16.mxu0 %v3867
    %4064 = vmatpush1.bf16.msra.mxu0 %v3866
    %4065 = vmatprep.subr.bf16.mxu0 0
    %4066 = vmatpush1.bf16.msra.mxu0 0
    %4067 = vmatprep.subr.bf16.mxu0 0
    %4068 = vmatpush1.bf16.msra.mxu0 0
    %4069 = vmatprep.subr.bf16.mxu0 0
    %4070 = vmatpush1.bf16.msra.mxu0 0
    %4071 = vmatprep.subr.bf16.mxu0 0
    %4072 = vmatpush1.bf16.msra.mxu0 0
    %4073 = vmatprep.subr.bf16.mxu0 0
    %4074 = vmatpush1.bf16.msra.mxu0 0
    %4075 = vmatprep.subr.bf16.mxu0 0
    %4076 = vmatpush1.bf16.msra.mxu0 0
    %4077 = vmatprep.subr.bf16.mxu0 0
    %4078 = vmatpush1.bf16.msra.mxu0 0
    %4079 = vmatprep.subr.bf16.mxu0 0
    %4080 = vmatpush1.bf16.msra.mxu0 0
    %4081 = vmatprep.mubr.bf16.mxu0 0
    %4082 = vmatmul.mubr.bf16.gmra.mrb[0].mxu0 %v3238
    %v4083 = vpop.f32.mrb[0].mxu0
    %v4084 = vadd.f32 0.0, %v4083
    %v4085 = vpop.f32.mrb[0].mxu0
    %v4086 = vadd.f32 0.0, %v4085
    %v4087 = vpop.f32.mrb[0].mxu0
    %v4088 = vpop.f32.mrb[0].mxu0
    %4089 = vdwg.mxu0
    %4090 = vmatprep.subr.bf16.mxu0 %v3757
    %4091 = vmatpush1.bf16.msra.mxu0 %v3756
    %4092 = vmatprep.subr.bf16.mxu0 %v3773
    %4093 = vmatpush1.bf16.msra.mxu0 %v3772
    %4094 = vmatprep.subr.bf16.mxu0 %v3789
    %4095 = vmatpush1.bf16.msra.mxu0 %v3788
    %4096 = vmatprep.subr.bf16.mxu0 %v3805
    %4097 = vmatpush1.bf16.msra.mxu0 %v3804
    %4098 = vmatprep.subr.bf16.mxu0 %v3821
    %4099 = vmatpush1.bf16.msra.mxu0 %v3820
    %4100 = vmatprep.subr.bf16.mxu0 %v3837
    %4101 = vmatpush1.bf16.msra.mxu0 %v3836
    %4102 = vmatprep.subr.bf16.mxu0 %v3853
    %4103 = vmatpush1.bf16.msra.mxu0 %v3852
    %4104 = vmatprep.subr.bf16.mxu0 %v3869
    %4105 = vmatpush1.bf16.msra.mxu0 %v3868
    %4106 = vmatprep.subr.bf16.mxu0 0
    %4107 = vmatpush1.bf16.msra.mxu0 0
    %4108 = vmatprep.subr.bf16.mxu0 0
    %4109 = vmatpush1.bf16.msra.mxu0 0
    %4110 = vmatprep.subr.bf16.mxu0 0
    %4111 = vmatpush1.bf16.msra.mxu0 0
    %4112 = vmatprep.subr.bf16.mxu0 0
    %4113 = vmatpush1.bf16.msra.mxu0 0
    %4114 = vmatprep.subr.bf16.mxu0 0
    %4115 = vmatpush1.bf16.msra.mxu0 0
    %4116 = vmatprep.subr.bf16.mxu0 0
    %4117 = vmatpush1.bf16.msra.mxu0 0
    %4118 = vmatprep.subr.bf16.mxu0 0
    %4119 = vmatpush1.bf16.msra.mxu0 0
    %4120 = vmatprep.subr.bf16.mxu0 0
    %4121 = vmatpush1.bf16.msra.mxu0 0
    %4122 = vmatprep.mubr.bf16.mxu0 0
    %4123 = vmatmul.mubr.bf16.gmra.mrb[0].mxu0 %v3238
    %v4124 = vpop.f32.mrb[0].mxu0
    %v4125 = vadd.f32 0.0, %v4124
    %v4126 = vpop.f32.mrb[0].mxu0
    %v4127 = vadd.f32 0.0, %v4126
    %v4128 = vpop.f32.mrb[0].mxu0
    %v4129 = vpop.f32.mrb[0].mxu0
    %4130 = vdwg.mxu0
    %4131 = vmatprep.subr.bf16.mxu0 %v3759
    %4132 = vmatpush1.bf16.msra.mxu0 %v3758
    %4133 = vmatprep.subr.bf16.mxu0 %v3775
    %4134 = vmatpush1.bf16.msra.mxu0 %v3774
    %4135 = vmatprep.subr.bf16.mxu0 %v3791
    %4136 = vmatpush1.bf16.msra.mxu0 %v3790
    %4137 = vmatprep.subr.bf16.mxu0 %v3807
    %4138 = vmatpush1.bf16.msra.mxu0 %v3806
    %4139 = vmatprep.subr.bf16.mxu0 %v3823
    %4140 = vmatpush1.bf16.msra.mxu0 %v3822
    %4141 = vmatprep.subr.bf16.mxu0 %v3839
    %4142 = vmatpush1.bf16.msra.mxu0 %v3838
    %4143 = vmatprep.subr.bf16.mxu0 %v3855
    %4144 = vmatpush1.bf16.msra.mxu0 %v3854
    %4145 = vmatprep.subr.bf16.mxu0 %v3871
    %4146 = vmatpush1.bf16.msra.mxu0 %v3870
    %4147 = vmatprep.subr.bf16.mxu0 0
    %4148 = vmatpush1.bf16.msra.mxu0 0
    %4149 = vmatprep.subr.bf16.mxu0 0
    %4150 = vmatpush1.bf16.msra.mxu0 0
    %4151 = vmatprep.subr.bf16.mxu0 0
    %4152 = vmatpush1.bf16.msra.mxu0 0
    %4153 = vmatprep.subr.bf16.mxu0 0
    %4154 = vmatpush1.bf16.msra.mxu0 0
    %4155 = vmatprep.subr.bf16.mxu0 0
    %4156 = vmatpush1.bf16.msra.mxu0 0
    %4157 = vmatprep.subr.bf16.mxu0 0
    %4158 = vmatpush1.bf16.msra.mxu0 0
    %4159 = vmatprep.subr.bf16.mxu0 0
    %4160 = vmatpush1.bf16.msra.mxu0 0
    %4161 = vmatprep.subr.bf16.mxu0 0
    %4162 = vmatpush1.bf16.msra.mxu0 0
    %4163 = vmatprep.mubr.bf16.mxu0 0
    %4164 = vmatmul.mubr.bf16.gmra.mrb[0].mxu0 %v3238
    %v4165 = vpop.f32.mrb[0].mxu0
    %v4166 = vadd.f32 0.0, %v4165
    %v4167 = vpop.f32.mrb[0].mxu0
    %v4168 = vadd.f32 0.0, %v4167
    %v4169 = vpop.f32.mrb[0].mxu0
    %v4170 = vpop.f32.mrb[0].mxu0
    %4171 = vdwg.mxu0
    %4172 = vmatprep.subr.bf16.mxu0 %v3761
    %4173 = vmatpush1.bf16.msra.mxu0 %v3760
    %4174 = vmatprep.subr.bf16.mxu0 %v3777
    %4175 = vmatpush1.bf16.msra.mxu0 %v3776
    %4176 = vmatprep.subr.bf16.mxu0 %v3793
    %4177 = vmatpush1.bf16.msra.mxu0 %v3792
    %4178 = vmatprep.subr.bf16.mxu0 %v3809
    %4179 = vmatpush1.bf16.msra.mxu0 %v3808
    %4180 = vmatprep.subr.bf16.mxu0 %v3825
    %4181 = vmatpush1.bf16.msra.mxu0 %v3824
    %4182 = vmatprep.subr.bf16.mxu0 %v3841
    %4183 = vmatpush1.bf16.msra.mxu0 %v3840
    %4184 = vmatprep.subr.bf16.mxu0 %v3857
    %4185 = vmatpush1.bf16.msra.mxu0 %v3856
    %4186 = vmatprep.subr.bf16.mxu0 %v3873
    %4187 = vmatpush1.bf16.msra.mxu0 %v3872
    %4188 = vmatprep.subr.bf16.mxu0 0
    %4189 = vmatpush1.bf16.msra.mxu0 0
    %4190 = vmatprep.subr.bf16.mxu0 0
    %4191 = vmatpush1.bf16.msra.mxu0 0
    %4192 = vmatprep.subr.bf16.mxu0 0
    %4193 = vmatpush1.bf16.msra.mxu0 0
    %4194 = vmatprep.subr.bf16.mxu0 0
    %4195 = vmatpush1.bf16.msra.mxu0 0
    %4196 = vmatprep.subr.bf16.mxu0 0
    %4197 = vmatpush1.bf16.msra.mxu0 0
    %4198 = vmatprep.subr.bf16.mxu0 0
    %4199 = vmatpush1.bf16.msra.mxu0 0
    %4200 = vmatprep.subr.bf16.mxu0 0
    %4201 = vmatpush1.bf16.msra.mxu0 0
    %4202 = vmatprep.subr.bf16.mxu0 0
    %4203 = vmatpush1.bf16.msra.mxu0 0
    %4204 = vmatprep.mubr.bf16.mxu0 0
    %4205 = vmatmul.mubr.bf16.gmra.mrb[0].mxu0 %v3238
    %v4206 = vpop.f32.mrb[0].mxu0
    %v4207 = vadd.f32 0.0, %v4206
    %v4208 = vpop.f32.mrb[0].mxu0
    %v4209 = vadd.f32 0.0, %v4208
    %v4210 = vpop.f32.mrb[0].mxu0
    %v4211 = vpop.f32.mrb[0].mxu0
    %4212 = vdwg.mxu0
    %4213 = vmatprep.subr.bf16.mxu0 %v3763
    %4214 = vmatpush1.bf16.msra.mxu0 %v3762
    %4215 = vmatprep.subr.bf16.mxu0 %v3779
    %4216 = vmatpush1.bf16.msra.mxu0 %v3778
    %4217 = vmatprep.subr.bf16.mxu0 %v3795
    %4218 = vmatpush1.bf16.msra.mxu0 %v3794
    %4219 = vmatprep.subr.bf16.mxu0 %v3811
    %4220 = vmatpush1.bf16.msra.mxu0 %v3810
    %4221 = vmatprep.subr.bf16.mxu0 %v3827
    %4222 = vmatpush1.bf16.msra.mxu0 %v3826
    %4223 = vmatprep.subr.bf16.mxu0 %v3843
    %4224 = vmatpush1.bf16.msra.mxu0 %v3842
    %4225 = vmatprep.subr.bf16.mxu0 %v3859
    %4226 = vmatpush1.bf16.msra.mxu0 %v3858
    %4227 = vmatprep.subr.bf16.mxu0 %v3875
    %4228 = vmatpush1.bf16.msra.mxu0 %v3874
    %4229 = vmatprep.subr.bf16.mxu0 0
    %4230 = vmatpush1.bf16.msra.mxu0 0
    %4231 = vmatprep.subr.bf16.mxu0 0
    %4232 = vmatpush1.bf16.msra.mxu0 0
    %4233 = vmatprep.subr.bf16.mxu0 0
    %4234 = vmatpush1.bf16.msra.mxu0 0
    %4235 = vmatprep.subr.bf16.mxu0 0
    %4236 = vmatpush1.bf16.msra.mxu0 0
    %4237 = vmatprep.subr.bf16.mxu0 0
    %4238 = vmatpush1.bf16.msra.mxu0 0
    %4239 = vmatprep.subr.bf16.mxu0 0
    %4240 = vmatpush1.bf16.msra.mxu0 0
    %4241 = vmatprep.subr.bf16.mxu0 0
    %4242 = vmatpush1.bf16.msra.mxu0 0
    %4243 = vmatprep.subr.bf16.mxu0 0
    %4244 = vmatpush1.bf16.msra.mxu0 0
    %4245 = vmatprep.mubr.bf16.mxu0 0
    %4246 = vmatmul.mubr.bf16.gmra.mrb[0].mxu0 %v3238
    %v4247 = vpop.f32.mrb[0].mxu0
    %v4248 = vadd.f32 0.0, %v4247
    %v4249 = vpop.f32.mrb[0].mxu0
    %v4250 = vadd.f32 0.0, %v4249
    %v4251 = vpop.f32.mrb[0].mxu0
    %v4252 = vpop.f32.mrb[0].mxu0
    %4253 = vdwg.mxu0
    %4254 = vmatprep.subr.bf16.mxu0 %v3765
    %4255 = vmatpush1.bf16.msra.mxu0 %v3764
    %4256 = vmatprep.subr.bf16.mxu0 %v3781
    %4257 = vmatpush1.bf16.msra.mxu0 %v3780
    %4258 = vmatprep.subr.bf16.mxu0 %v3797
    %4259 = vmatpush1.bf16.msra.mxu0 %v3796
    %4260 = vmatprep.subr.bf16.mxu0 %v3813
    %4261 = vmatpush1.bf16.msra.mxu0 %v3812
    %4262 = vmatprep.subr.bf16.mxu0 %v3829
    %4263 = vmatpush1.bf16.msra.mxu0 %v3828
    %4264 = vmatprep.subr.bf16.mxu0 %v3845
    %4265 = vmatpush1.bf16.msra.mxu0 %v3844
    %4266 = vmatprep.subr.bf16.mxu0 %v3861
    %4267 = vmatpush1.bf16.msra.mxu0 %v3860
    %4268 = vmatprep.subr.bf16.mxu0 %v3877
    %4269 = vmatpush1.bf16.msra.mxu0 %v3876
    %4270 = vmatprep.subr.bf16.mxu0 0
    %4271 = vmatpush1.bf16.msra.mxu0 0
    %4272 = vmatprep.subr.bf16.mxu0 0
    %4273 = vmatpush1.bf16.msra.mxu0 0
    %4274 = vmatprep.subr.bf16.mxu0 0
    %4275 = vmatpush1.bf16.msra.mxu0 0
    %4276 = vmatprep.subr.bf16.mxu0 0
    %4277 = vmatpush1.bf16.msra.mxu0 0
    %4278 = vmatprep.subr.bf16.mxu0 0
    %4279 = vmatpush1.bf16.msra.mxu0 0
    %4280 = vmatprep.subr.bf16.mxu0 0
    %4281 = vmatpush1.bf16.msra.mxu0 0
    %4282 = vmatprep.subr.bf16.mxu0 0
    %4283 = vmatpush1.bf16.msra.mxu0 0
    %4284 = vmatprep.subr.bf16.mxu0 0
    %4285 = vmatpush1.bf16.msra.mxu0 0
    %4286 = vmatprep.mubr.bf16.mxu0 0
    %4287 = vmatmul.mubr.bf16.gmra.mrb[0].mxu0 %v3238
    %v4288 = vpop.f32.mrb[0].mxu0
    %v4289 = vadd.f32 0.0, %v4288
    %v4290 = vpop.f32.mrb[0].mxu0
    %v4291 = vadd.f32 0.0, %v4290
    %v4292 = vpop.f32.mrb[0].mxu0
    %v4293 = vpop.f32.mrb[0].mxu0
    %4294 = vdwg.mxu0
    %4295 = vmatprep.subr.bf16.mxu0 %v3767
    %4296 = vmatpush1.bf16.msra.mxu0 %v3766
    %4297 = vmatprep.subr.bf16.mxu0 %v3783
    %4298 = vmatpush1.bf16.msra.mxu0 %v3782
    %4299 = vmatprep.subr.bf16.mxu0 %v3799
    %4300 = vmatpush1.bf16.msra.mxu0 %v3798
    %4301 = vmatprep.subr.bf16.mxu0 %v3815
    %4302 = vmatpush1.bf16.msra.mxu0 %v3814
    %4303 = vmatprep.subr.bf16.mxu0 %v3831
    %4304 = vmatpush1.bf16.msra.mxu0 %v3830
    %4305 = vmatprep.subr.bf16.mxu0 %v3847
    %4306 = vmatpush1.bf16.msra.mxu0 %v3846
    %4307 = vmatprep.subr.bf16.mxu0 %v3863
    %4308 = vmatpush1.bf16.msra.mxu0 %v3862
    %4309 = vmatprep.subr.bf16.mxu0 %v3879
    %4310 = vmatpush1.bf16.msra.mxu0 %v3878
    %4311 = vmatprep.subr.bf16.mxu0 0
    %4312 = vmatpush1.bf16.msra.mxu0 0
    %4313 = vmatprep.subr.bf16.mxu0 0
    %4314 = vmatpush1.bf16.msra.mxu0 0
    %4315 = vmatprep.subr.bf16.mxu0 0
    %4316 = vmatpush1.bf16.msra.mxu0 0
    %4317 = vmatprep.subr.bf16.mxu0 0
    %4318 = vmatpush1.bf16.msra.mxu0 0
    %4319 = vmatprep.subr.bf16.mxu0 0
    %4320 = vmatpush1.bf16.msra.mxu0 0
    %4321 = vmatprep.subr.bf16.mxu0 0
    %4322 = vmatpush1.bf16.msra.mxu0 0
    %4323 = vmatprep.subr.bf16.mxu0 0
    %4324 = vmatpush1.bf16.msra.mxu0 0
    %4325 = vmatprep.subr.bf16.mxu0 0
    %4326 = vmatpush1.bf16.msra.mxu0 0
    %4327 = vmatprep.mubr.bf16.mxu0 0
    %4328 = vmatmul.mubr.bf16.gmra.mrb[0].mxu0 %v3238
    %v4329 = vpop.f32.mrb[0].mxu0
    %v4330 = vadd.f32 0.0, %v4329
    %v4331 = vpop.f32.mrb[0].mxu0
    %v4332 = vadd.f32 0.0, %v4331
    %v4333 = vpop.f32.mrb[0].mxu0
    %v4334 = vpop.f32.mrb[0].mxu0
    %4335 = vdwg.mxu0
    %v4336 = vpack.c.bf16 %v4043, %v4043
    %v4337 = vpack.c.bf16 %v4045, %v4045
    %v4338 = vpack.c.bf16 %v4084, %v4084
    %v4339 = vpack.c.bf16 %v4086, %v4086
    %v4340 = vpack.c.bf16 %v4125, %v4125
    %v4341 = vpack.c.bf16 %v4127, %v4127
    %v4342 = vpack.c.bf16 %v4166, %v4166
    %v4343 = vpack.c.bf16 %v4168, %v4168
    %v4344 = vpack.c.bf16 %v4207, %v4207
    %v4345 = vpack.c.bf16 %v4209, %v4209
    %v4346 = vpack.c.bf16 %v4248, %v4248
    %v4347 = vpack.c.bf16 %v4250, %v4250
    %v4348 = vpack.c.bf16 %v4289, %v4289
    %v4349 = vpack.c.bf16 %v4291, %v4291
    %v4350 = vpack.c.bf16 %v4330, %v4330
    %v4351 = vpack.c.bf16 %v4332, %v4332
    %s4352 = scalar_lea.vmem [#allocation11], 16
    %v4353 = vld [vmem:[%s4352] sm:$0xff]
    %v4354 = vld [vmem:[%s4352 + $0x8] sm:$0xff]
    %v4357 = vlaneseq
    %v4358 = vshrl.u32 %v4357, 7
    %v4359 = vsub.s32 0, %v4358
    %v4360 = vrot.slane %v4353, %v4359
    %v4361 = vlaneseq
    %v4362 = vshrl.u32 %v4361, 7
    %v4363 = vsub.s32 1, %v4362
    %v4364 = vrot.slane %v4353, %v4363
    %v4365 = vlaneseq
    %v4366 = vshrl.u32 %v4365, 7
    %v4367 = vsub.s32 2, %v4366
    %v4368 = vrot.slane %v4353, %v4367
    %v4369 = vlaneseq
    %v4370 = vshrl.u32 %v4369, 7
    %v4371 = vsub.s32 3, %v4370
    %v4372 = vrot.slane %v4353, %v4371
    %v4373 = vlaneseq
    %v4374 = vshrl.u32 %v4373, 7
    %v4375 = vsub.s32 4, %v4374
    %v4376 = vrot.slane %v4353, %v4375
    %v4377 = vlaneseq
    %v4378 = vshrl.u32 %v4377, 7
    %v4379 = vsub.s32 5, %v4378
    %v4380 = vrot.slane %v4353, %v4379
    %v4381 = vlaneseq
    %v4382 = vshrl.u32 %v4381, 7
    %v4383 = vsub.s32 6, %v4382
    %v4384 = vrot.slane %v4353, %v4383
    %v4385 = vlaneseq
    %v4386 = vshrl.u32 %v4385, 7
    %v4387 = vsub.s32 7, %v4386
    %v4388 = vrot.slane %v4353, %v4387
    %v4389 = vlaneseq
    %v4390 = vshrl.u32 %v4389, 7
    %v4391 = vsub.s32 0, %v4390
    %v4392 = vrot.slane %v4354, %v4391
    %v4393 = vlaneseq
    %v4394 = vshrl.u32 %v4393, 7
    %v4395 = vsub.s32 1, %v4394
    %v4396 = vrot.slane %v4354, %v4395
    %v4397 = vlaneseq
    %v4398 = vshrl.u32 %v4397, 7
    %v4399 = vsub.s32 2, %v4398
    %v4400 = vrot.slane %v4354, %v4399
    %v4401 = vlaneseq
    %v4402 = vshrl.u32 %v4401, 7
    %v4403 = vsub.s32 3, %v4402
    %v4404 = vrot.slane %v4354, %v4403
    %v4405 = vlaneseq
    %v4406 = vshrl.u32 %v4405, 7
    %v4407 = vsub.s32 4, %v4406
    %v4408 = vrot.slane %v4354, %v4407
    %v4409 = vlaneseq
    %v4410 = vshrl.u32 %v4409, 7
    %v4411 = vsub.s32 5, %v4410
    %v4412 = vrot.slane %v4354, %v4411
    %v4413 = vlaneseq
    %v4414 = vshrl.u32 %v4413, 7
    %v4415 = vsub.s32 6, %v4414
    %v4416 = vrot.slane %v4354, %v4415
    %v4417 = vlaneseq
    %v4418 = vshrl.u32 %v4417, 7
    %v4419 = vsub.s32 7, %v4418
    %v4420 = vrot.slane %v4354, %v4419
    %v4437 = vpack.c.bf16 %v4360, %v4360
    %v4438 = vpack.c.bf16 %v4364, %v4364
    %v4439 = vpack.c.bf16 %v4368, %v4368
    %v4440 = vpack.c.bf16 %v4372, %v4372
    %v4441 = vpack.c.bf16 %v4376, %v4376
    %v4442 = vpack.c.bf16 %v4380, %v4380
    %v4443 = vpack.c.bf16 %v4384, %v4384
    %v4444 = vpack.c.bf16 %v4388, %v4388
    %v4445 = vpack.c.bf16 %v4392, %v4392
    %v4446 = vpack.c.bf16 %v4396, %v4396
    %v4447 = vpack.c.bf16 %v4400, %v4400
    %v4448 = vpack.c.bf16 %v4404, %v4404
    %v4449 = vpack.c.bf16 %v4408, %v4408
    %v4450 = vpack.c.bf16 %v4412, %v4412
    %v4451 = vpack.c.bf16 %v4416, %v4416
    %v4452 = vpack.c.bf16 %v4420, %v4420
    %v4454 = vpack.i.b16 %v4437, %v4437
    %v4456 = vlaneseq
    %v4457 = vshrl.u32 %v4456, 7
    %v4458 = vsub.s32 0, %v4457
    %v4459 = vrot.slane %v4454, %v4458
    %v4461 = vpack.i.b16 %v4438, %v4438
    %v4463 = vlaneseq
    %v4464 = vshrl.u32 %v4463, 7
    %v4465 = vsub.s32 0, %v4464
    %v4466 = vrot.slane %v4461, %v4465
    %v4468 = vpack.i.b16 %v4439, %v4439
    %v4470 = vlaneseq
    %v4471 = vshrl.u32 %v4470, 7
    %v4472 = vsub.s32 0, %v4471
    %v4473 = vrot.slane %v4468, %v4472
    %v4475 = vpack.i.b16 %v4440, %v4440
    %v4477 = vlaneseq
    %v4478 = vshrl.u32 %v4477, 7
    %v4479 = vsub.s32 0, %v4478
    %v4480 = vrot.slane %v4475, %v4479
    %v4482 = vpack.i.b16 %v4441, %v4441
    %v4484 = vlaneseq
    %v4485 = vshrl.u32 %v4484, 7
    %v4486 = vsub.s32 0, %v4485
    %v4487 = vrot.slane %v4482, %v4486
    %v4489 = vpack.i.b16 %v4442, %v4442
    %v4491 = vlaneseq
    %v4492 = vshrl.u32 %v4491, 7
    %v4493 = vsub.s32 0, %v4492
    %v4494 = vrot.slane %v4489, %v4493
    %v4496 = vpack.i.b16 %v4443, %v4443
    %v4498 = vlaneseq
    %v4499 = vshrl.u32 %v4498, 7
    %v4500 = vsub.s32 0, %v4499
    %v4501 = vrot.slane %v4496, %v4500
    %v4503 = vpack.i.b16 %v4444, %v4444
    %v4505 = vlaneseq
    %v4506 = vshrl.u32 %v4505, 7
    %v4507 = vsub.s32 0, %v4506
    %v4508 = vrot.slane %v4503, %v4507
    %v4510 = vpack.i.b16 %v4445, %v4445
    %v4512 = vlaneseq
    %v4513 = vshrl.u32 %v4512, 7
    %v4514 = vsub.s32 0, %v4513
    %v4515 = vrot.slane %v4510, %v4514
    %v4517 = vpack.i.b16 %v4446, %v4446
    %v4519 = vlaneseq
    %v4520 = vshrl.u32 %v4519, 7
    %v4521 = vsub.s32 0, %v4520
    %v4522 = vrot.slane %v4517, %v4521
    %v4524 = vpack.i.b16 %v4447, %v4447
    %v4526 = vlaneseq
    %v4527 = vshrl.u32 %v4526, 7
    %v4528 = vsub.s32 0, %v4527
    %v4529 = vrot.slane %v4524, %v4528
    %v4531 = vpack.i.b16 %v4448, %v4448
    %v4533 = vlaneseq
    %v4534 = vshrl.u32 %v4533, 7
    %v4535 = vsub.s32 0, %v4534
    %v4536 = vrot.slane %v4531, %v4535
    %v4538 = vpack.i.b16 %v4449, %v4449
    %v4540 = vlaneseq
    %v4541 = vshrl.u32 %v4540, 7
    %v4542 = vsub.s32 0, %v4541
    %v4543 = vrot.slane %v4538, %v4542
    %v4545 = vpack.i.b16 %v4450, %v4450
    %v4547 = vlaneseq
    %v4548 = vshrl.u32 %v4547, 7
    %v4549 = vsub.s32 0, %v4548
    %v4550 = vrot.slane %v4545, %v4549
    %v4552 = vpack.i.b16 %v4451, %v4451
    %v4554 = vlaneseq
    %v4555 = vshrl.u32 %v4554, 7
    %v4556 = vsub.s32 0, %v4555
    %v4557 = vrot.slane %v4552, %v4556
    %v4559 = vpack.i.b16 %v4452, %v4452
    %v4561 = vlaneseq
    %v4562 = vshrl.u32 %v4561, 7
    %v4563 = vsub.s32 0, %v4562
    %v4564 = vrot.slane %v4559, %v4563
    %v4565 = vadd.bf16 %v4336, %v4459
    %v4566 = vadd.bf16 %v4337, %v4466
    %v4567 = vadd.bf16 %v4338, %v4473
    %v4568 = vadd.bf16 %v4339, %v4480
    %v4569 = vadd.bf16 %v4340, %v4487
    %v4570 = vadd.bf16 %v4341, %v4494
    %v4571 = vadd.bf16 %v4342, %v4501
    %v4572 = vadd.bf16 %v4343, %v4508
    %v4573 = vadd.bf16 %v4344, %v4515
    %v4574 = vadd.bf16 %v4345, %v4522
    %v4575 = vadd.bf16 %v4346, %v4529
    %v4576 = vadd.bf16 %v4347, %v4536
    %v4577 = vadd.bf16 %v4348, %v4543
    %v4578 = vadd.bf16 %v4349, %v4550
    %v4579 = vadd.bf16 %v4350, %v4557
    %v4580 = vadd.bf16 %v4351, %v4564
    %v4581 = vmax.bf16 %v4565, 0
    %v4582 = vmax.bf16 %v4566, 0
    %v4583 = vmax.bf16 %v4567, 0
    %v4584 = vmax.bf16 %v4568, 0
    %v4585 = vmax.bf16 %v4569, 0
    %v4586 = vmax.bf16 %v4570, 0
    %v4587 = vmax.bf16 %v4571, 0
    %v4588 = vmax.bf16 %v4572, 0
    %v4589 = vmax.bf16 %v4573, 0
    %v4590 = vmax.bf16 %v4574, 0
    %v4591 = vmax.bf16 %v4575, 0
    %v4592 = vmax.bf16 %v4576, 0
    %v4593 = vmax.bf16 %v4577, 0
    %v4594 = vmax.bf16 %v4578, 0
    %v4595 = vmax.bf16 %v4579, 0
    %v4596 = vmax.bf16 %v4580, 0
    %s4597 = scalar_lea.vmem [#allocation13], 1024
    %v4598 = vld [vmem:[%s4597] sm:$0xf]
    %v4599 = vld [vmem:[%s4597 + $0x4] sm:$0xf]
    %v4600 = vld [vmem:[%s4597 + $0x8] sm:$0xf]
    %v4601 = vld [vmem:[%s4597 + $0xc] sm:$0xf]
    %v4602 = vld [vmem:[%s4597 + $0x10] sm:$0xf]
    %v4603 = vld [vmem:[%s4597 + $0x14] sm:$0xf]
    %v4604 = vld [vmem:[%s4597 + $0x18] sm:$0xf]
    %v4605 = vld [vmem:[%s4597 + $0x1c] sm:$0xf]
    %v4606 = vld [vmem:[%s4597 + $0x20] sm:$0xf]
    %v4607 = vld [vmem:[%s4597 + $0x24] sm:$0xf]
    %v4608 = vld [vmem:[%s4597 + $0x28] sm:$0xf]
    %v4609 = vld [vmem:[%s4597 + $0x2c] sm:$0xf]
    %v4610 = vld [vmem:[%s4597 + $0x30] sm:$0xf]
    %v4611 = vld [vmem:[%s4597 + $0x34] sm:$0xf]
    %v4612 = vld [vmem:[%s4597 + $0x38] sm:$0xf]
    %v4613 = vld [vmem:[%s4597 + $0x3c] sm:$0xf]
    %v4614 = vld [vmem:[%s4597 + $0x40] sm:$0xf]
    %v4615 = vld [vmem:[%s4597 + $0x44] sm:$0xf]
    %v4616 = vld [vmem:[%s4597 + $0x48] sm:$0xf]
    %v4617 = vld [vmem:[%s4597 + $0x4c] sm:$0xf]
    %v4618 = vld [vmem:[%s4597 + $0x50] sm:$0xf]
    %v4619 = vld [vmem:[%s4597 + $0x54] sm:$0xf]
    %v4620 = vld [vmem:[%s4597 + $0x58] sm:$0xf]
    %v4621 = vld [vmem:[%s4597 + $0x5c] sm:$0xf]
    %v4622 = vld [vmem:[%s4597 + $0x60] sm:$0xf]
    %v4623 = vld [vmem:[%s4597 + $0x64] sm:$0xf]
    %v4624 = vld [vmem:[%s4597 + $0x68] sm:$0xf]
    %v4625 = vld [vmem:[%s4597 + $0x6c] sm:$0xf]
    %v4626 = vld [vmem:[%s4597 + $0x70] sm:$0xf]
    %v4627 = vld [vmem:[%s4597 + $0x74] sm:$0xf]
    %v4628 = vld [vmem:[%s4597 + $0x78] sm:$0xf]
    %v4629 = vld [vmem:[%s4597 + $0x7c] sm:$0xf]
    %v4630 = vld [vmem:[%s4597 + $0x80] sm:$0xf]
    %v4631 = vld [vmem:[%s4597 + $0x84] sm:$0xf]
    %v4632 = vld [vmem:[%s4597 + $0x88] sm:$0xf]
    %v4633 = vld [vmem:[%s4597 + $0x8c] sm:$0xf]
    %v4634 = vld [vmem:[%s4597 + $0x90] sm:$0xf]
    %v4635 = vld [vmem:[%s4597 + $0x94] sm:$0xf]
    %v4636 = vld [vmem:[%s4597 + $0x98] sm:$0xf]
    %v4637 = vld [vmem:[%s4597 + $0x9c] sm:$0xf]
    %v4638 = vld [vmem:[%s4597 + $0xa0] sm:$0xf]
    %v4639 = vld [vmem:[%s4597 + $0xa4] sm:$0xf]
    %v4640 = vld [vmem:[%s4597 + $0xa8] sm:$0xf]
    %v4641 = vld [vmem:[%s4597 + $0xac] sm:$0xf]
    %v4642 = vld [vmem:[%s4597 + $0xb0] sm:$0xf]
    %v4643 = vld [vmem:[%s4597 + $0xb4] sm:$0xf]
    %v4644 = vld [vmem:[%s4597 + $0xb8] sm:$0xf]
    %v4645 = vld [vmem:[%s4597 + $0xbc] sm:$0xf]
    %v4646 = vld [vmem:[%s4597 + $0xc0] sm:$0xf]
    %v4647 = vld [vmem:[%s4597 + $0xc4] sm:$0xf]
    %v4648 = vld [vmem:[%s4597 + $0xc8] sm:$0xf]
    %v4649 = vld [vmem:[%s4597 + $0xcc] sm:$0xf]
    %v4650 = vld [vmem:[%s4597 + $0xd0] sm:$0xf]
    %v4651 = vld [vmem:[%s4597 + $0xd4] sm:$0xf]
    %v4652 = vld [vmem:[%s4597 + $0xd8] sm:$0xf]
    %v4653 = vld [vmem:[%s4597 + $0xdc] sm:$0xf]
    %v4654 = vld [vmem:[%s4597 + $0xe0] sm:$0xf]
    %v4655 = vld [vmem:[%s4597 + $0xe4] sm:$0xf]
    %v4656 = vld [vmem:[%s4597 + $0xe8] sm:$0xf]
    %v4657 = vld [vmem:[%s4597 + $0xec] sm:$0xf]
    %v4658 = vld [vmem:[%s4597 + $0xf0] sm:$0xf]
    %v4659 = vld [vmem:[%s4597 + $0xf4] sm:$0xf]
    %v4660 = vld [vmem:[%s4597 + $0xf8] sm:$0xf]
    %v4661 = vld [vmem:[%s4597 + $0xfc] sm:$0xf]
    %v4662 = vld [vmem:[%s4597 + $0x100] sm:$0xf]
    %v4663 = vld [vmem:[%s4597 + $0x104] sm:$0xf]
    %v4664 = vld [vmem:[%s4597 + $0x108] sm:$0xf]
    %v4665 = vld [vmem:[%s4597 + $0x10c] sm:$0xf]
    %v4666 = vld [vmem:[%s4597 + $0x110] sm:$0xf]
    %v4667 = vld [vmem:[%s4597 + $0x114] sm:$0xf]
    %v4668 = vld [vmem:[%s4597 + $0x118] sm:$0xf]
    %v4669 = vld [vmem:[%s4597 + $0x11c] sm:$0xf]
    %v4670 = vld [vmem:[%s4597 + $0x120] sm:$0xf]
    %v4671 = vld [vmem:[%s4597 + $0x124] sm:$0xf]
    %v4672 = vld [vmem:[%s4597 + $0x128] sm:$0xf]
    %v4673 = vld [vmem:[%s4597 + $0x12c] sm:$0xf]
    %v4674 = vld [vmem:[%s4597 + $0x130] sm:$0xf]
    %v4675 = vld [vmem:[%s4597 + $0x134] sm:$0xf]
    %v4676 = vld [vmem:[%s4597 + $0x138] sm:$0xf]
    %v4677 = vld [vmem:[%s4597 + $0x13c] sm:$0xf]
    %v4678 = vld [vmem:[%s4597 + $0x140] sm:$0xf]
    %v4679 = vld [vmem:[%s4597 + $0x144] sm:$0xf]
    %v4680 = vld [vmem:[%s4597 + $0x148] sm:$0xf]
    %v4681 = vld [vmem:[%s4597 + $0x14c] sm:$0xf]
    %v4682 = vld [vmem:[%s4597 + $0x150] sm:$0xf]
    %v4683 = vld [vmem:[%s4597 + $0x154] sm:$0xf]
    %v4684 = vld [vmem:[%s4597 + $0x158] sm:$0xf]
    %v4685 = vld [vmem:[%s4597 + $0x15c] sm:$0xf]
    %v4686 = vld [vmem:[%s4597 + $0x160] sm:$0xf]
    %v4687 = vld [vmem:[%s4597 + $0x164] sm:$0xf]
    %v4688 = vld [vmem:[%s4597 + $0x168] sm:$0xf]
    %v4689 = vld [vmem:[%s4597 + $0x16c] sm:$0xf]
    %v4690 = vld [vmem:[%s4597 + $0x170] sm:$0xf]
    %v4691 = vld [vmem:[%s4597 + $0x174] sm:$0xf]
    %v4692 = vld [vmem:[%s4597 + $0x178] sm:$0xf]
    %v4693 = vld [vmem:[%s4597 + $0x17c] sm:$0xf]
    %v4694 = vld [vmem:[%s4597 + $0x180] sm:$0xf]
    %v4695 = vld [vmem:[%s4597 + $0x184] sm:$0xf]
    %v4696 = vld [vmem:[%s4597 + $0x188] sm:$0xf]
    %v4697 = vld [vmem:[%s4597 + $0x18c] sm:$0xf]
    %v4698 = vld [vmem:[%s4597 + $0x190] sm:$0xf]
    %v4699 = vld [vmem:[%s4597 + $0x194] sm:$0xf]
    %v4700 = vld [vmem:[%s4597 + $0x198] sm:$0xf]
    %v4701 = vld [vmem:[%s4597 + $0x19c] sm:$0xf]
    %v4702 = vld [vmem:[%s4597 + $0x1a0] sm:$0xf]
    %v4703 = vld [vmem:[%s4597 + $0x1a4] sm:$0xf]
    %v4704 = vld [vmem:[%s4597 + $0x1a8] sm:$0xf]
    %v4705 = vld [vmem:[%s4597 + $0x1ac] sm:$0xf]
    %v4706 = vld [vmem:[%s4597 + $0x1b0] sm:$0xf]
    %v4707 = vld [vmem:[%s4597 + $0x1b4] sm:$0xf]
    %v4708 = vld [vmem:[%s4597 + $0x1b8] sm:$0xf]
    %v4709 = vld [vmem:[%s4597 + $0x1bc] sm:$0xf]
    %v4710 = vld [vmem:[%s4597 + $0x1c0] sm:$0xf]
    %v4711 = vld [vmem:[%s4597 + $0x1c4] sm:$0xf]
    %v4712 = vld [vmem:[%s4597 + $0x1c8] sm:$0xf]
    %v4713 = vld [vmem:[%s4597 + $0x1cc] sm:$0xf]
    %v4714 = vld [vmem:[%s4597 + $0x1d0] sm:$0xf]
    %v4715 = vld [vmem:[%s4597 + $0x1d4] sm:$0xf]
    %v4716 = vld [vmem:[%s4597 + $0x1d8] sm:$0xf]
    %v4717 = vld [vmem:[%s4597 + $0x1dc] sm:$0xf]
    %v4718 = vld [vmem:[%s4597 + $0x1e0] sm:$0xf]
    %v4719 = vld [vmem:[%s4597 + $0x1e4] sm:$0xf]
    %v4720 = vld [vmem:[%s4597 + $0x1e8] sm:$0xf]
    %v4721 = vld [vmem:[%s4597 + $0x1ec] sm:$0xf]
    %v4722 = vld [vmem:[%s4597 + $0x1f0] sm:$0xf]
    %v4723 = vld [vmem:[%s4597 + $0x1f4] sm:$0xf]
    %v4724 = vld [vmem:[%s4597 + $0x1f8] sm:$0xf]
    %v4725 = vld [vmem:[%s4597 + $0x1fc] sm:$0xf]
    %v4726 = vld [vmem:[%s4597 + $0x200] sm:$0xf]
    %v4727 = vld [vmem:[%s4597 + $0x204] sm:$0xf]
    %v4728 = vld [vmem:[%s4597 + $0x208] sm:$0xf]
    %v4729 = vld [vmem:[%s4597 + $0x20c] sm:$0xf]
    %v4730 = vld [vmem:[%s4597 + $0x210] sm:$0xf]
    %v4731 = vld [vmem:[%s4597 + $0x214] sm:$0xf]
    %v4732 = vld [vmem:[%s4597 + $0x218] sm:$0xf]
    %v4733 = vld [vmem:[%s4597 + $0x21c] sm:$0xf]
    %v4734 = vld [vmem:[%s4597 + $0x220] sm:$0xf]
    %v4735 = vld [vmem:[%s4597 + $0x224] sm:$0xf]
    %v4736 = vld [vmem:[%s4597 + $0x228] sm:$0xf]
    %v4737 = vld [vmem:[%s4597 + $0x22c] sm:$0xf]
    %v4738 = vld [vmem:[%s4597 + $0x230] sm:$0xf]
    %v4739 = vld [vmem:[%s4597 + $0x234] sm:$0xf]
    %v4740 = vld [vmem:[%s4597 + $0x238] sm:$0xf]
    %v4741 = vld [vmem:[%s4597 + $0x23c] sm:$0xf]
    %v4742 = vld [vmem:[%s4597 + $0x240] sm:$0xf]
    %v4743 = vld [vmem:[%s4597 + $0x244] sm:$0xf]
    %v4744 = vld [vmem:[%s4597 + $0x248] sm:$0xf]
    %v4745 = vld [vmem:[%s4597 + $0x24c] sm:$0xf]
    %v4746 = vld [vmem:[%s4597 + $0x250] sm:$0xf]
    %v4747 = vld [vmem:[%s4597 + $0x254] sm:$0xf]
    %v4748 = vld [vmem:[%s4597 + $0x258] sm:$0xf]
    %v4749 = vld [vmem:[%s4597 + $0x25c] sm:$0xf]
    %v4750 = vld [vmem:[%s4597 + $0x260] sm:$0xf]
    %v4751 = vld [vmem:[%s4597 + $0x264] sm:$0xf]
    %v4752 = vld [vmem:[%s4597 + $0x268] sm:$0xf]
    %v4753 = vld [vmem:[%s4597 + $0x26c] sm:$0xf]
    %v4754 = vld [vmem:[%s4597 + $0x270] sm:$0xf]
    %v4755 = vld [vmem:[%s4597 + $0x274] sm:$0xf]
    %v4756 = vld [vmem:[%s4597 + $0x278] sm:$0xf]
    %v4757 = vld [vmem:[%s4597 + $0x27c] sm:$0xf]
    %v4758 = vld [vmem:[%s4597 + $0x280] sm:$0xf]
    %v4759 = vld [vmem:[%s4597 + $0x284] sm:$0xf]
    %v4760 = vld [vmem:[%s4597 + $0x288] sm:$0xf]
    %v4761 = vld [vmem:[%s4597 + $0x28c] sm:$0xf]
    %v4762 = vld [vmem:[%s4597 + $0x290] sm:$0xf]
    %v4763 = vld [vmem:[%s4597 + $0x294] sm:$0xf]
    %v4764 = vld [vmem:[%s4597 + $0x298] sm:$0xf]
    %v4765 = vld [vmem:[%s4597 + $0x29c] sm:$0xf]
    %v4766 = vld [vmem:[%s4597 + $0x2a0] sm:$0xf]
    %v4767 = vld [vmem:[%s4597 + $0x2a4] sm:$0xf]
    %v4768 = vld [vmem:[%s4597 + $0x2a8] sm:$0xf]
    %v4769 = vld [vmem:[%s4597 + $0x2ac] sm:$0xf]
    %v4770 = vld [vmem:[%s4597 + $0x2b0] sm:$0xf]
    %v4771 = vld [vmem:[%s4597 + $0x2b4] sm:$0xf]
    %v4772 = vld [vmem:[%s4597 + $0x2b8] sm:$0xf]
    %v4773 = vld [vmem:[%s4597 + $0x2bc] sm:$0xf]
    %v4774 = vld [vmem:[%s4597 + $0x2c0] sm:$0xf]
    %v4775 = vld [vmem:[%s4597 + $0x2c4] sm:$0xf]
    %v4776 = vld [vmem:[%s4597 + $0x2c8] sm:$0xf]
    %v4777 = vld [vmem:[%s4597 + $0x2cc] sm:$0xf]
    %v4778 = vld [vmem:[%s4597 + $0x2d0] sm:$0xf]
    %v4779 = vld [vmem:[%s4597 + $0x2d4] sm:$0xf]
    %v4780 = vld [vmem:[%s4597 + $0x2d8] sm:$0xf]
    %v4781 = vld [vmem:[%s4597 + $0x2dc] sm:$0xf]
    %v4782 = vld [vmem:[%s4597 + $0x2e0] sm:$0xf]
    %v4783 = vld [vmem:[%s4597 + $0x2e4] sm:$0xf]
    %v4784 = vld [vmem:[%s4597 + $0x2e8] sm:$0xf]
    %v4785 = vld [vmem:[%s4597 + $0x2ec] sm:$0xf]
    %v4786 = vld [vmem:[%s4597 + $0x2f0] sm:$0xf]
    %v4787 = vld [vmem:[%s4597 + $0x2f4] sm:$0xf]
    %v4788 = vld [vmem:[%s4597 + $0x2f8] sm:$0xf]
    %v4789 = vld [vmem:[%s4597 + $0x2fc] sm:$0xf]
    %v4790 = vld [vmem:[%s4597 + $0x300] sm:$0xf]
    %v4791 = vld [vmem:[%s4597 + $0x304] sm:$0xf]
    %v4792 = vld [vmem:[%s4597 + $0x308] sm:$0xf]
    %v4793 = vld [vmem:[%s4597 + $0x30c] sm:$0xf]
    %v4794 = vld [vmem:[%s4597 + $0x310] sm:$0xf]
    %v4795 = vld [vmem:[%s4597 + $0x314] sm:$0xf]
    %v4796 = vld [vmem:[%s4597 + $0x318] sm:$0xf]
    %v4797 = vld [vmem:[%s4597 + $0x31c] sm:$0xf]
    %v4798 = vld [vmem:[%s4597 + $0x320] sm:$0xf]
    %v4799 = vld [vmem:[%s4597 + $0x324] sm:$0xf]
    %v4800 = vld [vmem:[%s4597 + $0x328] sm:$0xf]
    %v4801 = vld [vmem:[%s4597 + $0x32c] sm:$0xf]
    %v4802 = vld [vmem:[%s4597 + $0x330] sm:$0xf]
    %v4803 = vld [vmem:[%s4597 + $0x334] sm:$0xf]
    %v4804 = vld [vmem:[%s4597 + $0x338] sm:$0xf]
    %v4805 = vld [vmem:[%s4597 + $0x33c] sm:$0xf]
    %v4806 = vld [vmem:[%s4597 + $0x340] sm:$0xf]
    %v4807 = vld [vmem:[%s4597 + $0x344] sm:$0xf]
    %v4808 = vld [vmem:[%s4597 + $0x348] sm:$0xf]
    %v4809 = vld [vmem:[%s4597 + $0x34c] sm:$0xf]
    %v4810 = vld [vmem:[%s4597 + $0x350] sm:$0xf]
    %v4811 = vld [vmem:[%s4597 + $0x354] sm:$0xf]
    %v4812 = vld [vmem:[%s4597 + $0x358] sm:$0xf]
    %v4813 = vld [vmem:[%s4597 + $0x35c] sm:$0xf]
    %v4814 = vld [vmem:[%s4597 + $0x360] sm:$0xf]
    %v4815 = vld [vmem:[%s4597 + $0x364] sm:$0xf]
    %v4816 = vld [vmem:[%s4597 + $0x368] sm:$0xf]
    %v4817 = vld [vmem:[%s4597 + $0x36c] sm:$0xf]
    %v4818 = vld [vmem:[%s4597 + $0x370] sm:$0xf]
    %v4819 = vld [vmem:[%s4597 + $0x374] sm:$0xf]
    %v4820 = vld [vmem:[%s4597 + $0x378] sm:$0xf]
    %v4821 = vld [vmem:[%s4597 + $0x37c] sm:$0xf]
    %v4822 = vld [vmem:[%s4597 + $0x380] sm:$0xf]
    %v4823 = vld [vmem:[%s4597 + $0x384] sm:$0xf]
    %v4824 = vld [vmem:[%s4597 + $0x388] sm:$0xf]
    %v4825 = vld [vmem:[%s4597 + $0x38c] sm:$0xf]
    %v4826 = vld [vmem:[%s4597 + $0x390] sm:$0xf]
    %v4827 = vld [vmem:[%s4597 + $0x394] sm:$0xf]
    %v4828 = vld [vmem:[%s4597 + $0x398] sm:$0xf]
    %v4829 = vld [vmem:[%s4597 + $0x39c] sm:$0xf]
    %v4830 = vld [vmem:[%s4597 + $0x3a0] sm:$0xf]
    %v4831 = vld [vmem:[%s4597 + $0x3a4] sm:$0xf]
    %v4832 = vld [vmem:[%s4597 + $0x3a8] sm:$0xf]
    %v4833 = vld [vmem:[%s4597 + $0x3ac] sm:$0xf]
    %v4834 = vld [vmem:[%s4597 + $0x3b0] sm:$0xf]
    %v4835 = vld [vmem:[%s4597 + $0x3b4] sm:$0xf]
    %v4836 = vld [vmem:[%s4597 + $0x3b8] sm:$0xf]
    %v4837 = vld [vmem:[%s4597 + $0x3bc] sm:$0xf]
    %v4838 = vld [vmem:[%s4597 + $0x3c0] sm:$0xf]
    %v4839 = vld [vmem:[%s4597 + $0x3c4] sm:$0xf]
    %v4840 = vld [vmem:[%s4597 + $0x3c8] sm:$0xf]
    %v4841 = vld [vmem:[%s4597 + $0x3cc] sm:$0xf]
    %v4842 = vld [vmem:[%s4597 + $0x3d0] sm:$0xf]
    %v4843 = vld [vmem:[%s4597 + $0x3d4] sm:$0xf]
    %v4844 = vld [vmem:[%s4597 + $0x3d8] sm:$0xf]
    %v4845 = vld [vmem:[%s4597 + $0x3dc] sm:$0xf]
    %v4846 = vld [vmem:[%s4597 + $0x3e0] sm:$0xf]
    %v4847 = vld [vmem:[%s4597 + $0x3e4] sm:$0xf]
    %v4848 = vld [vmem:[%s4597 + $0x3e8] sm:$0xf]
    %v4849 = vld [vmem:[%s4597 + $0x3ec] sm:$0xf]
    %v4850 = vld [vmem:[%s4597 + $0x3f0] sm:$0xf]
    %v4851 = vld [vmem:[%s4597 + $0x3f4] sm:$0xf]
    %v4852 = vld [vmem:[%s4597 + $0x3f8] sm:$0xf]
    %v4853 = vld [vmem:[%s4597 + $0x3fc] sm:$0xf]
    %v4854 = vlaneseq
    %v4855 = vshrl.u32 %v4854, 7
    %v4856 = vsub.s32 0, %v4855
    %v4857 = vrot.slane %v3101, %v4856
    %v5114 = vunpack.c.l.b16 %v4598
    %v5115 = vunpack.c.l.b16 %v4599
    %v5116 = vunpack.c.l.b16 %v4600
    %v5117 = vunpack.c.l.b16 %v4601
    %v5118 = vunpack.c.l.b16 %v4602
    %v5119 = vunpack.c.l.b16 %v4603
    %v5120 = vunpack.c.l.b16 %v4604
    %v5121 = vunpack.c.l.b16 %v4605
    %v5122 = vunpack.c.l.b16 %v4606
    %v5123 = vunpack.c.l.b16 %v4607
    %v5124 = vunpack.c.l.b16 %v4608
    %v5125 = vunpack.c.l.b16 %v4609
    %v5126 = vunpack.c.l.b16 %v4610
    %v5127 = vunpack.c.l.b16 %v4611
    %v5128 = vunpack.c.l.b16 %v4612
    %v5129 = vunpack.c.l.b16 %v4613
    %v5130 = vunpack.c.l.b16 %v4614
    %v5131 = vunpack.c.l.b16 %v4615
    %v5132 = vunpack.c.l.b16 %v4616
    %v5133 = vunpack.c.l.b16 %v4617
    %v5134 = vunpack.c.l.b16 %v4618
    %v5135 = vunpack.c.l.b16 %v4619
    %v5136 = vunpack.c.l.b16 %v4620
    %v5137 = vunpack.c.l.b16 %v4621
    %v5138 = vunpack.c.l.b16 %v4622
    %v5139 = vunpack.c.l.b16 %v4623
    %v5140 = vunpack.c.l.b16 %v4624
    %v5141 = vunpack.c.l.b16 %v4625
    %v5142 = vunpack.c.l.b16 %v4626
    %v5143 = vunpack.c.l.b16 %v4627
    %v5144 = vunpack.c.l.b16 %v4628
    %v5145 = vunpack.c.l.b16 %v4629
    %v5146 = vunpack.c.l.b16 %v4630
    %v5147 = vunpack.c.l.b16 %v4631
    %v5148 = vunpack.c.l.b16 %v4632
    %v5149 = vunpack.c.l.b16 %v4633
    %v5150 = vunpack.c.l.b16 %v4634
    %v5151 = vunpack.c.l.b16 %v4635
    %v5152 = vunpack.c.l.b16 %v4636
    %v5153 = vunpack.c.l.b16 %v4637
    %v5154 = vunpack.c.l.b16 %v4638
    %v5155 = vunpack.c.l.b16 %v4639
    %v5156 = vunpack.c.l.b16 %v4640
    %v5157 = vunpack.c.l.b16 %v4641
    %v5158 = vunpack.c.l.b16 %v4642
    %v5159 = vunpack.c.l.b16 %v4643
    %v5160 = vunpack.c.l.b16 %v4644
    %v5161 = vunpack.c.l.b16 %v4645
    %v5162 = vunpack.c.l.b16 %v4646
    %v5163 = vunpack.c.l.b16 %v4647
    %v5164 = vunpack.c.l.b16 %v4648
    %v5165 = vunpack.c.l.b16 %v4649
    %v5166 = vunpack.c.l.b16 %v4650
    %v5167 = vunpack.c.l.b16 %v4651
    %v5168 = vunpack.c.l.b16 %v4652
    %v5169 = vunpack.c.l.b16 %v4653
    %v5170 = vunpack.c.l.b16 %v4654
    %v5171 = vunpack.c.l.b16 %v4655
    %v5172 = vunpack.c.l.b16 %v4656
    %v5173 = vunpack.c.l.b16 %v4657
    %v5174 = vunpack.c.l.b16 %v4658
    %v5175 = vunpack.c.l.b16 %v4659
    %v5176 = vunpack.c.l.b16 %v4660
    %v5177 = vunpack.c.l.b16 %v4661
    %v5178 = vunpack.c.l.b16 %v4662
    %v5179 = vunpack.c.l.b16 %v4663
    %v5180 = vunpack.c.l.b16 %v4664
    %v5181 = vunpack.c.l.b16 %v4665
    %v5182 = vunpack.c.l.b16 %v4666
    %v5183 = vunpack.c.l.b16 %v4667
    %v5184 = vunpack.c.l.b16 %v4668
    %v5185 = vunpack.c.l.b16 %v4669
    %v5186 = vunpack.c.l.b16 %v4670
    %v5187 = vunpack.c.l.b16 %v4671
    %v5188 = vunpack.c.l.b16 %v4672
    %v5189 = vunpack.c.l.b16 %v4673
    %v5190 = vunpack.c.l.b16 %v4674
    %v5191 = vunpack.c.l.b16 %v4675
    %v5192 = vunpack.c.l.b16 %v4676
    %v5193 = vunpack.c.l.b16 %v4677
    %v5194 = vunpack.c.l.b16 %v4678
    %v5195 = vunpack.c.l.b16 %v4679
    %v5196 = vunpack.c.l.b16 %v4680
    %v5197 = vunpack.c.l.b16 %v4681
    %v5198 = vunpack.c.l.b16 %v4682
    %v5199 = vunpack.c.l.b16 %v4683
    %v5200 = vunpack.c.l.b16 %v4684
    %v5201 = vunpack.c.l.b16 %v4685
    %v5202 = vunpack.c.l.b16 %v4686
    %v5203 = vunpack.c.l.b16 %v4687
    %v5204 = vunpack.c.l.b16 %v4688
    %v5205 = vunpack.c.l.b16 %v4689
    %v5206 = vunpack.c.l.b16 %v4690
    %v5207 = vunpack.c.l.b16 %v4691
    %v5208 = vunpack.c.l.b16 %v4692
    %v5209 = vunpack.c.l.b16 %v4693
    %v5210 = vunpack.c.l.b16 %v4694
    %v5211 = vunpack.c.l.b16 %v4695
    %v5212 = vunpack.c.l.b16 %v4696
    %v5213 = vunpack.c.l.b16 %v4697
    %v5214 = vunpack.c.l.b16 %v4698
    %v5215 = vunpack.c.l.b16 %v4699
    %v5216 = vunpack.c.l.b16 %v4700
    %v5217 = vunpack.c.l.b16 %v4701
    %v5218 = vunpack.c.l.b16 %v4702
    %v5219 = vunpack.c.l.b16 %v4703
    %v5220 = vunpack.c.l.b16 %v4704
    %v5221 = vunpack.c.l.b16 %v4705
    %v5222 = vunpack.c.l.b16 %v4706
    %v5223 = vunpack.c.l.b16 %v4707
    %v5224 = vunpack.c.l.b16 %v4708
    %v5225 = vunpack.c.l.b16 %v4709
    %v5226 = vunpack.c.l.b16 %v4710
    %v5227 = vunpack.c.l.b16 %v4711
    %v5228 = vunpack.c.l.b16 %v4712
    %v5229 = vunpack.c.l.b16 %v4713
    %v5230 = vunpack.c.l.b16 %v4714
    %v5231 = vunpack.c.l.b16 %v4715
    %v5232 = vunpack.c.l.b16 %v4716
    %v5233 = vunpack.c.l.b16 %v4717
    %v5234 = vunpack.c.l.b16 %v4718
    %v5235 = vunpack.c.l.b16 %v4719
    %v5236 = vunpack.c.l.b16 %v4720
    %v5237 = vunpack.c.l.b16 %v4721
    %v5238 = vunpack.c.l.b16 %v4722
    %v5239 = vunpack.c.l.b16 %v4723
    %v5240 = vunpack.c.l.b16 %v4724
    %v5241 = vunpack.c.l.b16 %v4725
    %v5242 = vunpack.c.l.b16 %v4726
    %v5243 = vunpack.c.l.b16 %v4727
    %v5244 = vunpack.c.l.b16 %v4728
    %v5245 = vunpack.c.l.b16 %v4729
    %v5246 = vunpack.c.l.b16 %v4730
    %v5247 = vunpack.c.l.b16 %v4731
    %v5248 = vunpack.c.l.b16 %v4732
    %v5249 = vunpack.c.l.b16 %v4733
    %v5250 = vunpack.c.l.b16 %v4734
    %v5251 = vunpack.c.l.b16 %v4735
    %v5252 = vunpack.c.l.b16 %v4736
    %v5253 = vunpack.c.l.b16 %v4737
    %v5254 = vunpack.c.l.b16 %v4738
    %v5255 = vunpack.c.l.b16 %v4739
    %v5256 = vunpack.c.l.b16 %v4740
    %v5257 = vunpack.c.l.b16 %v4741
    %v5258 = vunpack.c.l.b16 %v4742
    %v5259 = vunpack.c.l.b16 %v4743
    %v5260 = vunpack.c.l.b16 %v4744
    %v5261 = vunpack.c.l.b16 %v4745
    %v5262 = vunpack.c.l.b16 %v4746
    %v5263 = vunpack.c.l.b16 %v4747
    %v5264 = vunpack.c.l.b16 %v4748
    %v5265 = vunpack.c.l.b16 %v4749
    %v5266 = vunpack.c.l.b16 %v4750
    %v5267 = vunpack.c.l.b16 %v4751
    %v5268 = vunpack.c.l.b16 %v4752
    %v5269 = vunpack.c.l.b16 %v4753
    %v5270 = vunpack.c.l.b16 %v4754
    %v5271 = vunpack.c.l.b16 %v4755
    %v5272 = vunpack.c.l.b16 %v4756
    %v5273 = vunpack.c.l.b16 %v4757
    %v5274 = vunpack.c.l.b16 %v4758
    %v5275 = vunpack.c.l.b16 %v4759
    %v5276 = vunpack.c.l.b16 %v4760
    %v5277 = vunpack.c.l.b16 %v4761
    %v5278 = vunpack.c.l.b16 %v4762
    %v5279 = vunpack.c.l.b16 %v4763
    %v5280 = vunpack.c.l.b16 %v4764
    %v5281 = vunpack.c.l.b16 %v4765
    %v5282 = vunpack.c.l.b16 %v4766
    %v5283 = vunpack.c.l.b16 %v4767
    %v5284 = vunpack.c.l.b16 %v4768
    %v5285 = vunpack.c.l.b16 %v4769
    %v5286 = vunpack.c.l.b16 %v4770
    %v5287 = vunpack.c.l.b16 %v4771
    %v5288 = vunpack.c.l.b16 %v4772
    %v5289 = vunpack.c.l.b16 %v4773
    %v5290 = vunpack.c.l.b16 %v4774
    %v5291 = vunpack.c.l.b16 %v4775
    %v5292 = vunpack.c.l.b16 %v4776
    %v5293 = vunpack.c.l.b16 %v4777
    %v5294 = vunpack.c.l.b16 %v4778
    %v5295 = vunpack.c.l.b16 %v4779
    %v5296 = vunpack.c.l.b16 %v4780
    %v5297 = vunpack.c.l.b16 %v4781
    %v5298 = vunpack.c.l.b16 %v4782
    %v5299 = vunpack.c.l.b16 %v4783
    %v5300 = vunpack.c.l.b16 %v4784
    %v5301 = vunpack.c.l.b16 %v4785
    %v5302 = vunpack.c.l.b16 %v4786
    %v5303 = vunpack.c.l.b16 %v4787
    %v5304 = vunpack.c.l.b16 %v4788
    %v5305 = vunpack.c.l.b16 %v4789
    %v5306 = vunpack.c.l.b16 %v4790
    %v5307 = vunpack.c.l.b16 %v4791
    %v5308 = vunpack.c.l.b16 %v4792
    %v5309 = vunpack.c.l.b16 %v4793
    %v5310 = vunpack.c.l.b16 %v4794
    %v5311 = vunpack.c.l.b16 %v4795
    %v5312 = vunpack.c.l.b16 %v4796
    %v5313 = vunpack.c.l.b16 %v4797
    %v5314 = vunpack.c.l.b16 %v4798
    %v5315 = vunpack.c.l.b16 %v4799
    %v5316 = vunpack.c.l.b16 %v4800
    %v5317 = vunpack.c.l.b16 %v4801
    %v5318 = vunpack.c.l.b16 %v4802
    %v5319 = vunpack.c.l.b16 %v4803
    %v5320 = vunpack.c.l.b16 %v4804
    %v5321 = vunpack.c.l.b16 %v4805
    %v5322 = vunpack.c.l.b16 %v4806
    %v5323 = vunpack.c.l.b16 %v4807
    %v5324 = vunpack.c.l.b16 %v4808
    %v5325 = vunpack.c.l.b16 %v4809
    %v5326 = vunpack.c.l.b16 %v4810
    %v5327 = vunpack.c.l.b16 %v4811
    %v5328 = vunpack.c.l.b16 %v4812
    %v5329 = vunpack.c.l.b16 %v4813
    %v5330 = vunpack.c.l.b16 %v4814
    %v5331 = vunpack.c.l.b16 %v4815
    %v5332 = vunpack.c.l.b16 %v4816
    %v5333 = vunpack.c.l.b16 %v4817
    %v5334 = vunpack.c.l.b16 %v4818
    %v5335 = vunpack.c.l.b16 %v4819
    %v5336 = vunpack.c.l.b16 %v4820
    %v5337 = vunpack.c.l.b16 %v4821
    %v5338 = vunpack.c.l.b16 %v4822
    %v5339 = vunpack.c.l.b16 %v4823
    %v5340 = vunpack.c.l.b16 %v4824
    %v5341 = vunpack.c.l.b16 %v4825
    %v5342 = vunpack.c.l.b16 %v4826
    %v5343 = vunpack.c.l.b16 %v4827
    %v5344 = vunpack.c.l.b16 %v4828
    %v5345 = vunpack.c.l.b16 %v4829
    %v5346 = vunpack.c.l.b16 %v4830
    %v5347 = vunpack.c.l.b16 %v4831
    %v5348 = vunpack.c.l.b16 %v4832
    %v5349 = vunpack.c.l.b16 %v4833
    %v5350 = vunpack.c.l.b16 %v4834
    %v5351 = vunpack.c.l.b16 %v4835
    %v5352 = vunpack.c.l.b16 %v4836
    %v5353 = vunpack.c.l.b16 %v4837
    %v5354 = vunpack.c.l.b16 %v4838
    %v5355 = vunpack.c.l.b16 %v4839
    %v5356 = vunpack.c.l.b16 %v4840
    %v5357 = vunpack.c.l.b16 %v4841
    %v5358 = vunpack.c.l.b16 %v4842
    %v5359 = vunpack.c.l.b16 %v4843
    %v5360 = vunpack.c.l.b16 %v4844
    %v5361 = vunpack.c.l.b16 %v4845
    %v5362 = vunpack.c.l.b16 %v4846
    %v5363 = vunpack.c.l.b16 %v4847
    %v5364 = vunpack.c.l.b16 %v4848
    %v5365 = vunpack.c.l.b16 %v4849
    %v5366 = vunpack.c.l.b16 %v4850
    %v5367 = vunpack.c.l.b16 %v4851
    %v5368 = vunpack.c.l.b16 %v4852
    %v5369 = vunpack.c.l.b16 %v4853
    %v5370 = vpack.c.b16 %v5115, %v5114
    %v5371 = vpack.c.b16 %v5117, %v5116
    %v5372 = vpack.c.b16 %v5119, %v5118
    %v5373 = vpack.c.b16 %v5121, %v5120
    %v5374 = vpack.c.b16 %v5123, %v5122
    %v5375 = vpack.c.b16 %v5125, %v5124
    %v5376 = vpack.c.b16 %v5127, %v5126
    %v5377 = vpack.c.b16 %v5129, %v5128
    %v5378 = vpack.c.b16 %v5131, %v5130
    %v5379 = vpack.c.b16 %v5133, %v5132
    %v5380 = vpack.c.b16 %v5135, %v5134
    %v5381 = vpack.c.b16 %v5137, %v5136
    %v5382 = vpack.c.b16 %v5139, %v5138
    %v5383 = vpack.c.b16 %v5141, %v5140
    %v5384 = vpack.c.b16 %v5143, %v5142
    %v5385 = vpack.c.b16 %v5145, %v5144
    %v5386 = vpack.c.b16 %v5147, %v5146
    %v5387 = vpack.c.b16 %v5149, %v5148
    %v5388 = vpack.c.b16 %v5151, %v5150
    %v5389 = vpack.c.b16 %v5153, %v5152
    %v5390 = vpack.c.b16 %v5155, %v5154
    %v5391 = vpack.c.b16 %v5157, %v5156
    %v5392 = vpack.c.b16 %v5159, %v5158
    %v5393 = vpack.c.b16 %v5161, %v5160
    %v5394 = vpack.c.b16 %v5163, %v5162
    %v5395 = vpack.c.b16 %v5165, %v5164
    %v5396 = vpack.c.b16 %v5167, %v5166
    %v5397 = vpack.c.b16 %v5169, %v5168
    %v5398 = vpack.c.b16 %v5171, %v5170
    %v5399 = vpack.c.b16 %v5173, %v5172
    %v5400 = vpack.c.b16 %v5175, %v5174
    %v5401 = vpack.c.b16 %v5177, %v5176
    %v5402 = vpack.c.b16 %v5179, %v5178
    %v5403 = vpack.c.b16 %v5181, %v5180
    %v5404 = vpack.c.b16 %v5183, %v5182
    %v5405 = vpack.c.b16 %v5185, %v5184
    %v5406 = vpack.c.b16 %v5187, %v5186
    %v5407 = vpack.c.b16 %v5189, %v5188
    %v5408 = vpack.c.b16 %v5191, %v5190
    %v5409 = vpack.c.b16 %v5193, %v5192
    %v5410 = vpack.c.b16 %v5195, %v5194
    %v5411 = vpack.c.b16 %v5197, %v5196
    %v5412 = vpack.c.b16 %v5199, %v5198
    %v5413 = vpack.c.b16 %v5201, %v5200
    %v5414 = vpack.c.b16 %v5203, %v5202
    %v5415 = vpack.c.b16 %v5205, %v5204
    %v5416 = vpack.c.b16 %v5207, %v5206
    %v5417 = vpack.c.b16 %v5209, %v5208
    %v5418 = vpack.c.b16 %v5211, %v5210
    %v5419 = vpack.c.b16 %v5213, %v5212
    %v5420 = vpack.c.b16 %v5215, %v5214
    %v5421 = vpack.c.b16 %v5217, %v5216
    %v5422 = vpack.c.b16 %v5219, %v5218
    %v5423 = vpack.c.b16 %v5221, %v5220
    %v5424 = vpack.c.b16 %v5223, %v5222
    %v5425 = vpack.c.b16 %v5225, %v5224
    %v5426 = vpack.c.b16 %v5227, %v5226
    %v5427 = vpack.c.b16 %v5229, %v5228
    %v5428 = vpack.c.b16 %v5231, %v5230
    %v5429 = vpack.c.b16 %v5233, %v5232
    %v5430 = vpack.c.b16 %v5235, %v5234
    %v5431 = vpack.c.b16 %v5237, %v5236
    %v5432 = vpack.c.b16 %v5239, %v5238
    %v5433 = vpack.c.b16 %v5241, %v5240
    %v5434 = vpack.c.b16 %v5243, %v5242
    %v5435 = vpack.c.b16 %v5245, %v5244
    %v5436 = vpack.c.b16 %v5247, %v5246
    %v5437 = vpack.c.b16 %v5249, %v5248
    %v5438 = vpack.c.b16 %v5251, %v5250
    %v5439 = vpack.c.b16 %v5253, %v5252
    %v5440 = vpack.c.b16 %v5255, %v5254
    %v5441 = vpack.c.b16 %v5257, %v5256
    %v5442 = vpack.c.b16 %v5259, %v5258
    %v5443 = vpack.c.b16 %v5261, %v5260
    %v5444 = vpack.c.b16 %v5263, %v5262
    %v5445 = vpack.c.b16 %v5265, %v5264
    %v5446 = vpack.c.b16 %v5267, %v5266
    %v5447 = vpack.c.b16 %v5269, %v5268
    %v5448 = vpack.c.b16 %v5271, %v5270
    %v5449 = vpack.c.b16 %v5273, %v5272
    %v5450 = vpack.c.b16 %v5275, %v5274
    %v5451 = vpack.c.b16 %v5277, %v5276
    %v5452 = vpack.c.b16 %v5279, %v5278
    %v5453 = vpack.c.b16 %v5281, %v5280
    %v5454 = vpack.c.b16 %v5283, %v5282
    %v5455 = vpack.c.b16 %v5285, %v5284
    %v5456 = vpack.c.b16 %v5287, %v5286
    %v5457 = vpack.c.b16 %v5289, %v5288
    %v5458 = vpack.c.b16 %v5291, %v5290
    %v5459 = vpack.c.b16 %v5293, %v5292
    %v5460 = vpack.c.b16 %v5295, %v5294
    %v5461 = vpack.c.b16 %v5297, %v5296
    %v5462 = vpack.c.b16 %v5299, %v5298
    %v5463 = vpack.c.b16 %v5301, %v5300
    %v5464 = vpack.c.b16 %v5303, %v5302
    %v5465 = vpack.c.b16 %v5305, %v5304
    %v5466 = vpack.c.b16 %v5307, %v5306
    %v5467 = vpack.c.b16 %v5309, %v5308
    %v5468 = vpack.c.b16 %v5311, %v5310
    %v5469 = vpack.c.b16 %v5313, %v5312
    %v5470 = vpack.c.b16 %v5315, %v5314
    %v5471 = vpack.c.b16 %v5317, %v5316
    %v5472 = vpack.c.b16 %v5319, %v5318
    %v5473 = vpack.c.b16 %v5321, %v5320
    %v5474 = vpack.c.b16 %v5323, %v5322
    %v5475 = vpack.c.b16 %v5325, %v5324
    %v5476 = vpack.c.b16 %v5327, %v5326
    %v5477 = vpack.c.b16 %v5329, %v5328
    %v5478 = vpack.c.b16 %v5331, %v5330
    %v5479 = vpack.c.b16 %v5333, %v5332
    %v5480 = vpack.c.b16 %v5335, %v5334
    %v5481 = vpack.c.b16 %v5337, %v5336
    %v5482 = vpack.c.b16 %v5339, %v5338
    %v5483 = vpack.c.b16 %v5341, %v5340
    %v5484 = vpack.c.b16 %v5343, %v5342
    %v5485 = vpack.c.b16 %v5345, %v5344
    %v5486 = vpack.c.b16 %v5347, %v5346
    %v5487 = vpack.c.b16 %v5349, %v5348
    %v5488 = vpack.c.b16 %v5351, %v5350
    %v5489 = vpack.c.b16 %v5353, %v5352
    %v5490 = vpack.c.b16 %v5355, %v5354
    %v5491 = vpack.c.b16 %v5357, %v5356
    %v5492 = vpack.c.b16 %v5359, %v5358
    %v5493 = vpack.c.b16 %v5361, %v5360
    %v5494 = vpack.c.b16 %v5363, %v5362
    %v5495 = vpack.c.b16 %v5365, %v5364
    %v5496 = vpack.c.b16 %v5367, %v5366
    %v5497 = vpack.c.b16 %v5369, %v5368
    %5626 = vmatprep.subr.bf16.mxu0 0
    %5627 = vmatpush1.bf16.msra.mxu0 %v5370
    %5628 = vmatprep.subr.bf16.mxu0 0
    %5629 = vmatpush1.bf16.msra.mxu0 %v5371
    %5630 = vmatprep.subr.bf16.mxu0 0
    %5631 = vmatpush1.bf16.msra.mxu0 %v5372
    %5632 = vmatprep.subr.bf16.mxu0 0
    %5633 = vmatpush1.bf16.msra.mxu0 %v5373
    %5634 = vmatprep.subr.bf16.mxu0 0
    %5635 = vmatpush1.bf16.msra.mxu0 %v5374
    %5636 = vmatprep.subr.bf16.mxu0 0
    %5637 = vmatpush1.bf16.msra.mxu0 %v5375
    %5638 = vmatprep.subr.bf16.mxu0 0
    %5639 = vmatpush1.bf16.msra.mxu0 %v5376
    %5640 = vmatprep.subr.bf16.mxu0 0
    %5641 = vmatpush1.bf16.msra.mxu0 %v5377
    %5642 = vmatprep.subr.bf16.mxu0 0
    %5643 = vmatpush1.bf16.msra.mxu0 %v5378
    %5644 = vmatprep.subr.bf16.mxu0 0
    %5645 = vmatpush1.bf16.msra.mxu0 %v5379
    %5646 = vmatprep.subr.bf16.mxu0 0
    %5647 = vmatpush1.bf16.msra.mxu0 %v5380
    %5648 = vmatprep.subr.bf16.mxu0 0
    %5649 = vmatpush1.bf16.msra.mxu0 %v5381
    %5650 = vmatprep.subr.bf16.mxu0 0
    %5651 = vmatpush1.bf16.msra.mxu0 %v5382
    %5652 = vmatprep.subr.bf16.mxu0 0
    %5653 = vmatpush1.bf16.msra.mxu0 %v5383
    %5654 = vmatprep.subr.bf16.mxu0 0
    %5655 = vmatpush1.bf16.msra.mxu0 %v5384
    %5656 = vmatprep.subr.bf16.mxu0 0
    %5657 = vmatpush1.bf16.msra.mxu0 %v5385
    %5658 = vmatprep.mubr.bf16.mxu0 %v4582
    %5659 = vmatmul.mubr.bf16.gmra.mrb[0].mxu0 %v4581
    %v5660 = vpop.f32.mrb[0].mxu0
    %v5661 = vadd.f32 %v4857, %v5660
    %v5662 = vpop.f32.mrb[0].mxu0
    %v5663 = vpop.f32.mrb[0].mxu0
    %v5664 = vpop.f32.mrb[0].mxu0
    %5665 = vdwg.mxu0
    %5666 = vmatprep.subr.bf16.mxu0 0
    %5667 = vmatpush1.bf16.msra.mxu0 %v5386
    %5668 = vmatprep.subr.bf16.mxu0 0
    %5669 = vmatpush1.bf16.msra.mxu0 %v5387
    %5670 = vmatprep.subr.bf16.mxu0 0
    %5671 = vmatpush1.bf16.msra.mxu0 %v5388
    %5672 = vmatprep.subr.bf16.mxu0 0
    %5673 = vmatpush1.bf16.msra.mxu0 %v5389
    %5674 = vmatprep.subr.bf16.mxu0 0
    %5675 = vmatpush1.bf16.msra.mxu0 %v5390
    %5676 = vmatprep.subr.bf16.mxu0 0
    %5677 = vmatpush1.bf16.msra.mxu0 %v5391
    %5678 = vmatprep.subr.bf16.mxu0 0
    %5679 = vmatpush1.bf16.msra.mxu0 %v5392
    %5680 = vmatprep.subr.bf16.mxu0 0
    %5681 = vmatpush1.bf16.msra.mxu0 %v5393
    %5682 = vmatprep.subr.bf16.mxu0 0
    %5683 = vmatpush1.bf16.msra.mxu0 %v5394
    %5684 = vmatprep.subr.bf16.mxu0 0
    %5685 = vmatpush1.bf16.msra.mxu0 %v5395
    %5686 = vmatprep.subr.bf16.mxu0 0
    %5687 = vmatpush1.bf16.msra.mxu0 %v5396
    %5688 = vmatprep.subr.bf16.mxu0 0
    %5689 = vmatpush1.bf16.msra.mxu0 %v5397
    %5690 = vmatprep.subr.bf16.mxu0 0
    %5691 = vmatpush1.bf16.msra.mxu0 %v5398
    %5692 = vmatprep.subr.bf16.mxu0 0
    %5693 = vmatpush1.bf16.msra.mxu0 %v5399
    %5694 = vmatprep.subr.bf16.mxu0 0
    %5695 = vmatpush1.bf16.msra.mxu0 %v5400
    %5696 = vmatprep.subr.bf16.mxu0 0
    %5697 = vmatpush1.bf16.msra.mxu0 %v5401
    %5698 = vmatprep.mubr.bf16.mxu0 %v4584
    %5699 = vmatmul.mubr.bf16.gmra.mrb[0].mxu0 %v4583
    %v5700 = vpop.f32.mrb[0].mxu0
    %v5701 = vadd.f32 %v5661, %v5700
    %v5702 = vpop.f32.mrb[0].mxu0
    %v5703 = vpop.f32.mrb[0].mxu0
    %v5704 = vpop.f32.mrb[0].mxu0
    %5705 = vdwg.mxu0
    %5706 = vmatprep.subr.bf16.mxu0 0
    %5707 = vmatpush1.bf16.msra.mxu0 %v5402
    %5708 = vmatprep.subr.bf16.mxu0 0
    %5709 = vmatpush1.bf16.msra.mxu0 %v5403
    %5710 = vmatprep.subr.bf16.mxu0 0
    %5711 = vmatpush1.bf16.msra.mxu0 %v5404
    %5712 = vmatprep.subr.bf16.mxu0 0
    %5713 = vmatpush1.bf16.msra.mxu0 %v5405
    %5714 = vmatprep.subr.bf16.mxu0 0
    %5715 = vmatpush1.bf16.msra.mxu0 %v5406
    %5716 = vmatprep.subr.bf16.mxu0 0
    %5717 = vmatpush1.bf16.msra.mxu0 %v5407
    %5718 = vmatprep.subr.bf16.mxu0 0
    %5719 = vmatpush1.bf16.msra.mxu0 %v5408
    %5720 = vmatprep.subr.bf16.mxu0 0
    %5721 = vmatpush1.bf16.msra.mxu0 %v5409
    %5722 = vmatprep.subr.bf16.mxu0 0
    %5723 = vmatpush1.bf16.msra.mxu0 %v5410
    %5724 = vmatprep.subr.bf16.mxu0 0
    %5725 = vmatpush1.bf16.msra.mxu0 %v5411
    %5726 = vmatprep.subr.bf16.mxu0 0
    %5727 = vmatpush1.bf16.msra.mxu0 %v5412
    %5728 = vmatprep.subr.bf16.mxu0 0
    %5729 = vmatpush1.bf16.msra.mxu0 %v5413
    %5730 = vmatprep.subr.bf16.mxu0 0
    %5731 = vmatpush1.bf16.msra.mxu0 %v5414
    %5732 = vmatprep.subr.bf16.mxu0 0
    %5733 = vmatpush1.bf16.msra.mxu0 %v5415
    %5734 = vmatprep.subr.bf16.mxu0 0
    %5735 = vmatpush1.bf16.msra.mxu0 %v5416
    %5736 = vmatprep.subr.bf16.mxu0 0
    %5737 = vmatpush1.bf16.msra.mxu0 %v5417
    %5738 = vmatprep.mubr.bf16.mxu0 %v4586
    %5739 = vmatmul.mubr.bf16.gmra.mrb[0].mxu0 %v4585
    %v5740 = vpop.f32.mrb[0].mxu0
    %v5741 = vadd.f32 %v5701, %v5740
    %v5742 = vpop.f32.mrb[0].mxu0
    %v5743 = vpop.f32.mrb[0].mxu0
    %v5744 = vpop.f32.mrb[0].mxu0
    %5745 = vdwg.mxu0
    %5746 = vmatprep.subr.bf16.mxu0 0
    %5747 = vmatpush1.bf16.msra.mxu0 %v5418
    %5748 = vmatprep.subr.bf16.mxu0 0
    %5749 = vmatpush1.bf16.msra.mxu0 %v5419
    %5750 = vmatprep.subr.bf16.mxu0 0
    %5751 = vmatpush1.bf16.msra.mxu0 %v5420
    %5752 = vmatprep.subr.bf16.mxu0 0
    %5753 = vmatpush1.bf16.msra.mxu0 %v5421
    %5754 = vmatprep.subr.bf16.mxu0 0
    %5755 = vmatpush1.bf16.msra.mxu0 %v5422
    %5756 = vmatprep.subr.bf16.mxu0 0
    %5757 = vmatpush1.bf16.msra.mxu0 %v5423
    %5758 = vmatprep.subr.bf16.mxu0 0
    %5759 = vmatpush1.bf16.msra.mxu0 %v5424
    %5760 = vmatprep.subr.bf16.mxu0 0
    %5761 = vmatpush1.bf16.msra.mxu0 %v5425
    %5762 = vmatprep.subr.bf16.mxu0 0
    %5763 = vmatpush1.bf16.msra.mxu0 %v5426
    %5764 = vmatprep.subr.bf16.mxu0 0
    %5765 = vmatpush1.bf16.msra.mxu0 %v5427
    %5766 = vmatprep.subr.bf16.mxu0 0
    %5767 = vmatpush1.bf16.msra.mxu0 %v5428
    %5768 = vmatprep.subr.bf16.mxu0 0
    %5769 = vmatpush1.bf16.msra.mxu0 %v5429
    %5770 = vmatprep.subr.bf16.mxu0 0
    %5771 = vmatpush1.bf16.msra.mxu0 %v5430
    %5772 = vmatprep.subr.bf16.mxu0 0
    %5773 = vmatpush1.bf16.msra.mxu0 %v5431
    %5774 = vmatprep.subr.bf16.mxu0 0
    %5775 = vmatpush1.bf16.msra.mxu0 %v5432
    %5776 = vmatprep.subr.bf16.mxu0 0
    %5777 = vmatpush1.bf16.msra.mxu0 %v5433
    %5778 = vmatprep.mubr.bf16.mxu0 %v4588
    %5779 = vmatmul.mubr.bf16.gmra.mrb[0].mxu0 %v4587
    %v5780 = vpop.f32.mrb[0].mxu0
    %v5781 = vadd.f32 %v5741, %v5780
    %v5782 = vpop.f32.mrb[0].mxu0
    %v5783 = vpop.f32.mrb[0].mxu0
    %v5784 = vpop.f32.mrb[0].mxu0
    %5785 = vdwg.mxu0
    %5786 = vmatprep.subr.bf16.mxu0 0
    %5787 = vmatpush1.bf16.msra.mxu0 %v5434
    %5788 = vmatprep.subr.bf16.mxu0 0
    %5789 = vmatpush1.bf16.msra.mxu0 %v5435
    %5790 = vmatprep.subr.bf16.mxu0 0
    %5791 = vmatpush1.bf16.msra.mxu0 %v5436
    %5792 = vmatprep.subr.bf16.mxu0 0
    %5793 = vmatpush1.bf16.msra.mxu0 %v5437
    %5794 = vmatprep.subr.bf16.mxu0 0
    %5795 = vmatpush1.bf16.msra.mxu0 %v5438
    %5796 = vmatprep.subr.bf16.mxu0 0
    %5797 = vmatpush1.bf16.msra.mxu0 %v5439
    %5798 = vmatprep.subr.bf16.mxu0 0
    %5799 = vmatpush1.bf16.msra.mxu0 %v5440
    %5800 = vmatprep.subr.bf16.mxu0 0
    %5801 = vmatpush1.bf16.msra.mxu0 %v5441
    %5802 = vmatprep.subr.bf16.mxu0 0
    %5803 = vmatpush1.bf16.msra.mxu0 %v5442
    %5804 = vmatprep.subr.bf16.mxu0 0
    %5805 = vmatpush1.bf16.msra.mxu0 %v5443
    %5806 = vmatprep.subr.bf16.mxu0 0
    %5807 = vmatpush1.bf16.msra.mxu0 %v5444
    %5808 = vmatprep.subr.bf16.mxu0 0
    %5809 = vmatpush1.bf16.msra.mxu0 %v5445
    %5810 = vmatprep.subr.bf16.mxu0 0
    %5811 = vmatpush1.bf16.msra.mxu0 %v5446
    %5812 = vmatprep.subr.bf16.mxu0 0
    %5813 = vmatpush1.bf16.msra.mxu0 %v5447
    %5814 = vmatprep.subr.bf16.mxu0 0
    %5815 = vmatpush1.bf16.msra.mxu0 %v5448
    %5816 = vmatprep.subr.bf16.mxu0 0
    %5817 = vmatpush1.bf16.msra.mxu0 %v5449
    %5818 = vmatprep.mubr.bf16.mxu0 %v4590
    %5819 = vmatmul.mubr.bf16.gmra.mrb[0].mxu0 %v4589
    %v5820 = vpop.f32.mrb[0].mxu0
    %v5821 = vadd.f32 %v5781, %v5820
    %v5822 = vpop.f32.mrb[0].mxu0
    %v5823 = vpop.f32.mrb[0].mxu0
    %v5824 = vpop.f32.mrb[0].mxu0
    %5825 = vdwg.mxu0
    %5826 = vmatprep.subr.bf16.mxu0 0
    %5827 = vmatpush1.bf16.msra.mxu0 %v5450
    %5828 = vmatprep.subr.bf16.mxu0 0
    %5829 = vmatpush1.bf16.msra.mxu0 %v5451
    %5830 = vmatprep.subr.bf16.mxu0 0
    %5831 = vmatpush1.bf16.msra.mxu0 %v5452
    %5832 = vmatprep.subr.bf16.mxu0 0
    %5833 = vmatpush1.bf16.msra.mxu0 %v5453
    %5834 = vmatprep.subr.bf16.mxu0 0
    %5835 = vmatpush1.bf16.msra.mxu0 %v5454
    %5836 = vmatprep.subr.bf16.mxu0 0
    %5837 = vmatpush1.bf16.msra.mxu0 %v5455
    %5838 = vmatprep.subr.bf16.mxu0 0
    %5839 = vmatpush1.bf16.msra.mxu0 %v5456
    %5840 = vmatprep.subr.bf16.mxu0 0
    %5841 = vmatpush1.bf16.msra.mxu0 %v5457
    %5842 = vmatprep.subr.bf16.mxu0 0
    %5843 = vmatpush1.bf16.msra.mxu0 %v5458
    %5844 = vmatprep.subr.bf16.mxu0 0
    %5845 = vmatpush1.bf16.msra.mxu0 %v5459
    %5846 = vmatprep.subr.bf16.mxu0 0
    %5847 = vmatpush1.bf16.msra.mxu0 %v5460
    %5848 = vmatprep.subr.bf16.mxu0 0
    %5849 = vmatpush1.bf16.msra.mxu0 %v5461
    %5850 = vmatprep.subr.bf16.mxu0 0
    %5851 = vmatpush1.bf16.msra.mxu0 %v5462
    %5852 = vmatprep.subr.bf16.mxu0 0
    %5853 = vmatpush1.bf16.msra.mxu0 %v5463
    %5854 = vmatprep.subr.bf16.mxu0 0
    %5855 = vmatpush1.bf16.msra.mxu0 %v5464
    %5856 = vmatprep.subr.bf16.mxu0 0
    %5857 = vmatpush1.bf16.msra.mxu0 %v5465
    %5858 = vmatprep.mubr.bf16.mxu0 %v4592
    %5859 = vmatmul.mubr.bf16.gmra.mrb[0].mxu0 %v4591
    %v5860 = vpop.f32.mrb[0].mxu0
    %v5861 = vadd.f32 %v5821, %v5860
    %v5862 = vpop.f32.mrb[0].mxu0
    %v5863 = vpop.f32.mrb[0].mxu0
    %v5864 = vpop.f32.mrb[0].mxu0
    %5865 = vdwg.mxu0
    %5866 = vmatprep.subr.bf16.mxu0 0
    %5867 = vmatpush1.bf16.msra.mxu0 %v5466
    %5868 = vmatprep.subr.bf16.mxu0 0
    %5869 = vmatpush1.bf16.msra.mxu0 %v5467
    %5870 = vmatprep.subr.bf16.mxu0 0
    %5871 = vmatpush1.bf16.msra.mxu0 %v5468
    %5872 = vmatprep.subr.bf16.mxu0 0
    %5873 = vmatpush1.bf16.msra.mxu0 %v5469
    %5874 = vmatprep.subr.bf16.mxu0 0
    %5875 = vmatpush1.bf16.msra.mxu0 %v5470
    %5876 = vmatprep.subr.bf16.mxu0 0
    %5877 = vmatpush1.bf16.msra.mxu0 %v5471
    %5878 = vmatprep.subr.bf16.mxu0 0
    %5879 = vmatpush1.bf16.msra.mxu0 %v5472
    %5880 = vmatprep.subr.bf16.mxu0 0
    %5881 = vmatpush1.bf16.msra.mxu0 %v5473
    %5882 = vmatprep.subr.bf16.mxu0 0
    %5883 = vmatpush1.bf16.msra.mxu0 %v5474
    %5884 = vmatprep.subr.bf16.mxu0 0
    %5885 = vmatpush1.bf16.msra.mxu0 %v5475
    %5886 = vmatprep.subr.bf16.mxu0 0
    %5887 = vmatpush1.bf16.msra.mxu0 %v5476
    %5888 = vmatprep.subr.bf16.mxu0 0
    %5889 = vmatpush1.bf16.msra.mxu0 %v5477
    %5890 = vmatprep.subr.bf16.mxu0 0
    %5891 = vmatpush1.bf16.msra.mxu0 %v5478
    %5892 = vmatprep.subr.bf16.mxu0 0
    %5893 = vmatpush1.bf16.msra.mxu0 %v5479
    %5894 = vmatprep.subr.bf16.mxu0 0
    %5895 = vmatpush1.bf16.msra.mxu0 %v5480
    %5896 = vmatprep.subr.bf16.mxu0 0
    %5897 = vmatpush1.bf16.msra.mxu0 %v5481
    %5898 = vmatprep.mubr.bf16.mxu0 %v4594
    %5899 = vmatmul.mubr.bf16.gmra.mrb[0].mxu0 %v4593
    %v5900 = vpop.f32.mrb[0].mxu0
    %v5901 = vadd.f32 %v5861, %v5900
    %v5902 = vpop.f32.mrb[0].mxu0
    %v5903 = vpop.f32.mrb[0].mxu0
    %v5904 = vpop.f32.mrb[0].mxu0
    %5905 = vdwg.mxu0
    %5906 = vmatprep.subr.bf16.mxu0 0
    %5907 = vmatpush1.bf16.msra.mxu0 %v5482
    %5908 = vmatprep.subr.bf16.mxu0 0
    %5909 = vmatpush1.bf16.msra.mxu0 %v5483
    %5910 = vmatprep.subr.bf16.mxu0 0
    %5911 = vmatpush1.bf16.msra.mxu0 %v5484
    %5912 = vmatprep.subr.bf16.mxu0 0
    %5913 = vmatpush1.bf16.msra.mxu0 %v5485
    %5914 = vmatprep.subr.bf16.mxu0 0
    %5915 = vmatpush1.bf16.msra.mxu0 %v5486
    %5916 = vmatprep.subr.bf16.mxu0 0
    %5917 = vmatpush1.bf16.msra.mxu0 %v5487
    %5918 = vmatprep.subr.bf16.mxu0 0
    %5919 = vmatpush1.bf16.msra.mxu0 %v5488
    %5920 = vmatprep.subr.bf16.mxu0 0
    %5921 = vmatpush1.bf16.msra.mxu0 %v5489
    %5922 = vmatprep.subr.bf16.mxu0 0
    %5923 = vmatpush1.bf16.msra.mxu0 %v5490
    %5924 = vmatprep.subr.bf16.mxu0 0
    %5925 = vmatpush1.bf16.msra.mxu0 %v5491
    %5926 = vmatprep.subr.bf16.mxu0 0
    %5927 = vmatpush1.bf16.msra.mxu0 %v5492
    %5928 = vmatprep.subr.bf16.mxu0 0
    %5929 = vmatpush1.bf16.msra.mxu0 %v5493
    %5930 = vmatprep.subr.bf16.mxu0 0
    %5931 = vmatpush1.bf16.msra.mxu0 %v5494
    %5932 = vmatprep.subr.bf16.mxu0 0
    %5933 = vmatpush1.bf16.msra.mxu0 %v5495
    %5934 = vmatprep.subr.bf16.mxu0 0
    %5935 = vmatpush1.bf16.msra.mxu0 %v5496
    %5936 = vmatprep.subr.bf16.mxu0 0
    %5937 = vmatpush1.bf16.msra.mxu0 %v5497
    %5938 = vmatprep.mubr.bf16.mxu0 %v4596
    %5939 = vmatmul.mubr.bf16.gmra.mrb[0].mxu0 %v4595
    %v5940 = vpop.f32.mrb[0].mxu0
    %v5941 = vadd.f32 %v5901, %v5940
    %v5942 = vpop.f32.mrb[0].mxu0
    %v5943 = vpop.f32.mrb[0].mxu0
    %v5944 = vpop.f32.mrb[0].mxu0
    %5945 = vdwg.mxu0
    %v5946 = vadd.f32 %v3237, %v5941
    %5947 = vadd.xlane.f32.xlu0 %v5946
    %v5948 = vpop.xlane.xlu0 %5947
    %v5949 = vmul.f32 %v5948, %v344
    %v5950 = vmul.f32 %v5946, %v5946
    %5951 = vadd.xlane.f32.xlu0 %v5950
    %v5952 = vpop.xlane.xlu0 %5951
    %v5953 = vmul.f32 %v5952, %v344
    %v5954 = vmul.f32 %v5949, %v5949
    %v5955 = vsub.f32 %v5953, %v5954
    %v5956 = vmax.f32 %v5955, 0.0
    %v5957 = vsub.f32 %v5946, %v5949
    %v5958 = vadd.f32 %v5956, 1e-05
    %v5959 = vrsqrt.pop %v5958
    %v5960 = vmul.f32 %v5957, %v5959
    %v5961 = vlaneseq
    %v5962 = vshrl.u32 %v5961, 7
    %v5963 = vsub.s32 0, %v5962
    %v5964 = vrot.slane %v3102, %v5963
    %v5965 = vmul.f32 %v5960, %v5964
    %v5966 = vlaneseq
    %v5967 = vshrl.u32 %v5966, 7
    %v5968 = vsub.s32 0, %v5967
    %v5969 = vrot.slane %v3103, %v5968
    %v5970 = vadd.f32 %v5965, %v5969
    %v5971 = vpack.c.bf16 %v5970, %v5970
    %v5972 = vld [vmem:[#allocation16] sm:$0xf]
    %v5973 = vld [vmem:[#allocation16 + $0x4] sm:$0xf]
    %v5974 = vld [vmem:[#allocation16 + $0x8] sm:$0xf]
    %v5975 = vld [vmem:[#allocation16 + $0xc] sm:$0xf]
    %v5976 = vld [vmem:[#allocation16 + $0x10] sm:$0xf]
    %v5977 = vld [vmem:[#allocation16 + $0x14] sm:$0xf]
    %v5978 = vld [vmem:[#allocation16 + $0x18] sm:$0xf]
    %v5979 = vld [vmem:[#allocation16 + $0x1c] sm:$0xf]
    %v5980 = vld [vmem:[#allocation16 + $0x20] sm:$0xf]
    %v5981 = vld [vmem:[#allocation16 + $0x24] sm:$0xf]
    %v5982 = vld [vmem:[#allocation16 + $0x28] sm:$0xf]
    %v5983 = vld [vmem:[#allocation16 + $0x2c] sm:$0xf]
    %v5984 = vld [vmem:[#allocation16 + $0x30] sm:$0xf]
    %v5985 = vld [vmem:[#allocation16 + $0x34] sm:$0xf]
    %v5986 = vld [vmem:[#allocation16 + $0x38] sm:$0xf]
    %v5987 = vld [vmem:[#allocation16 + $0x3c] sm:$0xf]
    %v5988 = vld [vmem:[#allocation17] sm:$0x1]
    %v5990 = vlaneseq
    %v5991 = vshrl.u32 %v5990, 7
    %v5992 = vsub.s32 0, %v5991
    %v5993 = vrot.slane %v5988, %v5992
    %v6011 = vunpack.c.l.b16 %v5972
    %v6012 = vunpack.c.l.b16 %v5973
    %v6013 = vunpack.c.l.b16 %v5974
    %v6014 = vunpack.c.l.b16 %v5975
    %v6015 = vunpack.c.l.b16 %v5976
    %v6016 = vunpack.c.l.b16 %v5977
    %v6017 = vunpack.c.l.b16 %v5978
    %v6018 = vunpack.c.l.b16 %v5979
    %v6019 = vunpack.c.l.b16 %v5980
    %v6020 = vunpack.c.l.b16 %v5981
    %v6021 = vunpack.c.l.b16 %v5982
    %v6022 = vunpack.c.l.b16 %v5983
    %v6023 = vunpack.c.l.b16 %v5984
    %v6024 = vunpack.c.l.b16 %v5985
    %v6025 = vunpack.c.l.b16 %v5986
    %v6026 = vunpack.c.l.b16 %v5987
    %v6027 = vpack.c.b16 %v6012, %v6011
    %v6028 = vpack.c.b16 %v6014, %v6013
    %v6029 = vpack.c.b16 %v6016, %v6015
    %v6030 = vpack.c.b16 %v6018, %v6017
    %v6031 = vpack.c.b16 %v6020, %v6019
    %v6032 = vpack.c.b16 %v6022, %v6021
    %v6033 = vpack.c.b16 %v6024, %v6023
    %v6034 = vpack.c.b16 %v6026, %v6025
    %6043 = vmatprep.subr.bf16.mxu0 0
    %6044 = vmatpush1.bf16.msra.mxu0 %v6027
    %6045 = vmatprep.subr.bf16.mxu0 0
    %6046 = vmatpush1.bf16.msra.mxu0 %v6028
    %6047 = vmatprep.subr.bf16.mxu0 0
    %6048 = vmatpush1.bf16.msra.mxu0 %v6029
    %6049 = vmatprep.subr.bf16.mxu0 0
    %6050 = vmatpush1.bf16.msra.mxu0 %v6030
    %6051 = vmatprep.subr.bf16.mxu0 0
    %6052 = vmatpush1.bf16.msra.mxu0 %v6031
    %6053 = vmatprep.subr.bf16.mxu0 0
    %6054 = vmatpush1.bf16.msra.mxu0 %v6032
    %6055 = vmatprep.subr.bf16.mxu0 0
    %6056 = vmatpush1.bf16.msra.mxu0 %v6033
    %6057 = vmatprep.subr.bf16.mxu0 0
    %6058 = vmatpush1.bf16.msra.mxu0 %v6034
    %6059 = vmatprep.subr.bf16.mxu0 0
    %6060 = vmatpush1.bf16.msra.mxu0 0
    %6061 = vmatprep.subr.bf16.mxu0 0
    %6062 = vmatpush1.bf16.msra.mxu0 0
    %6063 = vmatprep.subr.bf16.mxu0 0
    %6064 = vmatpush1.bf16.msra.mxu0 0
    %6065 = vmatprep.subr.bf16.mxu0 0
    %6066 = vmatpush1.bf16.msra.mxu0 0
    %6067 = vmatprep.subr.bf16.mxu0 0
    %6068 = vmatpush1.bf16.msra.mxu0 0
    %6069 = vmatprep.subr.bf16.mxu0 0
    %6070 = vmatpush1.bf16.msra.mxu0 0
    %6071 = vmatprep.subr.bf16.mxu0 0
    %6072 = vmatpush1.bf16.msra.mxu0 0
    %6073 = vmatprep.subr.bf16.mxu0 0
    %6074 = vmatpush1.bf16.msra.mxu0 0
    %6075 = vmatprep.mubr.bf16.mxu0 0
    %6076 = vmatmul.mubr.bf16.gmra.mrb[0].mxu0 %v5971
    %v6077 = vpop.f32.mrb[0].mxu0
    %v6078 = vadd.f32 %v5993, %v6077
    %v6079 = vpop.f32.mrb[0].mxu0
    %v6080 = vpop.f32.mrb[0].mxu0
    %v6081 = vpop.f32.mrb[0].mxu0
    %6082 = vdwg.mxu0
    %6083 = vst [vmem:[#allocation19] sm:$0xff] %v6078
    // Predicated region
    $region82: #{tpu_custom_call.1} parent=1 // pred_check
      _
    $region83: #{tpu_custom_call.1} parent=1 // pred_check_branch
      %6085 = sbr.rel (0) target = $region85
    $region84: #{tpu_custom_call.1} parent=1 // pred_region
      %s6087 = ssub.s32 128, 128
      %6088 = vsyncadd [#allocation4], %s6087
      %s6090 = sshll.u32 [#allocation19], 4
      %s6091 = int_to_ptr.vmem [resolvable:$true] %s6090
      %6093 = dma.vmem_to_hbm [thread:$0]  %s6091, 128, %s10, [#allocation4]
    $region85: #{tpu_custom_call.1} parent=1 // pred_fallthru
      _
    // Predicated region
    $region86: #{tpu_custom_call.1} parent=1 // pred_check
      _
    $region87: #{tpu_custom_call.1} parent=1 // pred_check_branch
      %6095 = sbr.rel (0) target = $region89
    $region88: #{tpu_custom_call.1} parent=1 // pred_region
      %6096 = dma.done [#allocation4], 128
    $region89: #{tpu_custom_call.1} parent=1 // pred_fallthru
      _
    %6097 = vsyncpa [#allocation3], 1
    %6098 = vsyncpa [#allocation6], 1
    %6099 = vsyncpa [#allocation9], 1
    %6100 = vsyncpa [#allocation12], 1
    %6101 = vsyncpa [#allocation15], 1
    %6102 = vsyncpa [#allocation18], 1
    %6103 = vsyncpa [#allocation4], 1

</llo_original>
